<compile_context>
chip_gen: v6e
topology: v6e:2x2x1
jax: 0.10.0
libtpu: 0.0.40
codegen_flags: <defaults>
</compile_context>

<pallas_src>
import functools
import math

import jax
import jax.numpy as jnp
from jax.experimental import pallas as pl
from jax.experimental.pallas import tpu as pltpu


# ----------------------------------------------------------------------------
# Pallas kernels: fused (Cout, K) @ (K, TM) GEMM + bias (+ scalar PReLU).
# Operands arrive in bf16; accumulation is f32; output dtype = o_ref dtype.
# ----------------------------------------------------------------------------
def _gemm_bias_kernel(w_ref, p_ref, bias_ref, o_ref):
    acc = jnp.dot(w_ref[...], p_ref[...], preferred_element_type=jnp.float32)
    o_ref[...] = (acc + bias_ref[...]).astype(o_ref.dtype)


def _gemm_bias_prelu_kernel(w_ref, p_ref, bias_ref, alpha_ref, o_ref):
    acc = jnp.dot(w_ref[...], p_ref[...], preferred_element_type=jnp.float32)
    acc = acc + bias_ref[...]
    alpha = alpha_ref[0]
    o_ref[...] = jnp.where(acc >= 0.0, acc, alpha * acc).astype(o_ref.dtype)


def _round_up(x, m):
    return ((x + m - 1) // m) * m


def _pick_tile(mp):
    # Prefer a large lane tile but keep >=2 grid steps when possible so the
    # v7x megacore can shard the "parallel" axis across both TensorCores.
    for t in (1024, 512, 256, 128):
        if mp % t == 0 and mp // t >= 2:
            return t
    return mp  # single step; mp is already a multiple of 128 and small here


def gemm_bias_act(wmat, patches, bias, alpha=None, out_dtype=jnp.float32):
    """out = wmat @ patches + bias[:, None], optional scalar PReLU.

    wmat: (Cout, K) f32 or bf16, patches: (K, M), bias: (Cout,) f32.
    alpha: None -> identity; scalar array -> PReLU (fused in the kernel).
    Output last dim is M (spatial rows) so stores are lane-dense.
    """
    cout, k = wmat.shape
    k2, m = patches.shape
    assert k2 == k

    # Pathological GEMMs (1-wide output, or a handful of spatial rows) are
    # pure launch overhead on the MXU -- leave them to XLA fusion (f32 math).
    if cout < 8 or m < 128:
        out = wmat.astype(jnp.float32) @ patches.astype(jnp.float32)
        out = out + bias[:, None]
        if alpha is not None:
            out = jnp.where(out >= 0.0, out, alpha * out)
        return out.astype(out_dtype)

    kp = _round_up(k, 16)     # bf16 sublane alignment along the K axis
    mp = _round_up(m, 128)    # lane alignment along the spatial axis
    if kp != k:
        wmat = jnp.pad(wmat, ((0, 0), (0, kp - k)))
        patches = jnp.pad(patches, ((0, kp - k), (0, 0)))
    if mp != m:
        patches = jnp.pad(patches, ((0, 0), (0, mp - m)))

    tm = _pick_tile(mp)
    w_b = wmat.astype(jnp.bfloat16)      # no-op if pre-cast at prep time
    p_b = patches.astype(jnp.bfloat16)
    bias_c = bias.reshape(cout, 1).astype(jnp.float32)

    in_specs = [
        pl.BlockSpec((cout, kp), lambda i: (0, 0)),   # weights: resident
        pl.BlockSpec((kp, tm), lambda i: (0, i)),     # patch tile (lanes)
        pl.BlockSpec((cout, 1), lambda i: (0, 0)),    # bias
    ]
    operands = [w_b, p_b, bias_c]
    if alpha is None:
        kernel = _gemm_bias_kernel
    else:
        kernel = _gemm_bias_prelu_kernel
        in_specs.append(pl.BlockSpec(memory_space=pltpu.MemorySpace.SMEM))
        operands.append(jnp.asarray(alpha, jnp.float32).reshape(1))

    out = pl.pallas_call(
        kernel,
        out_shape=jax.ShapeDtypeStruct((cout, mp), out_dtype),
        grid=(mp // tm,),
        in_specs=in_specs,
        out_specs=pl.BlockSpec((cout, tm), lambda i: (0, i)),
        compiler_params=pltpu.CompilerParams(dimension_semantics=("parallel",)),
    )(*operands)
    return out[:, :m]


# ----------------------------------------------------------------------------
# Conv / Deconv via im2col + Pallas GEMM
# ----------------------------------------------------------------------------
def _im2col(x, kh, kw, stride, padding):
    """(C*kh*kw, N*Ho*Wo) patch matrix; row order (c, dy, dx), col (n, ho, wo)."""
    n, c, h, w = x.shape
    xp = jnp.pad(x, ((0, 0), (0, 0), (padding, padding), (padding, padding)))
    ho = (h + 2 * padding - kh) // stride + 1
    wo = (w + 2 * padding - kw) // stride + 1
    taps = []
    for dy in range(kh):
        for dx in range(kw):
            taps.append(
                xp[:, :, dy:dy + stride * ho:stride, dx:dx + stride * wo:stride])
    p = jnp.stack(taps, axis=2)                         # (N, C, kh*kw, Ho, Wo)
    p = p.transpose(1, 2, 0, 3, 4).reshape(c * kh * kw, n * ho * wo)
    # TODO(synk): the patch matrix is still materialized by XLA (kh*kw x the
    # activation bytes); fusing im2col into the kernel via per-tap index_maps
    # would cut that HBM traffic further.
    return p, ho, wo


def conv2d(x, w, b, alpha, stride, padding, out_dtype=jnp.float32):
    """x: (N,C,H,W); w: (Cout,Cin,KH,KW) -- PyTorch Conv2d semantics."""
    n = x.shape[0]
    cout, cin, kh, kw = w.shape
    patches, ho, wo = _im2col(x, kh, kw, stride, padding)
    wmat = w.reshape(cout, cin * kh * kw)
    y = gemm_bias_act(wmat, patches, b, alpha, out_dtype)   # (Cout, N*Ho*Wo)
    return y.reshape(cout, n, ho, wo).transpose(1, 0, 2, 3)


# -------- prepared (loop-hoisted) reconstructor layers -----------------------
# (kind, stride, padding) for the 8 reconstructor blocks.
_RECON_LAYOUT = (
    ("conv", 1, 1), ("conv", 2, 1), ("deconv", 2, 2), ("conv", 2, 1),
    ("deconv", 2, 2), ("conv", 2, 1), ("deconv", 2, 2), ("conv", 1, 1),
)


def _prep_deconv622(w):
    """Sub-pixel decomposition of ConvTranspose2d(k=6, s=2, p=2).

      y[n, co, 2m+ph, 2q+pw] = sum_{u,v,ci} x[n, ci, m+u-1, q+v-1]
                                            * w[ci, co, 4-2u+ph, 4-2v+pw]
    Each of the 4 phases is a 3x3 / stride-1 / pad-1 conv over the same input,
    so all phases share one im2col matrix and one lane-dense GEMM.
    """
    cin, cout = w.shape[:2]
    wk = jnp.flip(w.reshape(cin, cout, 3, 2, 3, 2), axis=(2, 4))
    # wk[ci, co, u, ph, v, pw] = w[ci, co, 4-2u+ph, 4-2v+pw]
    wk = wk.transpose(3, 5, 1, 0, 2, 4)                 # (ph, pw, Cout, Cin, u, v)
    return wk.reshape(4 * cout, cin * 9)


def prepare_reconstructor(recon_params):
    """Build GEMM-ready weights ONCE (outside the repeat loop)."""
    prepped = []
    for p, (kind, stride, pad) in zip(recon_params, _RECON_LAYOUT):
        alpha = p.get("alpha")
        if kind == "deconv":
            cin, cout = p["w"].shape[:2]
            wmat = _prep_deconv622(p["w"]).astype(jnp.bfloat16)
            prepped.append({"kind": "deconv", "wmat": wmat,
                            "b": jnp.tile(p["b"], 4), "alpha": alpha,
                            "cout": cout})
        else:
            cout, cin, kh, kw = p["w"].shape
            wmat = p["w"].reshape(cout, cin * kh * kw)
            if cout >= 8:                 # Pallas path -> pre-cast to bf16
                wmat = wmat.astype(jnp.bfloat16)
            prepped.append({"kind": "conv", "wmat": wmat, "b": p["b"],
                            "alpha": alpha, "stride": stride, "pad": pad,
                            "kh": kh, "kw": kw, "cout": cout})
    return prepped


def _apply_conv_prepped(l, x, out_dtype):
    n = x.shape[0]
    patches, ho, wo = _im2col(x, l["kh"], l["kw"], l["stride"], l["pad"])
    y = gemm_bias_act(l["wmat"], patches, l["b"], l["alpha"], out_dtype)
    return y.reshape(l["cout"], n, ho, wo).transpose(1, 0, 2, 3)


def _apply_deconv_prepped(l, x, out_dtype):
    n, _, h, w = x.shape
    cout = l["cout"]
    patches, _, _ = _im2col(x, 3, 3, 1, 1)              # (Cin*9, N*H*W)
    y = gemm_bias_act(l["wmat"], patches, l["b"], l["alpha"], out_dtype)
    y = y.reshape(2, 2, cout, n, h, w)                  # (ph, pw, co, n, m, q)
    y = y.transpose(3, 2, 4, 0, 5, 1).reshape(n, cout, 2 * h, 2 * w)
    return y


def reconstructor_prepped(prepped, x):
    last = len(prepped) - 1
    for i, l in enumerate(prepped):
        # intermediates in bf16 (halves hot-loop HBM traffic); final layer f32
        out_dtype = jnp.float32 if i == last else jnp.bfloat16
        if l["kind"] == "deconv":
            x = _apply_deconv_prepped(l, x, out_dtype)
        else:
            x = _apply_conv_prepped(l, x, out_dtype)
    return x


# ----------------------------------------------------------------------------
# Small JAX glue ops (fused by XLA under the jit)
# ----------------------------------------------------------------------------
def prelu(x, alpha):
    return jnp.where(x >= 0.0, x, alpha * x)


def batchnorm_train(x, gamma, beta, eps=1e-5):
    # training-mode BatchNorm2d forward (batch stats, biased variance)
    mean = x.mean(axis=(0, 2, 3), keepdims=True)
    var = ((x - mean) ** 2).mean(axis=(0, 2, 3), keepdims=True)
    xn = (x - mean) / jnp.sqrt(var + eps)
    return gamma.reshape(1, -1, 1, 1) * xn + beta.reshape(1, -1, 1, 1)


def maxpool2(x):
    n, c, h, w = x.shape
    return x.reshape(n, c, h // 2, 2, w // 2, 2).max(axis=(3, 5))


def adaptive_avgpool1(x):
    return x.mean(axis=(2, 3), keepdims=True)


def bilinear_resize(x, out_h, out_w, scale_h=None, scale_w=None):
    """nn.Upsample(mode='bilinear', align_corners=False) semantics."""
    _, _, h, w = x.shape
    sh = (h / out_h) if scale_h is None else scale_h
    sw = (w / out_w) if scale_w is None else scale_w

    def src_idx(out_size, in_size, scale):
        i = jnp.arange(out_size, dtype=jnp.float32)
        src = jnp.maximum(scale * (i + 0.5) - 0.5, 0.0)
        i0 = jnp.minimum(jnp.floor(src).astype(jnp.int32), in_size - 1)
        i1 = jnp.minimum(i0 + 1, in_size - 1)
        frac = src - i0.astype(jnp.float32)
        return i0, i1, 1.0 - frac, frac

    h0, h1, wh0, wh1 = src_idx(out_h, h, sh)
    w0, w1, ww0, ww1 = src_idx(out_w, w, sw)
    rows = (x[:, :, h0, :] * wh0[None, None, :, None]
            + x[:, :, h1, :] * wh1[None, None, :, None])
    out = (rows[:, :, :, w0] * ww0[None, None, None, :]
           + rows[:, :, :, w1] * ww1[None, None, None, :])
    return out


# ----------------------------------------------------------------------------
# Parameters (deterministic, synthetic).  ConvBlock_v2 applies
# conv -> (bn) -> (prelu).  nn.PReLU() default = single alpha, init 0.25.
# Param dicts contain only arrays (structure drives kind/act/bn statically).
# ----------------------------------------------------------------------------
def _block(key, cin, cout, k, kind, act, bn=False):
    kw_, kb_ = jax.random.split(key)
    wshape = (cin, cout, k, k) if kind == "deconv" else (cout, cin, k, k)
    p = {"w": 0.05 * jax.random.normal(kw_, wshape, jnp.float32),
         "b": 0.02 * jax.random.normal(kb_, (cout,), jnp.float32)}
    if act:
        p["alpha"] = jnp.float32(0.25)
    if bn:
        p["gamma"] = jnp.ones((cout,), jnp.float32)
        p["beta"] = jnp.zeros((cout,), jnp.float32)
    return p


def init_params(key, repeat):
    keys = jax.random.split(key, 18)
    recon = [
        _block(keys[0], 1, 32, 3, "conv", True),       # s1 p1
        _block(keys[1], 32, 32, 3, "conv", True),      # s2 p1
        _block(keys[2], 32, 32, 6, "deconv", True),    # s2 p2
        _block(keys[3], 32, 32, 3, "conv", True),
        _block(keys[4], 32, 32, 6, "deconv", True),
        _block(keys[5], 32, 32, 3, "conv", True),
        _block(keys[6], 32, 32, 6, "deconv", True),
        _block(keys[7], 32, 1, 3, "conv", False),      # s1 p1, no act
    ]
    reg = [
        _block(keys[8], repeat, 64, 3, "conv", True, bn=True),   # s1 p1
        _block(keys[9], 64, 64, 3, "conv", True, bn=True),       # s2 p1
        _block(keys[10], 64, 64, 3, "conv", True, bn=True),      # s2 p1
        _block(keys[11], 64, 64, 3, "conv", True, bn=False),     # s2 p1
        _block(keys[12], 64, 64, 1, "conv", True, bn=False),     # 1x1
        _block(keys[13], 64, 1, 1, "conv", False, bn=False),     # 1x1
    ]
    return {"recon": recon, "reg": reg}


# ----------------------------------------------------------------------------
# RAPN forward
# ----------------------------------------------------------------------------
def _conv_block(p, x, stride, padding):
    if "gamma" in p:
        # conv -> BN -> PReLU: BN sits between, so the act is not fused.
        y = conv2d(x, p["w"], p["b"], None, stride, padding)
        y = batchnorm_train(y, p["gamma"], p["beta"])
        return prelu(y, p["alpha"])
    return conv2d(x, p["w"], p["b"], p.get("alpha"), stride, padding)


def scale_regressor(params, x):
    p = params
    x = _conv_block(p[0], x, 1, 1)
    x = maxpool2(x)
    x = _conv_block(p[1], x, 2, 1)
    x = maxpool2(x)
    x = _conv_block(p[2], x, 2, 1)
    x = maxpool2(x)
    x = _conv_block(p[3], x, 2, 1)
    x = adaptive_avgpool1(x)
    x = _conv_block(p[4], x, 1, 0)
    x = _conv_block(p[5], x, 1, 0)
    return x


@functools.partial(jax.jit, static_argnames=("target_scales", "repeat"))
def rapn_forward(params, input_x, target_scales, repeat=10):
    # target_scales are static floats: floor(H / s) is shape-defining.
    # NOTE: matches nn.Upsample(scale_factor=1/s, align_corners=False) with the
    # default (non-recomputed) scale factor.
    B, _, H, W = input_x.shape
    lrs = []
    for i, ts in enumerate(target_scales):
        f = 1.0 / ts
        oh, ow = int(math.floor(H * f)), int(math.floor(W * f))
        x = input_x[i:i + 1]
        lr = bilinear_resize(x, oh, ow, scale_h=ts, scale_w=ts)
        lr = bilinear_resize(lr, H, W)
        lrs.append(lr)
    lr = jnp.concatenate(lrs, axis=0)

    # Hoist all weight reshapes / deconv phase flips / bf16 casts out of the
    # repeat loop: prepared arrays are loop constants of the scan.
    prepped = prepare_reconstructor(params["recon"])

    def step(cur, _):
        new = cur + reconstructor_prepped(prepped, cur)
        return new, new

    _, stacked = jax.lax.scan(step, lr, None, length=repeat)  # (repeat,B,1,H,W)
    outs = [stacked[i] for i in range(repeat)]
    feat = jnp.transpose(stacked[:, :, 0], (1, 0, 2, 3))      # (B, repeat, H, W)
    pred = scale_regressor(params["reg"], feat)               # (B, 1, 1, 1)
    pred_scale = pred.reshape(B, -1) + 2.5                    # squeeze().view(B,-1)+2.5
    return outs, pred_scale


# TODO(synk): RAPN.evaluate() references undefined names (lr_patch, pred_scale)
# in the original source and is effectively dead code; it is not translated.

if __name__ == "__main__":
    key = jax.random.PRNGKey(0)
    kx, kp = jax.random.split(key)

    B, H, W = 2, 32, 32          # smallest spatial size surviving 3x MaxPool2d(2)
    repeat = 10
    input_x = jax.random.normal(kx, (B, 1, H, W), jnp.float32)
    target_scales = (2.0, 4.0)   # per-sample scales (static -> static shapes)

    params = init_params(kp, repeat)
    outs, pred_scale = rapn_forward(params, input_x,
                                    target_scales=target_scales, repeat=repeat)

    for o in outs:
        jax.block_until_ready(o)
    jax.block_until_ready(pred_scale)

    assert len(outs) == repeat
    assert all(o.shape == (B, 1, H, W) for o in outs)
    assert pred_scale.shape == (B, 1)
    assert all(bool(jnp.all(jnp.isfinite(o))) for o in outs)
    assert bool(jnp.all(jnp.isfinite(pred_scale)))
    print("KERNEL_OK")
</pallas_src>

<mosaic_0001>
module attributes {stable_mosaic.version = 11 : i64} {
  func.func @_gemm_bias_prelu_kernel(%arg0: i32, %arg1: memref<32x16xbf16, #tpu.memory_space<vmem>>, %arg2: memref<16x1024xbf16, #tpu.memory_space<vmem>>, %arg3: memref<32x1xf32, #tpu.memory_space<vmem>>, %arg4: memref<1xf32, #tpu.memory_space<smem>>, %arg5: memref<32x1024xbf16, #tpu.memory_space<vmem>>) attributes {dimension_semantics = [#tpu.dimension_semantics<parallel>], iteration_bounds = array<i64: 2>, scalar_prefetch = 0 : i64, scratch_operands = 0 : i64, tpu.core_type = #tpu.core_type<tc>, window_params = [{pipeline_mode = #tpu.pipeline_mode<synchronous>, transform_indices = @transform_0, window_bounds = array<i64: 32, 16>}, {transform_indices = @transform_1, window_bounds = array<i64: 16, 1024>}, {pipeline_mode = #tpu.pipeline_mode<synchronous>, transform_indices = @transform_2, window_bounds = array<i64: 32, 1>}, {transform_indices = @transform_3, window_bounds = array<i64: 1>}, {transform_indices = @transform_4, window_bounds = array<i64: 32, 1024>}]} {
    %c0 = arith.constant 0 : index
    %c0_0 = arith.constant 0 : index
    %0 = vector.load %arg1[%c0, %c0_0] : memref<32x16xbf16, #tpu.memory_space<vmem>>, vector<32x16xbf16>
    %c0_1 = arith.constant 0 : index
    %c0_2 = arith.constant 0 : index
    %1 = vector.load %arg2[%c0_1, %c0_2] : memref<16x1024xbf16, #tpu.memory_space<vmem>>, vector<16x1024xbf16>
    %cst = arith.constant dense<0.000000e+00> : vector<32x1024xf32>
    %2 = tpu.matmul %0, %1, %cst {dimension_numbers = #tpu.dot_dimension_numbers<[1], [0], [0], [1], [0, 0, 1, 1], [], []>} : vector<32x16xbf16>, vector<16x1024xbf16>, vector<32x1024xf32> -> vector<32x1024xf32>
    %c0_3 = arith.constant 0 : index
    %c0_4 = arith.constant 0 : index
    %3 = vector.load %arg3[%c0_3, %c0_4] : memref<32x1xf32, #tpu.memory_space<vmem>>, vector<32x1xf32>
    %4 = vector.broadcast %3 : vector<32x1xf32> to vector<32x1024xf32>
    %5 = arith.addf %2, %4 : vector<32x1024xf32>
    %c0_5 = arith.constant 0 : index
    %6 = memref.load %arg4[%c0_5] : memref<1xf32, #tpu.memory_space<smem>>
    %cst_6 = arith.constant 0.000000e+00 : f32
    %7 = vector.broadcast %cst_6 : f32 to vector<32x1024xf32>
    %8 = arith.cmpf oge, %5, %7 : vector<32x1024xf32>
    %9 = vector.broadcast %6 : f32 to vector<32x1024xf32>
    %10 = arith.mulf %9, %5 : vector<32x1024xf32>
    %11 = arith.select %8, %5, %10 : vector<32x1024xi1>, vector<32x1024xf32>
    %12 = arith.truncf %11 : vector<32x1024xf32> to vector<32x1024xbf16>
    %c0_7 = arith.constant 0 : index
    %c0_8 = arith.constant 0 : index
    %13 = vector.load %arg5[%c0_7, %c0_8] : memref<32x1024xbf16, #tpu.memory_space<vmem>>, vector<32x1024xbf16>
    tpu.vector_store %arg5[%c0_7, %c0_8], %12 {strides = array<i32>} : memref<32x1024xbf16, #tpu.memory_space<vmem>>, vector<32x1024xbf16>,
    return
  }
  func.func @transform_0(%arg0: i32) -> (i32, i32) {
    %c0_i32 = arith.constant 0 : i32
    %c0_i32_0 = arith.constant 0 : i32
    %c0_i32_1 = arith.constant 0 : i32
    return %c0_i32, %c0_i32_0 : i32, i32
  }
  func.func @transform_1(%arg0: i32) -> (i32, i32) {
    %c0_i32 = arith.constant 0 : i32
    %c0_i32_0 = arith.constant 0 : i32
    return %c0_i32, %arg0 : i32, i32
  }
  func.func @transform_2(%arg0: i32) -> (i32, i32) {
    %c0_i32 = arith.constant 0 : i32
    %c0_i32_0 = arith.constant 0 : i32
    %c0_i32_1 = arith.constant 0 : i32
    return %c0_i32, %c0_i32_0 : i32, i32
  }
  func.func @transform_3(%arg0: i32) -> i32 {
    %c0_i32 = arith.constant 0 : i32
    %c0_i32_0 = arith.constant 0 : i32
    return %c0_i32 : i32
  }
  func.func @transform_4(%arg0: i32) -> (i32, i32) {
    %c0_i32 = arith.constant 0 : i32
    %c0_i32_0 = arith.constant 0 : i32
    return %c0_i32, %arg0 : i32, i32
  }
}

module attributes {stable_mosaic.version = 11 : i64} {
  func.func @_gemm_bias_prelu_kernel(%arg0: i32, %arg1: memref<32x288xbf16, #tpu.memory_space<vmem>>, %arg2: memref<288x256xbf16, #tpu.memory_space<vmem>>, %arg3: memref<32x1xf32, #tpu.memory_space<vmem>>, %arg4: memref<1xf32, #tpu.memory_space<smem>>, %arg5: memref<32x256xbf16, #tpu.memory_space<vmem>>) attributes {dimension_semantics = [#tpu.dimension_semantics<parallel>], iteration_bounds = array<i64: 2>, scalar_prefetch = 0 : i64, scratch_operands = 0 : i64, tpu.core_type = #tpu.core_type<tc>, window_params = [{pipeline_mode = #tpu.pipeline_mode<synchronous>, transform_indices = @transform_0, window_bounds = array<i64: 32, 288>}, {transform_indices = @transform_1, window_bounds = array<i64: 288, 256>}, {pipeline_mode = #tpu.pipeline_mode<synchronous>, transform_indices = @transform_2, window_bounds = array<i64: 32, 1>}, {transform_indices = @transform_3, window_bounds = array<i64: 1>}, {transform_indices = @transform_4, window_bounds = array<i64: 32, 256>}]} {
    %c0 = arith.constant 0 : index
    %c0_0 = arith.constant 0 : index
    %0 = vector.load %arg1[%c0, %c0_0] : memref<32x288xbf16, #tpu.memory_space<vmem>>, vector<32x288xbf16>
    %c0_1 = arith.constant 0 : index
    %c0_2 = arith.constant 0 : index
    %1 = vector.load %arg2[%c0_1, %c0_2] : memref<288x256xbf16, #tpu.memory_space<vmem>>, vector<288x256xbf16>
    %cst = arith.constant dense<0.000000e+00> : vector<32x256xf32>
    %2 = tpu.matmul %0, %1, %cst {dimension_numbers = #tpu.dot_dimension_numbers<[1], [0], [0], [1], [0, 0, 1, 1], [], []>} : vector<32x288xbf16>, vector<288x256xbf16>, vector<32x256xf32> -> vector<32x256xf32>
    %c0_3 = arith.constant 0 : index
    %c0_4 = arith.constant 0 : index
    %3 = vector.load %arg3[%c0_3, %c0_4] : memref<32x1xf32, #tpu.memory_space<vmem>>, vector<32x1xf32>
    %4 = vector.broadcast %3 : vector<32x1xf32> to vector<32x256xf32>
    %5 = arith.addf %2, %4 : vector<32x256xf32>
    %c0_5 = arith.constant 0 : index
    %6 = memref.load %arg4[%c0_5] : memref<1xf32, #tpu.memory_space<smem>>
    %cst_6 = arith.constant 0.000000e+00 : f32
    %7 = vector.broadcast %cst_6 : f32 to vector<32x256xf32>
    %8 = arith.cmpf oge, %5, %7 : vector<32x256xf32>
    %9 = vector.broadcast %6 : f32 to vector<32x256xf32>
    %10 = arith.mulf %9, %5 : vector<32x256xf32>
    %11 = arith.select %8, %5, %10 : vector<32x256xi1>, vector<32x256xf32>
    %12 = arith.truncf %11 : vector<32x256xf32> to vector<32x256xbf16>
    %c0_7 = arith.constant 0 : index
    %c0_8 = arith.constant 0 : index
    %13 = vector.load %arg5[%c0_7, %c0_8] : memref<32x256xbf16, #tpu.memory_space<vmem>>, vector<32x256xbf16>
    tpu.vector_store %arg5[%c0_7, %c0_8], %12 {strides = array<i32>} : memref<32x256xbf16, #tpu.memory_space<vmem>>, vector<32x256xbf16>,
    return
  }
  func.func @transform_0(%arg0: i32) -> (i32, i32) {
    %c0_i32 = arith.constant 0 : i32
    %c0_i32_0 = arith.constant 0 : i32
    %c0_i32_1 = arith.constant 0 : i32
    return %c0_i32, %c0_i32_0 : i32, i32
  }
  func.func @transform_1(%arg0: i32) -> (i32, i32) {
    %c0_i32 = arith.constant 0 : i32
    %c0_i32_0 = arith.constant 0 : i32
    return %c0_i32, %arg0 : i32, i32
  }
  func.func @transform_2(%arg0: i32) -> (i32, i32) {
    %c0_i32 = arith.constant 0 : i32
    %c0_i32_0 = arith.constant 0 : i32
    %c0_i32_1 = arith.constant 0 : i32
    return %c0_i32, %c0_i32_0 : i32, i32
  }
  func.func @transform_3(%arg0: i32) -> i32 {
    %c0_i32 = arith.constant 0 : i32
    %c0_i32_0 = arith.constant 0 : i32
    return %c0_i32 : i32
  }
  func.func @transform_4(%arg0: i32) -> (i32, i32) {
    %c0_i32 = arith.constant 0 : i32
    %c0_i32_0 = arith.constant 0 : i32
    return %c0_i32, %arg0 : i32, i32
  }
}

module attributes {stable_mosaic.version = 11 : i64} {
  func.func @_gemm_bias_prelu_kernel(%arg0: i32, %arg1: memref<128x288xbf16, #tpu.memory_space<vmem>>, %arg2: memref<288x256xbf16, #tpu.memory_space<vmem>>, %arg3: memref<128x1xf32, #tpu.memory_space<vmem>>, %arg4: memref<1xf32, #tpu.memory_space<smem>>, %arg5: memref<128x256xbf16, #tpu.memory_space<vmem>>) attributes {dimension_semantics = [#tpu.dimension_semantics<parallel>], iteration_bounds = array<i64: 2>, scalar_prefetch = 0 : i64, scratch_operands = 0 : i64, tpu.core_type = #tpu.core_type<tc>, window_params = [{pipeline_mode = #tpu.pipeline_mode<synchronous>, transform_indices = @transform_0, window_bounds = array<i64: 128, 288>}, {transform_indices = @transform_1, window_bounds = array<i64: 288, 256>}, {pipeline_mode = #tpu.pipeline_mode<synchronous>, transform_indices = @transform_2, window_bounds = array<i64: 128, 1>}, {transform_indices = @transform_3, window_bounds = array<i64: 1>}, {transform_indices = @transform_4, window_bounds = array<i64: 128, 256>}]} {
    %c0 = arith.constant 0 : index
    %c0_0 = arith.constant 0 : index
    %0 = vector.load %arg1[%c0, %c0_0] : memref<128x288xbf16, #tpu.memory_space<vmem>>, vector<128x288xbf16>
    %c0_1 = arith.constant 0 : index
    %c0_2 = arith.constant 0 : index
    %1 = vector.load %arg2[%c0_1, %c0_2] : memref<288x256xbf16, #tpu.memory_space<vmem>>, vector<288x256xbf16>
    %cst = arith.constant dense<0.000000e+00> : vector<128x256xf32>
    %2 = tpu.matmul %0, %1, %cst {dimension_numbers = #tpu.dot_dimension_numbers<[1], [0], [0], [1], [0, 0, 1, 1], [], []>} : vector<128x288xbf16>, vector<288x256xbf16>, vector<128x256xf32> -> vector<128x256xf32>
    %c0_3 = arith.constant 0 : index
    %c0_4 = arith.constant 0 : index
    %3 = vector.load %arg3[%c0_3, %c0_4] : memref<128x1xf32, #tpu.memory_space<vmem>>, vector<128x1xf32>
    %4 = vector.broadcast %3 : vector<128x1xf32> to vector<128x256xf32>
    %5 = arith.addf %2, %4 : vector<128x256xf32>
    %c0_5 = arith.constant 0 : index
    %6 = memref.load %arg4[%c0_5] : memref<1xf32, #tpu.memory_space<smem>>
    %cst_6 = arith.constant 0.000000e+00 : f32
    %7 = vector.broadcast %cst_6 : f32 to vector<128x256xf32>
    %8 = arith.cmpf oge, %5, %7 : vector<128x256xf32>
    %9 = vector.broadcast %6 : f32 to vector<128x256xf32>
    %10 = arith.mulf %9, %5 : vector<128x256xf32>
    %11 = arith.select %8, %5, %10 : vector<128x256xi1>, vector<128x256xf32>
    %12 = arith.truncf %11 : vector<128x256xf32> to vector<128x256xbf16>
    %c0_7 = arith.constant 0 : index
    %c0_8 = arith.constant 0 : index
    %13 = vector.load %arg5[%c0_7, %c0_8] : memref<128x256xbf16, #tpu.memory_space<vmem>>, vector<128x256xbf16>
    tpu.vector_store %arg5[%c0_7, %c0_8], %12 {strides = array<i32>} : memref<128x256xbf16, #tpu.memory_space<vmem>>, vector<128x256xbf16>,
    return
  }
  func.func @transform_0(%arg0: i32) -> (i32, i32) {
    %c0_i32 = arith.constant 0 : i32
    %c0_i32_0 = arith.constant 0 : i32
    %c0_i32_1 = arith.constant 0 : i32
    return %c0_i32, %c0_i32_0 : i32, i32
  }
  func.func @transform_1(%arg0: i32) -> (i32, i32) {
    %c0_i32 = arith.constant 0 : i32
    %c0_i32_0 = arith.constant 0 : i32
    return %c0_i32, %arg0 : i32, i32
  }
  func.func @transform_2(%arg0: i32) -> (i32, i32) {
    %c0_i32 = arith.constant 0 : i32
    %c0_i32_0 = arith.constant 0 : i32
    %c0_i32_1 = arith.constant 0 : i32
    return %c0_i32, %c0_i32_0 : i32, i32
  }
  func.func @transform_3(%arg0: i32) -> i32 {
    %c0_i32 = arith.constant 0 : i32
    %c0_i32_0 = arith.constant 0 : i32
    return %c0_i32 : i32
  }
  func.func @transform_4(%arg0: i32) -> (i32, i32) {
    %c0_i32 = arith.constant 0 : i32
    %c0_i32_0 = arith.constant 0 : i32
    return %c0_i32, %arg0 : i32, i32
  }
}

module attributes {stable_mosaic.version = 11 : i64} {
  func.func @_gemm_bias_kernel(%arg0: i32, %arg1: memref<64x96xbf16, #tpu.memory_space<vmem>>, %arg2: memref<96x1024xbf16, #tpu.memory_space<vmem>>, %arg3: memref<64x1xf32, #tpu.memory_space<vmem>>, %arg4: memref<64x1024xf32, #tpu.memory_space<vmem>>) attributes {dimension_semantics = [#tpu.dimension_semantics<parallel>], iteration_bounds = array<i64: 2>, scalar_prefetch = 0 : i64, scratch_operands = 0 : i64, tpu.core_type = #tpu.core_type<tc>, window_params = [{pipeline_mode = #tpu.pipeline_mode<synchronous>, transform_indices = @transform_0, window_bounds = array<i64: 64, 96>}, {transform_indices = @transform_1, window_bounds = array<i64: 96, 1024>}, {pipeline_mode = #tpu.pipeline_mode<synchronous>, transform_indices = @transform_2, window_bounds = array<i64: 64, 1>}, {transform_indices = @transform_3, window_bounds = array<i64: 64, 1024>}]} {
    %c0 = arith.constant 0 : index
    %c0_0 = arith.constant 0 : index
    %0 = vector.load %arg1[%c0, %c0_0] : memref<64x96xbf16, #tpu.memory_space<vmem>>, vector<64x96xbf16>
    %c0_1 = arith.constant 0 : index
    %c0_2 = arith.constant 0 : index
    %1 = vector.load %arg2[%c0_1, %c0_2] : memref<96x1024xbf16, #tpu.memory_space<vmem>>, vector<96x1024xbf16>
    %cst = arith.constant dense<0.000000e+00> : vector<64x1024xf32>
    %2 = tpu.matmul %0, %1, %cst {dimension_numbers = #tpu.dot_dimension_numbers<[1], [0], [0], [1], [0, 0, 1, 1], [], []>} : vector<64x96xbf16>, vector<96x1024xbf16>, vector<64x1024xf32> -> vector<64x1024xf32>
    %c0_3 = arith.constant 0 : index
    %c0_4 = arith.constant 0 : index
    %3 = vector.load %arg3[%c0_3, %c0_4] : memref<64x1xf32, #tpu.memory_space<vmem>>, vector<64x1xf32>
    %4 = vector.broadcast %3 : vector<64x1xf32> to vector<64x1024xf32>
    %5 = arith.addf %2, %4 : vector<64x1024xf32>
    %c0_5 = arith.constant 0 : index
    %c0_6 = arith.constant 0 : index
    %6 = vector.load %arg4[%c0_5, %c0_6] : memref<64x1024xf32, #tpu.memory_space<vmem>>, vector<64x1024xf32>
    tpu.vector_store %arg4[%c0_5, %c0_6], %5 {strides = array<i32>} : memref<64x1024xf32, #tpu.memory_space<vmem>>, vector<64x1024xf32>,
    return
  }
  func.func @transform_0(%arg0: i32) -> (i32, i32) {
    %c0_i32 = arith.constant 0 : i32
    %c0_i32_0 = arith.constant 0 : i32
    %c0_i32_1 = arith.constant 0 : i32
    return %c0_i32, %c0_i32_0 : i32, i32
  }
  func.func @transform_1(%arg0: i32) -> (i32, i32) {
    %c0_i32 = arith.constant 0 : i32
    %c0_i32_0 = arith.constant 0 : i32
    return %c0_i32, %arg0 : i32, i32
  }
  func.func @transform_2(%arg0: i32) -> (i32, i32) {
    %c0_i32 = arith.constant 0 : i32
    %c0_i32_0 = arith.constant 0 : i32
    %c0_i32_1 = arith.constant 0 : i32
    return %c0_i32, %c0_i32_0 : i32, i32
  }
  func.func @transform_3(%arg0: i32) -> (i32, i32) {
    %c0_i32 = arith.constant 0 : i32
    %c0_i32_0 = arith.constant 0 : i32
    return %c0_i32, %arg0 : i32, i32
  }
}

module attributes {stable_mosaic.version = 11 : i64} {
  func.func @_gemm_bias_kernel(%arg0: i32, %arg1: memref<64x576xbf16, #tpu.memory_space<vmem>>, %arg2: memref<576x128xbf16, #tpu.memory_space<vmem>>, %arg3: memref<64x1xf32, #tpu.memory_space<vmem>>, %arg4: memref<64x128xf32, #tpu.memory_space<vmem>>) attributes {dimension_semantics = [#tpu.dimension_semantics<parallel>], iteration_bounds = array<i64: 1>, scalar_prefetch = 0 : i64, scratch_operands = 0 : i64, tpu.core_type = #tpu.core_type<tc>, window_params = [{pipeline_mode = #tpu.pipeline_mode<synchronous>, transform_indices = @transform_0, window_bounds = array<i64: 64, 576>}, {transform_indices = @transform_1, window_bounds = array<i64: 576, 128>}, {pipeline_mode = #tpu.pipeline_mode<synchronous>, transform_indices = @transform_2, window_bounds = array<i64: 64, 1>}, {transform_indices = @transform_3, window_bounds = array<i64: 64, 128>}]} {
    %c0 = arith.constant 0 : index
    %c0_0 = arith.constant 0 : index
    %0 = vector.load %arg1[%c0, %c0_0] : memref<64x576xbf16, #tpu.memory_space<vmem>>, vector<64x576xbf16>
    %c0_1 = arith.constant 0 : index
    %c0_2 = arith.constant 0 : index
    %1 = vector.load %arg2[%c0_1, %c0_2] : memref<576x128xbf16, #tpu.memory_space<vmem>>, vector<576x128xbf16>
    %cst = arith.constant dense<0.000000e+00> : vector<64x128xf32>
    %2 = tpu.matmul %0, %1, %cst {dimension_numbers = #tpu.dot_dimension_numbers<[1], [0], [0], [1], [0, 0, 1, 1], [], []>} : vector<64x576xbf16>, vector<576x128xbf16>, vector<64x128xf32> -> vector<64x128xf32>
    %c0_3 = arith.constant 0 : index
    %c0_4 = arith.constant 0 : index
    %3 = vector.load %arg3[%c0_3, %c0_4] : memref<64x1xf32, #tpu.memory_space<vmem>>, vector<64x1xf32>
    %4 = vector.broadcast %3 : vector<64x1xf32> to vector<64x128xf32>
    %5 = arith.addf %2, %4 : vector<64x128xf32>
    %c0_5 = arith.constant 0 : index
    %c0_6 = arith.constant 0 : index
    %6 = vector.load %arg4[%c0_5, %c0_6] : memref<64x128xf32, #tpu.memory_space<vmem>>, vector<64x128xf32>
    tpu.vector_store %arg4[%c0_5, %c0_6], %5 {strides = array<i32>} : memref<64x128xf32, #tpu.memory_space<vmem>>, vector<64x128xf32>,
    return
  }
  func.func @transform_0(%arg0: i32) -> (i32, i32) {
    %c0_i32 = arith.constant 0 : i32
    %c0_i32_0 = arith.constant 0 : i32
    %c0_i32_1 = arith.constant 0 : i32
    return %c0_i32, %c0_i32_0 : i32, i32
  }
  func.func @transform_1(%arg0: i32) -> (i32, i32) {
    %c0_i32 = arith.constant 0 : i32
    %c0_i32_0 = arith.constant 0 : i32
    return %c0_i32, %arg0 : i32, i32
  }
  func.func @transform_2(%arg0: i32) -> (i32, i32) {
    %c0_i32 = arith.constant 0 : i32
    %c0_i32_0 = arith.constant 0 : i32
    %c0_i32_1 = arith.constant 0 : i32
    return %c0_i32, %c0_i32_0 : i32, i32
  }
  func.func @transform_3(%arg0: i32) -> (i32, i32) {
    %c0_i32 = arith.constant 0 : i32
    %c0_i32_0 = arith.constant 0 : i32
    return %c0_i32, %arg0 : i32, i32
  }
}

</mosaic_0001>

<llo_original>
// kernel: custom-call.44
$region0: #{custom-call.44}
  %s0 = inlined_call_operand.vmem [shape: f32[10,2,1,32,32], index: 0, kind: output, shape index: {}]

// kernel: closed_call.52
$region0: #{closed_call.52}
  #allocation0 [shape = 'u32[]', space=smem, size = 0x4, offset = 0x4, fixed_abs, tag = 'smem constant byte address 0x4 - core index']
  #allocation1 [shape = 'u32[144,128]{1,0:T(1,128)}', space=vmem, size = 0x12000, scoped, tag = 'internal scratch']
  #allocation2 [shape = 'f32[1]{0:T(128)S(6)}', space=smem, size = 0x200, scoped, tag = 'scoped memory for closed_call.52']
  %s0 = inlined_call_operand.vmem [shape: bf16[32,16], index: 0, kind: input, shape index: {}]
  %s1 = inlined_call_operand.vmem [shape: bf16[16,2048], index: 1, kind: input, shape index: {}]
  %s2 = inlined_call_operand.vmem [shape: f32[32,1], index: 2, kind: input, shape index: {}]
  %s3 = inlined_call_operand.<no memory space> [shape: f32[1], index: 3, kind: input, shape index: {}]
  %s4 = inlined_call_operand.vmem [shape: bf16[32,2048], index: 4, kind: output, shape index: {}]
  %s5 = sld [smem:[#allocation0]]
  $region91: #{closed_call.52} parent=0
    _
  %s7 = ssub.s32 1, %s5
  %s8 = scalar_select 0, %s7, %s5
  %9 = sst [smem:[#allocation2]] %s3
  $region1: #{closed_call.52} parent=0
    #allocation3 [shape = 'u8[65536]{0}', space=vmem, size = 0x10000, scoped, tag = 'input window, operand 1']
    #allocation4 [shape = 'u8[131072]{0}', space=vmem, size = 0x20000, scoped, tag = 'output window, operand 0']
    loop: start=0, step=1, limit=4
    $region2: #{closed_call.52} parent=1 // loop_pre_header
      _
    $region3: #{closed_call.52} parent=1 // loop_header
      %s11 = sphi 0, %s15
      %p12 = scmp.ge.s32.totalorder %s11, 4
      %s19 = sphi 0, %s19
      %s21 = sphi 0, %s19
      %s22 = sphi 0, %s21
      %s36 = sphi 0, %s22
      %s42 = sphi 0, %s44
      %s45 = sphi 0, %s42
      %s46 = sphi 0, %s45
      %s62 = sphi 0, %s46
      %s66 = sphi 0, %s66
      %s68 = sphi 0, %s66
      %s69 = sphi 0, %s68
      %s83 = sphi 0, %s69
      %s87 = sphi 0, %s87
      %s89 = sphi 0, %s87
      %s90 = sphi 0, %s89
      %s104 = sphi 0, %s90
      %s110 = sphi 0, %s112
      %s113 = sphi 0, %s110
      %s114 = sphi 0, %s113
      %s130 = sphi 0, %s114
    $region4: #{closed_call.52} parent=1 // loop_header_branch
      %14 = sbr.rel (%p12) target = $region8
    $region5: #{closed_call.52} parent=1 // loop_body
      %s16 = ssub.s32 %s11, 1
      %s17 = ssub.s32 %s11, 2
      %s18 = sadd.s32 %s11, 1
      %s20 = sadd.s32 %s19, 1
      %p23 = scmp.eq.s32.totalorder %s11, 1
      %p24 = scmp.ne.s32.totalorder %s19, %s21
      %p25 = scmp.eq.s32.totalorder %s11, 0
      %p26 = por %p24, %p25
      %p27 = scmp.ne.s32.totalorder %s19, %s21
      %p28 = scmp.eq.s32.totalorder %s16, 1
      %p29 = por %p27, %p28
      %p30 = scmp.ne.s32.totalorder %s21, %s22
      %p31 = scmp.eq.s32.totalorder %s16, 0
      %p32 = por %p30, %p31
      %p33 = scmp.ne.s32.totalorder %s21, %s22
      %p34 = scmp.eq.s32.totalorder %s17, 1
      %p35 = por %p33, %p34
      %p37 = scmp.ne.s32.totalorder %s22, %s36
      %p38 = scmp.eq.s32.totalorder %s17, 0
      %p39 = por %p37, %p38
      %s40 = ssub.s32 %s11, %s18
      %p41 = scmp.eq.s32.totalorder %s40, 0
      %s43 = sadd.s32 %s42, 1
      %s44 = scalar_select %p41, %s42, %s43
      %p47 = pneg %p41
      %p48 = scmp.eq.s32.totalorder %s11, 1
      %p49 = por %p47, %p48
      %p50 = scmp.ne.s32.totalorder %s42, %s45
      %p51 = scmp.eq.s32.totalorder %s11, 0
      %p52 = por %p50, %p51
      %p53 = scmp.ne.s32.totalorder %s42, %s45
      %p54 = scmp.eq.s32.totalorder %s16, 1
      %p55 = por %p53, %p54
      %p56 = scmp.ne.s32.totalorder %s45, %s46
      %p57 = scmp.eq.s32.totalorder %s16, 0
      %p58 = por %p56, %p57
      %p59 = scmp.ne.s32.totalorder %s45, %s46
      %p60 = scmp.eq.s32.totalorder %s17, 1
      %p61 = por %p59, %p60
      %p63 = scmp.ne.s32.totalorder %s46, %s62
      %p64 = scmp.eq.s32.totalorder %s17, 0
      %p65 = por %p63, %p64
      %s67 = sadd.s32 %s66, 1
      %p70 = scmp.eq.s32.totalorder %s11, 1
      %p71 = scmp.ne.s32.totalorder %s66, %s68
      %p72 = scmp.eq.s32.totalorder %s11, 0
      %p73 = por %p71, %p72
      %p74 = scmp.ne.s32.totalorder %s66, %s68
      %p75 = scmp.eq.s32.totalorder %s16, 1
      %p76 = por %p74, %p75
      %p77 = scmp.ne.s32.totalorder %s68, %s69
      %p78 = scmp.eq.s32.totalorder %s16, 0
      %p79 = por %p77, %p78
      %p80 = scmp.ne.s32.totalorder %s68, %s69
      %p81 = scmp.eq.s32.totalorder %s17, 1
      %p82 = por %p80, %p81
      %p84 = scmp.ne.s32.totalorder %s69, %s83
      %p85 = scmp.eq.s32.totalorder %s17, 0
      %p86 = por %p84, %p85
      %s88 = sadd.s32 %s87, 1
      %p91 = scmp.eq.s32.totalorder %s11, 1
      %p92 = scmp.ne.s32.totalorder %s87, %s89
      %p93 = scmp.eq.s32.totalorder %s11, 0
      %p94 = por %p92, %p93
      %p95 = scmp.ne.s32.totalorder %s87, %s89
      %p96 = scmp.eq.s32.totalorder %s16, 1
      %p97 = por %p95, %p96
      %p98 = scmp.ne.s32.totalorder %s89, %s90
      %p99 = scmp.eq.s32.totalorder %s16, 0
      %p100 = por %p98, %p99
      %p101 = scmp.ne.s32.totalorder %s89, %s90
      %p102 = scmp.eq.s32.totalorder %s17, 1
      %p103 = por %p101, %p102
      %p105 = scmp.ne.s32.totalorder %s90, %s104
      %p106 = scmp.eq.s32.totalorder %s17, 0
      %p107 = por %p105, %p106
      %s108 = ssub.s32 %s11, %s18
      %p109 = scmp.eq.s32.totalorder %s108, 0
      %s111 = sadd.s32 %s110, 1
      %s112 = scalar_select %p109, %s110, %s111
      %p115 = pneg %p109
      %p116 = scmp.eq.s32.totalorder %s11, 1
      %p117 = por %p115, %p116
      %p118 = scmp.ne.s32.totalorder %s110, %s113
      %p119 = scmp.eq.s32.totalorder %s11, 0
      %p120 = por %p118, %p119
      %p121 = scmp.ne.s32.totalorder %s110, %s113
      %p122 = scmp.eq.s32.totalorder %s16, 1
      %p123 = por %p121, %p122
      %p124 = scmp.ne.s32.totalorder %s113, %s114
      %p125 = scmp.eq.s32.totalorder %s16, 0
      %p126 = por %p124, %p125
      %p127 = scmp.ne.s32.totalorder %s113, %s114
      %p128 = scmp.eq.s32.totalorder %s17, 1
      %p129 = por %p127, %p128
      %p131 = scmp.ne.s32.totalorder %s114, %s130
      %p132 = scmp.eq.s32.totalorder %s17, 0
      %p133 = por %p131, %p132
      %p134 = scmp.le.s32.totalorder 1, %s11
      %p135 = scmp.lt.s32.totalorder %s11, 3
      %p136 = pnand %p134, %p135
      %p137 = pneg %p136
      // Predicated region
      $region9: #{closed_call.52} parent=5 // pred_check
        _
      $region10: #{closed_call.52} parent=5 // pred_check_branch
        %139 = sbr.rel (%p136) target = $region12
      $region11: #{closed_call.52} parent=5 // pred_region
        %s140 = ssub.s32 %s11, 1
        // Predicated region
        $region13: #{closed_call.52} parent=11 // pred_check
          %p141 = pneg %p32
        $region14: #{closed_call.52} parent=11 // pred_check_branch
          %143 = sbr.rel (%p141) target = $region16
        $region15: #{closed_call.52} parent=11 // pred_region
          _
        $region16: #{closed_call.52} parent=11 // pred_fallthru
          _
        // Predicated region
        $region17: #{closed_call.52} parent=11 // pred_check
          %p144 = pneg %p79
        $region18: #{closed_call.52} parent=11 // pred_check_branch
          %146 = sbr.rel (%p144) target = $region20
        $region19: #{closed_call.52} parent=11 // pred_region
          _
        $region20: #{closed_call.52} parent=11 // pred_fallthru
          _
        // Predicated region
        $region21: #{closed_call.52} parent=11 // pred_check
          %p147 = pneg %p100
        $region22: #{closed_call.52} parent=11 // pred_check_branch
          %149 = sbr.rel (%p147) target = $region24
        $region23: #{closed_call.52} parent=11 // pred_region
          _
        $region24: #{closed_call.52} parent=11 // pred_fallthru
          _
      $region12: #{closed_call.52} parent=5 // pred_fallthru
        _
      %p150 = scmp.lt.s32.totalorder %s11, 2
      // Predicated region
      $region25: #{closed_call.52} parent=5 // pred_check
        %p151 = pneg %p150
      $region26: #{closed_call.52} parent=5 // pred_check_branch
        %153 = sbr.rel (%p151) target = $region28
      $region27: #{closed_call.52} parent=5 // pred_region
        // Predicated region
        $region29: #{closed_call.52} parent=27 // pred_check
          %p154 = pneg %p52
        $region30: #{closed_call.52} parent=27 // pred_check_branch
          %156 = sbr.rel (%p154) target = $region32
        $region31: #{closed_call.52} parent=27 // pred_region
          %s157 = sand.u32 %s42, 1
          %s158 = sand.u32 %s42, 1
          %s159 = smul.addr %s158, 64
          %s160 = scalar_lea.vmem [#allocation3], %s159
          %s161 = smul.u32 8, %s11
          %s162 = smul.addr %s161, 4
          %s163 = scalar_lea.vmem %s1, %s162
          // Predicated region
          $region33: #{closed_call.52} parent=31 // pred_check
            _
          $region34: #{closed_call.52} parent=31 // pred_check_branch
            %165 = sbr.rel (0) target = $region36
          $region35: #{closed_call.52} parent=31 // pred_region
            // Predicated region
            $region37: #{closed_call.52} parent=35 // pred_check
              _
            $region38: #{closed_call.52} parent=35 // pred_check_branch
              %167 = sbr.rel (0) target = $region40
            $region39: #{closed_call.52} parent=35 // pred_region
              loop: start=0, step=1, limit=1
              $region41: #{closed_call.52} parent=39 // loop_pre_header
                _
              $region42: #{closed_call.52} parent=39 // loop_header
                %s169 = sphi 0, %s173
                %p170 = scmp.ge.s32.totalorder %s169, 1
                %s174 = sphi %s163, %s163
                %s175 = sphi %s160, %s160
              $region43: #{closed_call.52} parent=39 // loop_header_branch
                %172 = sbr.rel (%p170) target = $region47
              $region44: #{closed_call.52} parent=39 // loop_body
                %v176 = vld [vmem:[%s174] sm:$0xff]
                %177 = vst [vmem:[%s175] sm:$0xff] %v176
                %v178 = vld [vmem:[%s174 + $0x8] sm:$0xff]
                %179 = vst [vmem:[%s175 + $0x8] sm:$0xff] %v178
                %v180 = vld [vmem:[%s174 + $0x10] sm:$0xff]
                %181 = vst [vmem:[%s175 + $0x10] sm:$0xff] %v180
                %v182 = vld [vmem:[%s174 + $0x18] sm:$0xff]
                %183 = vst [vmem:[%s175 + $0x18] sm:$0xff] %v182
                %v184 = vld [vmem:[%s174 + $0x40] sm:$0xff]
                %185 = vst [vmem:[%s175 + $0x20] sm:$0xff] %v184
                %v186 = vld [vmem:[%s174 + $0x48] sm:$0xff]
                %187 = vst [vmem:[%s175 + $0x28] sm:$0xff] %v186
                %v188 = vld [vmem:[%s174 + $0x50] sm:$0xff]
                %189 = vst [vmem:[%s175 + $0x30] sm:$0xff] %v188
                %v190 = vld [vmem:[%s174 + $0x58] sm:$0xff]
                %191 = vst [vmem:[%s175 + $0x38] sm:$0xff] %v190
              $region45: #{closed_call.52} parent=39 // loop_footer
                %s173 = sadd.s32 1, %s169
              $region46: #{closed_call.52} parent=39 // loop_footer_branch
                %168 = sbr.rel target = $region42
              $region47: #{closed_call.52} parent=39 // loop_exit
                _
            $region40: #{closed_call.52} parent=35 // pred_fallthru
              _
            // Predicated region
            $region48: #{closed_call.52} parent=35 // pred_check
              _
            $region49: #{closed_call.52} parent=35 // pred_check_branch
              %193 = sbr.rel target = $region51
            $region50: #{closed_call.52} parent=35 // pred_region
              _
            $region51: #{closed_call.52} parent=35 // pred_fallthru
              _
          $region36: #{closed_call.52} parent=31 // pred_fallthru
            _
          %194 = vnop
        $region32: #{closed_call.52} parent=27 // pred_fallthru
          _
      $region28: #{closed_call.52} parent=5 // pred_fallthru
        _
      %p195 = scmp.le.s32.totalorder 1, %s11
      %p196 = scmp.lt.s32.totalorder %s11, 3
      %p197 = pnand %p195, %p196
      %p198 = pneg %p197
      // Predicated region
      $region52: #{closed_call.52} parent=5 // pred_check
        _
      $region53: #{closed_call.52} parent=5 // pred_check_branch
        %200 = sbr.rel (%p197) target = $region55
      $region54: #{closed_call.52} parent=5 // pred_region
        %s201 = ssub.s32 %s11, 1
        %s202 = sand.u32 %s45, 1
        %s203 = sand.u32 %s45, 1
        %s204 = smul.addr %s203, 64
        %s205 = scalar_lea.vmem [#allocation3], %s204
        // Predicated region
        $region56: #{closed_call.52} parent=54 // pred_check
          %p206 = pneg %p58
        $region57: #{closed_call.52} parent=54 // pred_check_branch
          %208 = sbr.rel (%p206) target = $region59
        $region58: #{closed_call.52} parent=54 // pred_region
          _
        $region59: #{closed_call.52} parent=54 // pred_fallthru
          _
        %p209 = pneg %p32
        %p210 = pneg %p29
        %s211 = sand.u32 %s45, 1
        %s212 = sand.u32 %s45, 1
        %s213 = smul.addr %s212, 64
        %s214 = scalar_lea.vmem [#allocation3], %s213
        %p215 = pneg %p58
        %p216 = pneg %p55
        %p217 = pneg %p79
        %p218 = pneg %p76
        %p219 = pneg %p100
        %p220 = pneg %p97
        %p221 = pneg %p126
        %p222 = pneg %p123
        %s223 = sand.u32 %s113, 1
        %s224 = sand.u32 %s113, 1
        %s225 = smul.addr %s224, 128
        %s226 = scalar_lea.vmem [#allocation4], %s225
        %s227 = smul.u32 8, %s16
        %s228 = smul.u32 8, %s16
        %v230 = vld [vmem:[%s0] sm:$0xf]
        %v231 = vld [vmem:[%s0 + $0x4] sm:$0xf]
        %v232 = vld [vmem:[%s0 + $0x8] sm:$0xf]
        %v233 = vld [vmem:[%s0 + $0xc] sm:$0xf]
        %v234 = vld [vmem:[%s205] sm:$0xff]
        %v235 = vld [vmem:[%s205 + $0x8] sm:$0xff]
        %v236 = vld [vmem:[%s205 + $0x10] sm:$0xff]
        %v237 = vld [vmem:[%s205 + $0x18] sm:$0xff]
        %v238 = vld [vmem:[%s205 + $0x20] sm:$0xff]
        %v239 = vld [vmem:[%s205 + $0x28] sm:$0xff]
        %v240 = vld [vmem:[%s205 + $0x30] sm:$0xff]
        %v241 = vld [vmem:[%s205 + $0x38] sm:$0xff]
        %v242 = vld [vmem:[%s2] sm:$0xff]
        %v243 = vld [vmem:[%s2 + $0x8] sm:$0xff]
        %v244 = vld [vmem:[%s2 + $0x10] sm:$0xff]
        %v245 = vld [vmem:[%s2 + $0x18] sm:$0xff]
        %247 = vset.pattern.permute.xlu0 0
        %248 = vperm.xlu0 %247, %v242
        %v249 = vpop.permute.xlu0 %248
        %252 = vset.pattern.permute.xlu0 0
        %253 = vperm.xlu0 %252, %v243
        %v254 = vpop.permute.xlu0 %253
        %257 = vset.pattern.permute.xlu0 0
        %258 = vperm.xlu0 %257, %v244
        %v259 = vpop.permute.xlu0 %258
        %262 = vset.pattern.permute.xlu0 0
        %263 = vperm.xlu0 %262, %v245
        %v264 = vpop.permute.xlu0 %263
        %v270 = vunpack.c.l.b16 %v230
        %v271 = vunpack.c.l.b16 %v231
        %v272 = vunpack.c.l.b16 %v232
        %v273 = vunpack.c.l.b16 %v233
        %v274 = vpack.c.b16 %v271, %v270
        %v275 = vpack.c.b16 %v273, %v272
        %v284 = vunpack.c.l.b16 %v234
        %v285 = vunpack.c.h.b16 %v234
        %v286 = vunpack.c.l.b16 %v235
        %v287 = vunpack.c.h.b16 %v235
        %v288 = vunpack.c.l.b16 %v236
        %v289 = vunpack.c.h.b16 %v236
        %v290 = vunpack.c.l.b16 %v237
        %v291 = vunpack.c.h.b16 %v237
        %v292 = vunpack.c.l.b16 %v238
        %v293 = vunpack.c.h.b16 %v238
        %v294 = vunpack.c.l.b16 %v239
        %v295 = vunpack.c.h.b16 %v239
        %v296 = vunpack.c.l.b16 %v240
        %v297 = vunpack.c.h.b16 %v240
        %v298 = vunpack.c.l.b16 %v241
        %v299 = vunpack.c.h.b16 %v241
        %v300 = vpack.c.b16 %v292, %v284
        %v301 = vpack.c.b16 %v293, %v285
        %v302 = vpack.c.b16 %v294, %v286
        %v303 = vpack.c.b16 %v295, %v287
        %v304 = vpack.c.b16 %v296, %v288
        %v305 = vpack.c.b16 %v297, %v289
        %v306 = vpack.c.b16 %v298, %v290
        %v307 = vpack.c.b16 %v299, %v291
        %vm316 = vcmask 130048
        %v318 = vsel %vm316, %v274, 0
        %v321 = vsel %vm316, %v275, 0
        %323 = vmatprep.subr.bf16.mxu0 0
        %324 = vmatpush1.bf16.msra.mxu0 0
        %325 = vmatprep.subr.bf16.mxu0 0
        %326 = vmatpush1.bf16.msra.mxu0 0
        %327 = vmatprep.subr.bf16.mxu0 0
        %328 = vmatpush1.bf16.msra.mxu0 0
        %329 = vmatprep.subr.bf16.mxu0 0
        %330 = vmatpush1.bf16.msra.mxu0 0
        %331 = vmatprep.subr.bf16.mxu0 0
        %332 = vmatpush1.bf16.msra.mxu0 0
        %333 = vmatprep.subr.bf16.mxu0 0
        %334 = vmatpush1.bf16.msra.mxu0 0
        %335 = vmatprep.subr.bf16.mxu0 0
        %336 = vmatpush1.bf16.msra.mxu0 0
        %337 = vmatprep.subr.bf16.mxu0 %v301
        %338 = vmatpush1.bf16.msra.mxu0 %v300
        %339 = vmatprep.subr.bf16.mxu0 0
        %340 = vmatpush2.bf16.msra.mxu0 0
        %341 = vmatprep.subr.bf16.mxu0 0
        %342 = vmatpush2.bf16.msra.mxu0 0
        %343 = vmatprep.subr.bf16.mxu0 0
        %344 = vmatpush2.bf16.msra.mxu0 0
        %345 = vmatprep.subr.bf16.mxu0 0
        %346 = vmatpush2.bf16.msra.mxu0 0
        %347 = vmatprep.subr.bf16.mxu0 0
        %348 = vmatpush2.bf16.msra.mxu0 0
        %349 = vmatprep.subr.bf16.mxu0 0
        %350 = vmatpush2.bf16.msra.mxu0 0
        %351 = vmatprep.subr.bf16.mxu0 0
        %352 = vmatpush2.bf16.msra.mxu0 0
        %353 = vmatprep.subr.bf16.mxu0 0
        %354 = vmatpush2.bf16.msra.mxu0 0
        %355 = vmatprep.mubr.bf16.mxu0 0
        %356 = vmatmul.mubr.bf16.gmra.mxu0 %v318
        %v357 = vpop.f32.mrf.mxu0
        %v358 = vadd.f32 %v249, %v357
        %v359 = vpop.f32.mrf.mxu0
        %v360 = vadd.f32 %v249, %v359
        %v361 = vpop.f32.mrf.mxu0
        %v362 = vadd.f32 %v254, %v361
        %v363 = vpop.f32.mrf.mxu0
        %v364 = vadd.f32 %v254, %v363
        %365 = vmatprep.mubr.bf16.mxu0 0
        %366 = vmatmul.mubr.bf16.gmra.mxu0 %v321
        %v367 = vpop.f32.mrf.mxu0
        %v368 = vadd.f32 %v259, %v367
        %v369 = vpop.f32.mrf.mxu0
        %v370 = vadd.f32 %v259, %v369
        %v371 = vpop.f32.mrf.mxu0
        %v372 = vadd.f32 %v264, %v371
        %v373 = vpop.f32.mrf.mxu0
        %v374 = vadd.f32 %v264, %v373
        %375 = vdwg.mxu0
        %376 = vmatprep.subr.bf16.mxu0 0
        %377 = vmatpush1.bf16.msra.mxu0 0
        %378 = vmatprep.subr.bf16.mxu0 0
        %379 = vmatpush1.bf16.msra.mxu0 0
        %380 = vmatprep.subr.bf16.mxu0 0
        %381 = vmatpush1.bf16.msra.mxu0 0
        %382 = vmatprep.subr.bf16.mxu0 0
        %383 = vmatpush1.bf16.msra.mxu0 0
        %384 = vmatprep.subr.bf16.mxu0 0
        %385 = vmatpush1.bf16.msra.mxu0 0
        %386 = vmatprep.subr.bf16.mxu0 0
        %387 = vmatpush1.bf16.msra.mxu0 0
        %388 = vmatprep.subr.bf16.mxu0 0
        %389 = vmatpush1.bf16.msra.mxu0 0
        %390 = vmatprep.subr.bf16.mxu0 %v303
        %391 = vmatpush1.bf16.msra.mxu0 %v302
        %392 = vmatprep.subr.bf16.mxu0 0
        %393 = vmatpush2.bf16.msra.mxu0 0
        %394 = vmatprep.subr.bf16.mxu0 0
        %395 = vmatpush2.bf16.msra.mxu0 0
        %396 = vmatprep.subr.bf16.mxu0 0
        %397 = vmatpush2.bf16.msra.mxu0 0
        %398 = vmatprep.subr.bf16.mxu0 0
        %399 = vmatpush2.bf16.msra.mxu0 0
        %400 = vmatprep.subr.bf16.mxu0 0
        %401 = vmatpush2.bf16.msra.mxu0 0
        %402 = vmatprep.subr.bf16.mxu0 0
        %403 = vmatpush2.bf16.msra.mxu0 0
        %404 = vmatprep.subr.bf16.mxu0 0
        %405 = vmatpush2.bf16.msra.mxu0 0
        %406 = vmatprep.subr.bf16.mxu0 0
        %407 = vmatpush2.bf16.msra.mxu0 0
        %408 = vmatprep.mubr.bf16.mxu0 0
        %409 = vmatmul.mubr.bf16.gmra.mxu0 %v318
        %v410 = vpop.f32.mrf.mxu0
        %v411 = vadd.f32 %v249, %v410
        %v412 = vpop.f32.mrf.mxu0
        %v413 = vadd.f32 %v249, %v412
        %v414 = vpop.f32.mrf.mxu0
        %v415 = vadd.f32 %v254, %v414
        %v416 = vpop.f32.mrf.mxu0
        %v417 = vadd.f32 %v254, %v416
        %418 = vmatprep.mubr.bf16.mxu0 0
        %419 = vmatmul.mubr.bf16.gmra.mxu0 %v321
        %v420 = vpop.f32.mrf.mxu0
        %v421 = vadd.f32 %v259, %v420
        %v422 = vpop.f32.mrf.mxu0
        %v423 = vadd.f32 %v259, %v422
        %v424 = vpop.f32.mrf.mxu0
        %v425 = vadd.f32 %v264, %v424
        %v426 = vpop.f32.mrf.mxu0
        %v427 = vadd.f32 %v264, %v426
        %428 = vdwg.mxu0
        %429 = vmatprep.subr.bf16.mxu0 0
        %430 = vmatpush1.bf16.msra.mxu0 0
        %431 = vmatprep.subr.bf16.mxu0 0
        %432 = vmatpush1.bf16.msra.mxu0 0
        %433 = vmatprep.subr.bf16.mxu0 0
        %434 = vmatpush1.bf16.msra.mxu0 0
        %435 = vmatprep.subr.bf16.mxu0 0
        %436 = vmatpush1.bf16.msra.mxu0 0
        %437 = vmatprep.subr.bf16.mxu0 0
        %438 = vmatpush1.bf16.msra.mxu0 0
        %439 = vmatprep.subr.bf16.mxu0 0
        %440 = vmatpush1.bf16.msra.mxu0 0
        %441 = vmatprep.subr.bf16.mxu0 0
        %442 = vmatpush1.bf16.msra.mxu0 0
        %443 = vmatprep.subr.bf16.mxu0 %v305
        %444 = vmatpush1.bf16.msra.mxu0 %v304
        %445 = vmatprep.subr.bf16.mxu0 0
        %446 = vmatpush2.bf16.msra.mxu0 0
        %447 = vmatprep.subr.bf16.mxu0 0
        %448 = vmatpush2.bf16.msra.mxu0 0
        %449 = vmatprep.subr.bf16.mxu0 0
        %450 = vmatpush2.bf16.msra.mxu0 0
        %451 = vmatprep.subr.bf16.mxu0 0
        %452 = vmatpush2.bf16.msra.mxu0 0
        %453 = vmatprep.subr.bf16.mxu0 0
        %454 = vmatpush2.bf16.msra.mxu0 0
        %455 = vmatprep.subr.bf16.mxu0 0
        %456 = vmatpush2.bf16.msra.mxu0 0
        %457 = vmatprep.subr.bf16.mxu0 0
        %458 = vmatpush2.bf16.msra.mxu0 0
        %459 = vmatprep.subr.bf16.mxu0 0
        %460 = vmatpush2.bf16.msra.mxu0 0
        %461 = vmatprep.mubr.bf16.mxu0 0
        %462 = vmatmul.mubr.bf16.gmra.mxu0 %v318
        %v463 = vpop.f32.mrf.mxu0
        %v464 = vadd.f32 %v249, %v463
        %v465 = vpop.f32.mrf.mxu0
        %v466 = vadd.f32 %v249, %v465
        %v467 = vpop.f32.mrf.mxu0
        %v468 = vadd.f32 %v254, %v467
        %v469 = vpop.f32.mrf.mxu0
        %v470 = vadd.f32 %v254, %v469
        %471 = vmatprep.mubr.bf16.mxu0 0
        %472 = vmatmul.mubr.bf16.gmra.mxu0 %v321
        %v473 = vpop.f32.mrf.mxu0
        %v474 = vadd.f32 %v259, %v473
        %v475 = vpop.f32.mrf.mxu0
        %v476 = vadd.f32 %v259, %v475
        %v477 = vpop.f32.mrf.mxu0
        %v478 = vadd.f32 %v264, %v477
        %v479 = vpop.f32.mrf.mxu0
        %v480 = vadd.f32 %v264, %v479
        %481 = vdwg.mxu0
        %482 = vmatprep.subr.bf16.mxu0 0
        %483 = vmatpush1.bf16.msra.mxu0 0
        %484 = vmatprep.subr.bf16.mxu0 0
        %485 = vmatpush1.bf16.msra.mxu0 0
        %486 = vmatprep.subr.bf16.mxu0 0
        %487 = vmatpush1.bf16.msra.mxu0 0
        %488 = vmatprep.subr.bf16.mxu0 0
        %489 = vmatpush1.bf16.msra.mxu0 0
        %490 = vmatprep.subr.bf16.mxu0 0
        %491 = vmatpush1.bf16.msra.mxu0 0
        %492 = vmatprep.subr.bf16.mxu0 0
        %493 = vmatpush1.bf16.msra.mxu0 0
        %494 = vmatprep.subr.bf16.mxu0 0
        %495 = vmatpush1.bf16.msra.mxu0 0
        %496 = vmatprep.subr.bf16.mxu0 %v307
        %497 = vmatpush1.bf16.msra.mxu0 %v306
        %498 = vmatprep.subr.bf16.mxu0 0
        %499 = vmatpush2.bf16.msra.mxu0 0
        %500 = vmatprep.subr.bf16.mxu0 0
        %501 = vmatpush2.bf16.msra.mxu0 0
        %502 = vmatprep.subr.bf16.mxu0 0
        %503 = vmatpush2.bf16.msra.mxu0 0
        %504 = vmatprep.subr.bf16.mxu0 0
        %505 = vmatpush2.bf16.msra.mxu0 0
        %506 = vmatprep.subr.bf16.mxu0 0
        %507 = vmatpush2.bf16.msra.mxu0 0
        %508 = vmatprep.subr.bf16.mxu0 0
        %509 = vmatpush2.bf16.msra.mxu0 0
        %510 = vmatprep.subr.bf16.mxu0 0
        %511 = vmatpush2.bf16.msra.mxu0 0
        %512 = vmatprep.subr.bf16.mxu0 0
        %513 = vmatpush2.bf16.msra.mxu0 0
        %514 = vmatprep.mubr.bf16.mxu0 0
        %515 = vmatmul.mubr.bf16.gmra.mxu0 %v318
        %v516 = vpop.f32.mrf.mxu0
        %v517 = vadd.f32 %v249, %v516
        %v518 = vpop.f32.mrf.mxu0
        %v519 = vadd.f32 %v249, %v518
        %v520 = vpop.f32.mrf.mxu0
        %v521 = vadd.f32 %v254, %v520
        %v522 = vpop.f32.mrf.mxu0
        %v523 = vadd.f32 %v254, %v522
        %524 = vmatprep.mubr.bf16.mxu0 0
        %525 = vmatmul.mubr.bf16.gmra.mxu0 %v321
        %v526 = vpop.f32.mrf.mxu0
        %v527 = vadd.f32 %v259, %v526
        %v528 = vpop.f32.mrf.mxu0
        %v529 = vadd.f32 %v259, %v528
        %v530 = vpop.f32.mrf.mxu0
        %v531 = vadd.f32 %v264, %v530
        %v532 = vpop.f32.mrf.mxu0
        %v533 = vadd.f32 %v264, %v532
        %534 = vdwg.mxu0
        %s535 = sld [smem:[#allocation2]]
        %vm536 = vcmp.ge.f32.partialorder %v358, 0.0
        %vm537 = vcmp.ge.f32.partialorder %v360, 0.0
        %vm538 = vcmp.ge.f32.partialorder %v411, 0.0
        %vm539 = vcmp.ge.f32.partialorder %v413, 0.0
        %vm540 = vcmp.ge.f32.partialorder %v464, 0.0
        %vm541 = vcmp.ge.f32.partialorder %v466, 0.0
        %vm542 = vcmp.ge.f32.partialorder %v517, 0.0
        %vm543 = vcmp.ge.f32.partialorder %v519, 0.0
        %vm544 = vcmp.ge.f32.partialorder %v362, 0.0
        %vm545 = vcmp.ge.f32.partialorder %v364, 0.0
        %vm546 = vcmp.ge.f32.partialorder %v415, 0.0
        %vm547 = vcmp.ge.f32.partialorder %v417, 0.0
        %vm548 = vcmp.ge.f32.partialorder %v468, 0.0
        %vm549 = vcmp.ge.f32.partialorder %v470, 0.0
        %vm550 = vcmp.ge.f32.partialorder %v521, 0.0
        %vm551 = vcmp.ge.f32.partialorder %v523, 0.0
        %vm552 = vcmp.ge.f32.partialorder %v368, 0.0
        %vm553 = vcmp.ge.f32.partialorder %v370, 0.0
        %vm554 = vcmp.ge.f32.partialorder %v421, 0.0
        %vm555 = vcmp.ge.f32.partialorder %v423, 0.0
        %vm556 = vcmp.ge.f32.partialorder %v474, 0.0
        %vm557 = vcmp.ge.f32.partialorder %v476, 0.0
        %vm558 = vcmp.ge.f32.partialorder %v527, 0.0
        %vm559 = vcmp.ge.f32.partialorder %v529, 0.0
        %vm560 = vcmp.ge.f32.partialorder %v372, 0.0
        %vm561 = vcmp.ge.f32.partialorder %v374, 0.0
        %vm562 = vcmp.ge.f32.partialorder %v425, 0.0
        %vm563 = vcmp.ge.f32.partialorder %v427, 0.0
        %vm564 = vcmp.ge.f32.partialorder %v478, 0.0
        %vm565 = vcmp.ge.f32.partialorder %v480, 0.0
        %vm566 = vcmp.ge.f32.partialorder %v531, 0.0
        %vm567 = vcmp.ge.f32.partialorder %v533, 0.0
        %v568 = vstv %s535
        %v569 = vmul.f32 %v568, %v358
        %v570 = vmul.f32 %v568, %v360
        %v571 = vmul.f32 %v568, %v411
        %v572 = vmul.f32 %v568, %v413
        %v573 = vmul.f32 %v568, %v464
        %v574 = vmul.f32 %v568, %v466
        %v575 = vmul.f32 %v568, %v517
        %v576 = vmul.f32 %v568, %v519
        %v577 = vmul.f32 %v568, %v362
        %v578 = vmul.f32 %v568, %v364
        %v579 = vmul.f32 %v568, %v415
        %v580 = vmul.f32 %v568, %v417
        %v581 = vmul.f32 %v568, %v468
        %v582 = vmul.f32 %v568, %v470
        %v583 = vmul.f32 %v568, %v521
        %v584 = vmul.f32 %v568, %v523
        %v585 = vmul.f32 %v568, %v368
        %v586 = vmul.f32 %v568, %v370
        %v587 = vmul.f32 %v568, %v421
        %v588 = vmul.f32 %v568, %v423
        %v589 = vmul.f32 %v568, %v474
        %v590 = vmul.f32 %v568, %v476
        %v591 = vmul.f32 %v568, %v527
        %v592 = vmul.f32 %v568, %v529
        %v593 = vmul.f32 %v568, %v372
        %v594 = vmul.f32 %v568, %v374
        %v595 = vmul.f32 %v568, %v425
        %v596 = vmul.f32 %v568, %v427
        %v597 = vmul.f32 %v568, %v478
        %v598 = vmul.f32 %v568, %v480
        %v599 = vmul.f32 %v568, %v531
        %v600 = vmul.f32 %v568, %v533
        %v601 = vsel %vm536, %v358, %v569
        %v602 = vsel %vm537, %v360, %v570
        %v603 = vsel %vm538, %v411, %v571
        %v604 = vsel %vm539, %v413, %v572
        %v605 = vsel %vm540, %v464, %v573
        %v606 = vsel %vm541, %v466, %v574
        %v607 = vsel %vm542, %v517, %v575
        %v608 = vsel %vm543, %v519, %v576
        %v609 = vsel %vm544, %v362, %v577
        %v610 = vsel %vm545, %v364, %v578
        %v611 = vsel %vm546, %v415, %v579
        %v612 = vsel %vm547, %v417, %v580
        %v613 = vsel %vm548, %v468, %v581
        %v614 = vsel %vm549, %v470, %v582
        %v615 = vsel %vm550, %v521, %v583
        %v616 = vsel %vm551, %v523, %v584
        %v617 = vsel %vm552, %v368, %v585
        %v618 = vsel %vm553, %v370, %v586
        %v619 = vsel %vm554, %v421, %v587
        %v620 = vsel %vm555, %v423, %v588
        %v621 = vsel %vm556, %v474, %v589
        %v622 = vsel %vm557, %v476, %v590
        %v623 = vsel %vm558, %v527, %v591
        %v624 = vsel %vm559, %v529, %v592
        %v625 = vsel %vm560, %v372, %v593
        %v626 = vsel %vm561, %v374, %v594
        %v627 = vsel %vm562, %v425, %v595
        %v628 = vsel %vm563, %v427, %v596
        %v629 = vsel %vm564, %v478, %v597
        %v630 = vsel %vm565, %v480, %v598
        %v631 = vsel %vm566, %v531, %v599
        %v632 = vsel %vm567, %v533, %v600
        %v633 = vpack.c.bf16 %v609, %v601
        %v634 = vpack.c.bf16 %v610, %v602
        %v635 = vpack.c.bf16 %v611, %v603
        %v636 = vpack.c.bf16 %v612, %v604
        %v637 = vpack.c.bf16 %v613, %v605
        %v638 = vpack.c.bf16 %v614, %v606
        %v639 = vpack.c.bf16 %v615, %v607
        %v640 = vpack.c.bf16 %v616, %v608
        %v641 = vpack.c.bf16 %v625, %v617
        %v642 = vpack.c.bf16 %v626, %v618
        %v643 = vpack.c.bf16 %v627, %v619
        %v644 = vpack.c.bf16 %v628, %v620
        %v645 = vpack.c.bf16 %v629, %v621
        %v646 = vpack.c.bf16 %v630, %v622
        %v647 = vpack.c.bf16 %v631, %v623
        %v648 = vpack.c.bf16 %v632, %v624
        %v665 = vunpack.c.l.b16 %v633
        %v666 = vunpack.c.l.b16 %v634
        %v667 = vunpack.c.l.b16 %v635
        %v668 = vunpack.c.l.b16 %v636
        %v669 = vunpack.c.l.b16 %v637
        %v670 = vunpack.c.l.b16 %v638
        %v671 = vunpack.c.l.b16 %v639
        %v672 = vunpack.c.l.b16 %v640
        %v673 = vunpack.c.h.b16 %v633
        %v674 = vunpack.c.h.b16 %v634
        %v675 = vunpack.c.h.b16 %v635
        %v676 = vunpack.c.h.b16 %v636
        %v677 = vunpack.c.h.b16 %v637
        %v678 = vunpack.c.h.b16 %v638
        %v679 = vunpack.c.h.b16 %v639
        %v680 = vunpack.c.h.b16 %v640
        %v681 = vunpack.c.l.b16 %v641
        %v682 = vunpack.c.l.b16 %v642
        %v683 = vunpack.c.l.b16 %v643
        %v684 = vunpack.c.l.b16 %v644
        %v685 = vunpack.c.l.b16 %v645
        %v686 = vunpack.c.l.b16 %v646
        %v687 = vunpack.c.l.b16 %v647
        %v688 = vunpack.c.l.b16 %v648
        %v689 = vunpack.c.h.b16 %v641
        %v690 = vunpack.c.h.b16 %v642
        %v691 = vunpack.c.h.b16 %v643
        %v692 = vunpack.c.h.b16 %v644
        %v693 = vunpack.c.h.b16 %v645
        %v694 = vunpack.c.h.b16 %v646
        %v695 = vunpack.c.h.b16 %v647
        %v696 = vunpack.c.h.b16 %v648
        %v697 = vpack.c.b16 %v666, %v665
        %v698 = vpack.c.b16 %v668, %v667
        %v699 = vpack.c.b16 %v670, %v669
        %v700 = vpack.c.b16 %v672, %v671
        %v701 = vpack.c.b16 %v674, %v673
        %v702 = vpack.c.b16 %v676, %v675
        %v703 = vpack.c.b16 %v678, %v677
        %v704 = vpack.c.b16 %v680, %v679
        %v705 = vpack.c.b16 %v682, %v681
        %v706 = vpack.c.b16 %v684, %v683
        %v707 = vpack.c.b16 %v686, %v685
        %v708 = vpack.c.b16 %v688, %v687
        %v709 = vpack.c.b16 %v690, %v689
        %v710 = vpack.c.b16 %v692, %v691
        %v711 = vpack.c.b16 %v694, %v693
        %v712 = vpack.c.b16 %v696, %v695
        %729 = vst [vmem:[%s226] sm:$0xff] %v697
        %730 = vst [vmem:[%s226 + $0x8] sm:$0xff] %v698
        %731 = vst [vmem:[%s226 + $0x10] sm:$0xff] %v699
        %732 = vst [vmem:[%s226 + $0x18] sm:$0xff] %v700
        %733 = vst [vmem:[%s226 + $0x20] sm:$0xff] %v701
        %734 = vst [vmem:[%s226 + $0x28] sm:$0xff] %v702
        %735 = vst [vmem:[%s226 + $0x30] sm:$0xff] %v703
        %736 = vst [vmem:[%s226 + $0x38] sm:$0xff] %v704
        %737 = vst [vmem:[%s226 + $0x40] sm:$0xff] %v705
        %738 = vst [vmem:[%s226 + $0x48] sm:$0xff] %v706
        %739 = vst [vmem:[%s226 + $0x50] sm:$0xff] %v707
        %740 = vst [vmem:[%s226 + $0x58] sm:$0xff] %v708
        %741 = vst [vmem:[%s226 + $0x60] sm:$0xff] %v709
        %742 = vst [vmem:[%s226 + $0x68] sm:$0xff] %v710
        %743 = vst [vmem:[%s226 + $0x70] sm:$0xff] %v711
        %744 = vst [vmem:[%s226 + $0x78] sm:$0xff] %v712
        %s745 = sand.u32 %s113, 1
        %s746 = sand.u32 %s113, 1
        %s747 = smul.addr %s746, 128
        %s748 = scalar_lea.vmem [#allocation4], %s747
        // Predicated region
        $region60: #{closed_call.52} parent=54 // pred_check
          %p749 = pneg %p123
        $region61: #{closed_call.52} parent=54 // pred_check_branch
          %751 = sbr.rel (%p749) target = $region63
        $region62: #{closed_call.52} parent=54 // pred_region
          %s752 = smul.u32 8, %s16
          %s753 = smul.addr %s752, 4
          %s754 = scalar_lea.vmem %s4, %s753
          // Predicated region
          $region64: #{closed_call.52} parent=62 // pred_check
            _
          $region65: #{closed_call.52} parent=62 // pred_check_branch
            %756 = sbr.rel (0) target = $region67
          $region66: #{closed_call.52} parent=62 // pred_region
            // Predicated region
            $region68: #{closed_call.52} parent=66 // pred_check
              _
            $region69: #{closed_call.52} parent=66 // pred_check_branch
              %758 = sbr.rel (0) target = $region71
            $region70: #{closed_call.52} parent=66 // pred_region
              loop: start=0, step=1, limit=1
              $region72: #{closed_call.52} parent=70 // loop_pre_header
                _
              $region73: #{closed_call.52} parent=70 // loop_header
                %s760 = sphi 0, %s764
                %p761 = scmp.ge.s32.totalorder %s760, 1
                %s765 = sphi %s748, %s748
                %s766 = sphi %s754, %s754
              $region74: #{closed_call.52} parent=70 // loop_header_branch
                %763 = sbr.rel (%p761) target = $region78
              $region75: #{closed_call.52} parent=70 // loop_body
                %v767 = vld [vmem:[%s765] sm:$0xff]
                %768 = vst [vmem:[%s766] sm:$0xff] %v767
                %v769 = vld [vmem:[%s765 + $0x8] sm:$0xff]
                %770 = vst [vmem:[%s766 + $0x8] sm:$0xff] %v769
                %v771 = vld [vmem:[%s765 + $0x10] sm:$0xff]
                %772 = vst [vmem:[%s766 + $0x10] sm:$0xff] %v771
                %v773 = vld [vmem:[%s765 + $0x18] sm:$0xff]
                %774 = vst [vmem:[%s766 + $0x18] sm:$0xff] %v773
                %v775 = vld [vmem:[%s765 + $0x20] sm:$0xff]
                %776 = vst [vmem:[%s766 + $0x40] sm:$0xff] %v775
                %v777 = vld [vmem:[%s765 + $0x28] sm:$0xff]
                %778 = vst [vmem:[%s766 + $0x48] sm:$0xff] %v777
                %v779 = vld [vmem:[%s765 + $0x30] sm:$0xff]
                %780 = vst [vmem:[%s766 + $0x50] sm:$0xff] %v779
                %v781 = vld [vmem:[%s765 + $0x38] sm:$0xff]
                %782 = vst [vmem:[%s766 + $0x58] sm:$0xff] %v781
                %v783 = vld [vmem:[%s765 + $0x40] sm:$0xff]
                %784 = vst [vmem:[%s766 + $0x80] sm:$0xff] %v783
                %v785 = vld [vmem:[%s765 + $0x48] sm:$0xff]
                %786 = vst [vmem:[%s766 + $0x88] sm:$0xff] %v785
                %v787 = vld [vmem:[%s765 + $0x50] sm:$0xff]
                %788 = vst [vmem:[%s766 + $0x90] sm:$0xff] %v787
                %v789 = vld [vmem:[%s765 + $0x58] sm:$0xff]
                %790 = vst [vmem:[%s766 + $0x98] sm:$0xff] %v789
                %v791 = vld [vmem:[%s765 + $0x60] sm:$0xff]
                %792 = vst [vmem:[%s766 + $0xc0] sm:$0xff] %v791
                %v793 = vld [vmem:[%s765 + $0x68] sm:$0xff]
                %794 = vst [vmem:[%s766 + $0xc8] sm:$0xff] %v793
                %v795 = vld [vmem:[%s765 + $0x70] sm:$0xff]
                %796 = vst [vmem:[%s766 + $0xd0] sm:$0xff] %v795
                %v797 = vld [vmem:[%s765 + $0x78] sm:$0xff]
                %798 = vst [vmem:[%s766 + $0xd8] sm:$0xff] %v797
              $region76: #{closed_call.52} parent=70 // loop_footer
                %s764 = sadd.s32 1, %s760
              $region77: #{closed_call.52} parent=70 // loop_footer_branch
                %759 = sbr.rel target = $region73
              $region78: #{closed_call.52} parent=70 // loop_exit
                _
            $region71: #{closed_call.52} parent=66 // pred_fallthru
              _
            // Predicated region
            $region79: #{closed_call.52} parent=66 // pred_check
              _
            $region80: #{closed_call.52} parent=66 // pred_check_branch
              %800 = sbr.rel target = $region82
            $region81: #{closed_call.52} parent=66 // pred_region
              _
            $region82: #{closed_call.52} parent=66 // pred_fallthru
              _
          $region67: #{closed_call.52} parent=62 // pred_fallthru
            _
          %801 = vnop
        $region63: #{closed_call.52} parent=54 // pred_fallthru
          _
      $region55: #{closed_call.52} parent=5 // pred_fallthru
        _
      %p802 = scmp.le.s32.totalorder 2, %s11
      // Predicated region
      $region83: #{closed_call.52} parent=5 // pred_check
        %p803 = pneg %p802
      $region84: #{closed_call.52} parent=5 // pred_check_branch
        %805 = sbr.rel (%p803) target = $region86
      $region85: #{closed_call.52} parent=5 // pred_region
        %s806 = ssub.s32 %s11, 2
        // Predicated region
        $region87: #{closed_call.52} parent=85 // pred_check
          %p807 = pneg %p129
        $region88: #{closed_call.52} parent=85 // pred_check_branch
          %809 = sbr.rel (%p807) target = $region90
        $region89: #{closed_call.52} parent=85 // pred_region
          %s810 = sand.u32 %s114, 1
          %s811 = sand.u32 %s114, 1
          %s812 = smul.addr %s811, 128
          %s813 = scalar_lea.vmem [#allocation4], %s812
        $region90: #{closed_call.52} parent=85 // pred_fallthru
          _
      $region86: #{closed_call.52} parent=5 // pred_fallthru
        _
    $region6: #{closed_call.52} parent=1 // loop_footer
      %s15 = sadd.s32 1, %s11
    $region7: #{closed_call.52} parent=1 // loop_footer_branch
      %10 = sbr.rel target = $region3
    $region8: #{closed_call.52} parent=1 // loop_exit
      _

// kernel: closed_call.53
$region0: #{closed_call.53}
  #allocation0 [shape = 'u32[]', space=smem, size = 0x4, offset = 0x4, fixed_abs, tag = 'smem constant byte address 0x4 - core index']
  #allocation1 [shape = 'u32[144,128]{1,0:T(1,128)}', space=vmem, size = 0x12000, scoped, tag = 'internal scratch']
  #allocation2 [shape = 'f32[1]{0:T(128)S(6)}', space=smem, size = 0x200, scoped, tag = 'scoped memory for closed_call.53']
  %s0 = inlined_call_operand.vmem [shape: bf16[32,288], index: 0, kind: input, shape index: {}]
  %s1 = inlined_call_operand.vmem [shape: bf16[288,512], index: 1, kind: input, shape index: {}]
  %s2 = inlined_call_operand.vmem [shape: f32[32,1], index: 2, kind: input, shape index: {}]
  %s3 = inlined_call_operand.<no memory space> [shape: f32[1], index: 3, kind: input, shape index: {}]
  %s4 = inlined_call_operand.vmem [shape: bf16[32,512], index: 4, kind: output, shape index: {}]
  %s5 = sld [smem:[#allocation0]]
  $region121: #{closed_call.53} parent=0
    _
  %s7 = ssub.s32 1, %s5
  %s8 = scalar_select 0, %s7, %s5
  %9 = sst [smem:[#allocation2]] %s3
  $region1: #{closed_call.53} parent=0
    #allocation3 [shape = 'u8[294912]{0}', space=vmem, size = 0x48000, scoped, tag = 'input window, operand 1']
    #allocation4 [shape = 'u8[32768]{0}', space=vmem, size = 0x8000, scoped, tag = 'output window, operand 0']
    loop: start=0, step=1, limit=4
    $region2: #{closed_call.53} parent=1 // loop_pre_header
      _
    $region3: #{closed_call.53} parent=1 // loop_header
      %s11 = sphi 0, %s15
      %p12 = scmp.ge.s32.totalorder %s11, 4
      %s19 = sphi 0, %s19
      %s21 = sphi 0, %s19
      %s22 = sphi 0, %s21
      %s36 = sphi 0, %s22
      %s42 = sphi 0, %s44
      %s45 = sphi 0, %s42
      %s46 = sphi 0, %s45
      %s62 = sphi 0, %s46
      %s66 = sphi 0, %s66
      %s68 = sphi 0, %s66
      %s69 = sphi 0, %s68
      %s83 = sphi 0, %s69
      %s87 = sphi 0, %s87
      %s89 = sphi 0, %s87
      %s90 = sphi 0, %s89
      %s104 = sphi 0, %s90
      %s110 = sphi 0, %s112
      %s113 = sphi 0, %s110
      %s114 = sphi 0, %s113
      %s130 = sphi 0, %s114
    $region4: #{closed_call.53} parent=1 // loop_header_branch
      %14 = sbr.rel (%p12) target = $region8
    $region5: #{closed_call.53} parent=1 // loop_body
      %s16 = ssub.s32 %s11, 1
      %s17 = ssub.s32 %s11, 2
      %s18 = sadd.s32 %s11, 1
      %s20 = sadd.s32 %s19, 1
      %p23 = scmp.eq.s32.totalorder %s11, 1
      %p24 = scmp.ne.s32.totalorder %s19, %s21
      %p25 = scmp.eq.s32.totalorder %s11, 0
      %p26 = por %p24, %p25
      %p27 = scmp.ne.s32.totalorder %s19, %s21
      %p28 = scmp.eq.s32.totalorder %s16, 1
      %p29 = por %p27, %p28
      %p30 = scmp.ne.s32.totalorder %s21, %s22
      %p31 = scmp.eq.s32.totalorder %s16, 0
      %p32 = por %p30, %p31
      %p33 = scmp.ne.s32.totalorder %s21, %s22
      %p34 = scmp.eq.s32.totalorder %s17, 1
      %p35 = por %p33, %p34
      %p37 = scmp.ne.s32.totalorder %s22, %s36
      %p38 = scmp.eq.s32.totalorder %s17, 0
      %p39 = por %p37, %p38
      %s40 = ssub.s32 %s11, %s18
      %p41 = scmp.eq.s32.totalorder %s40, 0
      %s43 = sadd.s32 %s42, 1
      %s44 = scalar_select %p41, %s42, %s43
      %p47 = pneg %p41
      %p48 = scmp.eq.s32.totalorder %s11, 1
      %p49 = por %p47, %p48
      %p50 = scmp.ne.s32.totalorder %s42, %s45
      %p51 = scmp.eq.s32.totalorder %s11, 0
      %p52 = por %p50, %p51
      %p53 = scmp.ne.s32.totalorder %s42, %s45
      %p54 = scmp.eq.s32.totalorder %s16, 1
      %p55 = por %p53, %p54
      %p56 = scmp.ne.s32.totalorder %s45, %s46
      %p57 = scmp.eq.s32.totalorder %s16, 0
      %p58 = por %p56, %p57
      %p59 = scmp.ne.s32.totalorder %s45, %s46
      %p60 = scmp.eq.s32.totalorder %s17, 1
      %p61 = por %p59, %p60
      %p63 = scmp.ne.s32.totalorder %s46, %s62
      %p64 = scmp.eq.s32.totalorder %s17, 0
      %p65 = por %p63, %p64
      %s67 = sadd.s32 %s66, 1
      %p70 = scmp.eq.s32.totalorder %s11, 1
      %p71 = scmp.ne.s32.totalorder %s66, %s68
      %p72 = scmp.eq.s32.totalorder %s11, 0
      %p73 = por %p71, %p72
      %p74 = scmp.ne.s32.totalorder %s66, %s68
      %p75 = scmp.eq.s32.totalorder %s16, 1
      %p76 = por %p74, %p75
      %p77 = scmp.ne.s32.totalorder %s68, %s69
      %p78 = scmp.eq.s32.totalorder %s16, 0
      %p79 = por %p77, %p78
      %p80 = scmp.ne.s32.totalorder %s68, %s69
      %p81 = scmp.eq.s32.totalorder %s17, 1
      %p82 = por %p80, %p81
      %p84 = scmp.ne.s32.totalorder %s69, %s83
      %p85 = scmp.eq.s32.totalorder %s17, 0
      %p86 = por %p84, %p85
      %s88 = sadd.s32 %s87, 1
      %p91 = scmp.eq.s32.totalorder %s11, 1
      %p92 = scmp.ne.s32.totalorder %s87, %s89
      %p93 = scmp.eq.s32.totalorder %s11, 0
      %p94 = por %p92, %p93
      %p95 = scmp.ne.s32.totalorder %s87, %s89
      %p96 = scmp.eq.s32.totalorder %s16, 1
      %p97 = por %p95, %p96
      %p98 = scmp.ne.s32.totalorder %s89, %s90
      %p99 = scmp.eq.s32.totalorder %s16, 0
      %p100 = por %p98, %p99
      %p101 = scmp.ne.s32.totalorder %s89, %s90
      %p102 = scmp.eq.s32.totalorder %s17, 1
      %p103 = por %p101, %p102
      %p105 = scmp.ne.s32.totalorder %s90, %s104
      %p106 = scmp.eq.s32.totalorder %s17, 0
      %p107 = por %p105, %p106
      %s108 = ssub.s32 %s11, %s18
      %p109 = scmp.eq.s32.totalorder %s108, 0
      %s111 = sadd.s32 %s110, 1
      %s112 = scalar_select %p109, %s110, %s111
      %p115 = pneg %p109
      %p116 = scmp.eq.s32.totalorder %s11, 1
      %p117 = por %p115, %p116
      %p118 = scmp.ne.s32.totalorder %s110, %s113
      %p119 = scmp.eq.s32.totalorder %s11, 0
      %p120 = por %p118, %p119
      %p121 = scmp.ne.s32.totalorder %s110, %s113
      %p122 = scmp.eq.s32.totalorder %s16, 1
      %p123 = por %p121, %p122
      %p124 = scmp.ne.s32.totalorder %s113, %s114
      %p125 = scmp.eq.s32.totalorder %s16, 0
      %p126 = por %p124, %p125
      %p127 = scmp.ne.s32.totalorder %s113, %s114
      %p128 = scmp.eq.s32.totalorder %s17, 1
      %p129 = por %p127, %p128
      %p131 = scmp.ne.s32.totalorder %s114, %s130
      %p132 = scmp.eq.s32.totalorder %s17, 0
      %p133 = por %p131, %p132
      %p134 = scmp.le.s32.totalorder 1, %s11
      %p135 = scmp.lt.s32.totalorder %s11, 3
      %p136 = pnand %p134, %p135
      %p137 = pneg %p136
      // Predicated region
      $region9: #{closed_call.53} parent=5 // pred_check
        _
      $region10: #{closed_call.53} parent=5 // pred_check_branch
        %139 = sbr.rel (%p136) target = $region12
      $region11: #{closed_call.53} parent=5 // pred_region
        %s140 = ssub.s32 %s11, 1
        // Predicated region
        $region13: #{closed_call.53} parent=11 // pred_check
          %p141 = pneg %p32
        $region14: #{closed_call.53} parent=11 // pred_check_branch
          %143 = sbr.rel (%p141) target = $region16
        $region15: #{closed_call.53} parent=11 // pred_region
          _
        $region16: #{closed_call.53} parent=11 // pred_fallthru
          _
        // Predicated region
        $region17: #{closed_call.53} parent=11 // pred_check
          %p144 = pneg %p79
        $region18: #{closed_call.53} parent=11 // pred_check_branch
          %146 = sbr.rel (%p144) target = $region20
        $region19: #{closed_call.53} parent=11 // pred_region
          _
        $region20: #{closed_call.53} parent=11 // pred_fallthru
          _
        // Predicated region
        $region21: #{closed_call.53} parent=11 // pred_check
          %p147 = pneg %p100
        $region22: #{closed_call.53} parent=11 // pred_check_branch
          %149 = sbr.rel (%p147) target = $region24
        $region23: #{closed_call.53} parent=11 // pred_region
          _
        $region24: #{closed_call.53} parent=11 // pred_fallthru
          _
      $region12: #{closed_call.53} parent=5 // pred_fallthru
        _
      %p150 = scmp.lt.s32.totalorder %s11, 2
      // Predicated region
      $region25: #{closed_call.53} parent=5 // pred_check
        %p151 = pneg %p150
      $region26: #{closed_call.53} parent=5 // pred_check_branch
        %153 = sbr.rel (%p151) target = $region28
      $region27: #{closed_call.53} parent=5 // pred_region
        // Predicated region
        $region29: #{closed_call.53} parent=27 // pred_check
          %p154 = pneg %p52
        $region30: #{closed_call.53} parent=27 // pred_check_branch
          %156 = sbr.rel (%p154) target = $region32
        $region31: #{closed_call.53} parent=27 // pred_region
          %s157 = sand.u32 %s42, 1
          %s158 = sand.u32 %s42, 1
          %s159 = smul.addr %s158, 288
          %s160 = scalar_lea.vmem [#allocation3], %s159
          %s161 = smul.u32 2, %s11
          %s162 = smul.addr %s161, 4
          %s163 = scalar_lea.vmem %s1, %s162
          // Predicated region
          $region33: #{closed_call.53} parent=31 // pred_check
            _
          $region34: #{closed_call.53} parent=31 // pred_check_branch
            %165 = sbr.rel (0) target = $region36
          $region35: #{closed_call.53} parent=31 // pred_region
            // Predicated region
            $region37: #{closed_call.53} parent=35 // pred_check
              _
            $region38: #{closed_call.53} parent=35 // pred_check_branch
              %167 = sbr.rel (0) target = $region40
            $region39: #{closed_call.53} parent=35 // pred_region
              // Predicated region
              $region52: #{closed_call.53} parent=39 // pred_check
                _
              $region53: #{closed_call.53} parent=39 // pred_check_branch
                %253 = sbr.rel (0) target = $region55
              $region54: #{closed_call.53} parent=39 // pred_region
                loop: start=0, step=1, limit=1
                $region56: #{closed_call.53} parent=54 // loop_pre_header
                  _
                $region57: #{closed_call.53} parent=54 // loop_header
                  %s255 = sphi 0, %s259
                  %p256 = scmp.ge.s32.totalorder %s255, 1
                  %s260 = sphi %s163, %s163
                  %s261 = sphi %s160, %s160
                $region58: #{closed_call.53} parent=54 // loop_header_branch
                  %258 = sbr.rel (%p256) target = $region62
                $region59: #{closed_call.53} parent=54 // loop_body
                  %v262 = vld [vmem:[%s260] sm:$0xff]
                  %263 = vst [vmem:[%s261] sm:$0xff] %v262
                  %v264 = vld [vmem:[%s260 + $0x10] sm:$0xff]
                  %265 = vst [vmem:[%s261 + $0x8] sm:$0xff] %v264
                  %v266 = vld [vmem:[%s260 + $0x20] sm:$0xff]
                  %267 = vst [vmem:[%s261 + $0x10] sm:$0xff] %v266
                  %v268 = vld [vmem:[%s260 + $0x30] sm:$0xff]
                  %269 = vst [vmem:[%s261 + $0x18] sm:$0xff] %v268
                  %v270 = vld [vmem:[%s260 + $0x40] sm:$0xff]
                  %271 = vst [vmem:[%s261 + $0x20] sm:$0xff] %v270
                  %v272 = vld [vmem:[%s260 + $0x50] sm:$0xff]
                  %273 = vst [vmem:[%s261 + $0x28] sm:$0xff] %v272
                  %v274 = vld [vmem:[%s260 + $0x60] sm:$0xff]
                  %275 = vst [vmem:[%s261 + $0x30] sm:$0xff] %v274
                  %v276 = vld [vmem:[%s260 + $0x70] sm:$0xff]
                  %277 = vst [vmem:[%s261 + $0x38] sm:$0xff] %v276
                  %v278 = vld [vmem:[%s260 + $0x80] sm:$0xff]
                  %279 = vst [vmem:[%s261 + $0x40] sm:$0xff] %v278
                  %v280 = vld [vmem:[%s260 + $0x90] sm:$0xff]
                  %281 = vst [vmem:[%s261 + $0x48] sm:$0xff] %v280
                  %v282 = vld [vmem:[%s260 + $0xa0] sm:$0xff]
                  %283 = vst [vmem:[%s261 + $0x50] sm:$0xff] %v282
                  %v284 = vld [vmem:[%s260 + $0xb0] sm:$0xff]
                  %285 = vst [vmem:[%s261 + $0x58] sm:$0xff] %v284
                  %v286 = vld [vmem:[%s260 + $0xc0] sm:$0xff]
                  %287 = vst [vmem:[%s261 + $0x60] sm:$0xff] %v286
                  %v288 = vld [vmem:[%s260 + $0xd0] sm:$0xff]
                  %289 = vst [vmem:[%s261 + $0x68] sm:$0xff] %v288
                  %v290 = vld [vmem:[%s260 + $0xe0] sm:$0xff]
                  %291 = vst [vmem:[%s261 + $0x70] sm:$0xff] %v290
                  %v292 = vld [vmem:[%s260 + $0xf0] sm:$0xff]
                  %293 = vst [vmem:[%s261 + $0x78] sm:$0xff] %v292
                  %v294 = vld [vmem:[%s260 + $0x100] sm:$0xff]
                  %295 = vst [vmem:[%s261 + $0x80] sm:$0xff] %v294
                  %v296 = vld [vmem:[%s260 + $0x110] sm:$0xff]
                  %297 = vst [vmem:[%s261 + $0x88] sm:$0xff] %v296
                  %v298 = vld [vmem:[%s260 + $0x120] sm:$0xff]
                  %299 = vst [vmem:[%s261 + $0x90] sm:$0xff] %v298
                  %v300 = vld [vmem:[%s260 + $0x130] sm:$0xff]
                  %301 = vst [vmem:[%s261 + $0x98] sm:$0xff] %v300
                  %v302 = vld [vmem:[%s260 + $0x140] sm:$0xff]
                  %303 = vst [vmem:[%s261 + $0xa0] sm:$0xff] %v302
                  %v304 = vld [vmem:[%s260 + $0x150] sm:$0xff]
                  %305 = vst [vmem:[%s261 + $0xa8] sm:$0xff] %v304
                  %v306 = vld [vmem:[%s260 + $0x160] sm:$0xff]
                  %307 = vst [vmem:[%s261 + $0xb0] sm:$0xff] %v306
                  %v308 = vld [vmem:[%s260 + $0x170] sm:$0xff]
                  %309 = vst [vmem:[%s261 + $0xb8] sm:$0xff] %v308
                  %v310 = vld [vmem:[%s260 + $0x180] sm:$0xff]
                  %311 = vst [vmem:[%s261 + $0xc0] sm:$0xff] %v310
                  %v312 = vld [vmem:[%s260 + $0x190] sm:$0xff]
                  %313 = vst [vmem:[%s261 + $0xc8] sm:$0xff] %v312
                  %v314 = vld [vmem:[%s260 + $0x1a0] sm:$0xff]
                  %315 = vst [vmem:[%s261 + $0xd0] sm:$0xff] %v314
                  %v316 = vld [vmem:[%s260 + $0x1b0] sm:$0xff]
                  %317 = vst [vmem:[%s261 + $0xd8] sm:$0xff] %v316
                  %v318 = vld [vmem:[%s260 + $0x1c0] sm:$0xff]
                  %319 = vst [vmem:[%s261 + $0xe0] sm:$0xff] %v318
                  %v320 = vld [vmem:[%s260 + $0x1d0] sm:$0xff]
                  %321 = vst [vmem:[%s261 + $0xe8] sm:$0xff] %v320
                  %v322 = vld [vmem:[%s260 + $0x1e0] sm:$0xff]
                  %323 = vst [vmem:[%s261 + $0xf0] sm:$0xff] %v322
                  %v324 = vld [vmem:[%s260 + $0x1f0] sm:$0xff]
                  %325 = vst [vmem:[%s261 + $0xf8] sm:$0xff] %v324
                  %v326 = vld [vmem:[%s260 + $0x200] sm:$0xff]
                  %327 = vst [vmem:[%s261 + $0x100] sm:$0xff] %v326
                  %v328 = vld [vmem:[%s260 + $0x210] sm:$0xff]
                  %329 = vst [vmem:[%s261 + $0x108] sm:$0xff] %v328
                  %v330 = vld [vmem:[%s260 + $0x220] sm:$0xff]
                  %331 = vst [vmem:[%s261 + $0x110] sm:$0xff] %v330
                  %v332 = vld [vmem:[%s260 + $0x230] sm:$0xff]
                  %333 = vst [vmem:[%s261 + $0x118] sm:$0xff] %v332
                $region60: #{closed_call.53} parent=54 // loop_footer
                  %s259 = sadd.s32 1, %s255
                $region61: #{closed_call.53} parent=54 // loop_footer_branch
                  %254 = sbr.rel target = $region57
                $region62: #{closed_call.53} parent=54 // loop_exit
                  _
              $region55: #{closed_call.53} parent=39 // pred_fallthru
                _
              // Predicated region
              $region63: #{closed_call.53} parent=39 // pred_check
                _
              $region64: #{closed_call.53} parent=39 // pred_check_branch
                %335 = sbr.rel target = $region66
              $region65: #{closed_call.53} parent=39 // pred_region
                _
              $region66: #{closed_call.53} parent=39 // pred_fallthru
                _
            $region40: #{closed_call.53} parent=35 // pred_fallthru
              _
            // Predicated region
            $region41: #{closed_call.53} parent=35 // pred_check
              _
            $region42: #{closed_call.53} parent=35 // pred_check_branch
              %169 = sbr.rel target = $region44
            $region43: #{closed_call.53} parent=35 // pred_region
              %s171 = ssub.s32 256, 1
              loop: start=0, step=1, limit=1
              $region45: #{closed_call.53} parent=43 // loop_pre_header
                _
              $region46: #{closed_call.53} parent=43 // loop_header
                %s173 = sphi 0, %s177
                %p174 = scmp.ge.s32.totalorder %s173, 1
                %s178 = sphi %s163, %s163
                %s179 = sphi %s160, %s160
              $region47: #{closed_call.53} parent=43 // loop_header_branch
                %176 = sbr.rel (%p174) target = $region51
              $region48: #{closed_call.53} parent=43 // loop_body
                %v180 = vld [vmem:[%s178] sm:%s171]
                %181 = vst [vmem:[%s179] sm:%s171] %v180
                %v182 = vld [vmem:[%s178 + $0x10] sm:%s171]
                %183 = vst [vmem:[%s179 + $0x8] sm:%s171] %v182
                %v184 = vld [vmem:[%s178 + $0x20] sm:%s171]
                %185 = vst [vmem:[%s179 + $0x10] sm:%s171] %v184
                %v186 = vld [vmem:[%s178 + $0x30] sm:%s171]
                %187 = vst [vmem:[%s179 + $0x18] sm:%s171] %v186
                %v188 = vld [vmem:[%s178 + $0x40] sm:%s171]
                %189 = vst [vmem:[%s179 + $0x20] sm:%s171] %v188
                %v190 = vld [vmem:[%s178 + $0x50] sm:%s171]
                %191 = vst [vmem:[%s179 + $0x28] sm:%s171] %v190
                %v192 = vld [vmem:[%s178 + $0x60] sm:%s171]
                %193 = vst [vmem:[%s179 + $0x30] sm:%s171] %v192
                %v194 = vld [vmem:[%s178 + $0x70] sm:%s171]
                %195 = vst [vmem:[%s179 + $0x38] sm:%s171] %v194
                %v196 = vld [vmem:[%s178 + $0x80] sm:%s171]
                %197 = vst [vmem:[%s179 + $0x40] sm:%s171] %v196
                %v198 = vld [vmem:[%s178 + $0x90] sm:%s171]
                %199 = vst [vmem:[%s179 + $0x48] sm:%s171] %v198
                %v200 = vld [vmem:[%s178 + $0xa0] sm:%s171]
                %201 = vst [vmem:[%s179 + $0x50] sm:%s171] %v200
                %v202 = vld [vmem:[%s178 + $0xb0] sm:%s171]
                %203 = vst [vmem:[%s179 + $0x58] sm:%s171] %v202
                %v204 = vld [vmem:[%s178 + $0xc0] sm:%s171]
                %205 = vst [vmem:[%s179 + $0x60] sm:%s171] %v204
                %v206 = vld [vmem:[%s178 + $0xd0] sm:%s171]
                %207 = vst [vmem:[%s179 + $0x68] sm:%s171] %v206
                %v208 = vld [vmem:[%s178 + $0xe0] sm:%s171]
                %209 = vst [vmem:[%s179 + $0x70] sm:%s171] %v208
                %v210 = vld [vmem:[%s178 + $0xf0] sm:%s171]
                %211 = vst [vmem:[%s179 + $0x78] sm:%s171] %v210
                %v212 = vld [vmem:[%s178 + $0x100] sm:%s171]
                %213 = vst [vmem:[%s179 + $0x80] sm:%s171] %v212
                %v214 = vld [vmem:[%s178 + $0x110] sm:%s171]
                %215 = vst [vmem:[%s179 + $0x88] sm:%s171] %v214
                %v216 = vld [vmem:[%s178 + $0x120] sm:%s171]
                %217 = vst [vmem:[%s179 + $0x90] sm:%s171] %v216
                %v218 = vld [vmem:[%s178 + $0x130] sm:%s171]
                %219 = vst [vmem:[%s179 + $0x98] sm:%s171] %v218
                %v220 = vld [vmem:[%s178 + $0x140] sm:%s171]
                %221 = vst [vmem:[%s179 + $0xa0] sm:%s171] %v220
                %v222 = vld [vmem:[%s178 + $0x150] sm:%s171]
                %223 = vst [vmem:[%s179 + $0xa8] sm:%s171] %v222
                %v224 = vld [vmem:[%s178 + $0x160] sm:%s171]
                %225 = vst [vmem:[%s179 + $0xb0] sm:%s171] %v224
                %v226 = vld [vmem:[%s178 + $0x170] sm:%s171]
                %227 = vst [vmem:[%s179 + $0xb8] sm:%s171] %v226
                %v228 = vld [vmem:[%s178 + $0x180] sm:%s171]
                %229 = vst [vmem:[%s179 + $0xc0] sm:%s171] %v228
                %v230 = vld [vmem:[%s178 + $0x190] sm:%s171]
                %231 = vst [vmem:[%s179 + $0xc8] sm:%s171] %v230
                %v232 = vld [vmem:[%s178 + $0x1a0] sm:%s171]
                %233 = vst [vmem:[%s179 + $0xd0] sm:%s171] %v232
                %v234 = vld [vmem:[%s178 + $0x1b0] sm:%s171]
                %235 = vst [vmem:[%s179 + $0xd8] sm:%s171] %v234
                %v236 = vld [vmem:[%s178 + $0x1c0] sm:%s171]
                %237 = vst [vmem:[%s179 + $0xe0] sm:%s171] %v236
                %v238 = vld [vmem:[%s178 + $0x1d0] sm:%s171]
                %239 = vst [vmem:[%s179 + $0xe8] sm:%s171] %v238
                %v240 = vld [vmem:[%s178 + $0x1e0] sm:%s171]
                %241 = vst [vmem:[%s179 + $0xf0] sm:%s171] %v240
                %v242 = vld [vmem:[%s178 + $0x1f0] sm:%s171]
                %243 = vst [vmem:[%s179 + $0xf8] sm:%s171] %v242
                %v244 = vld [vmem:[%s178 + $0x200] sm:%s171]
                %245 = vst [vmem:[%s179 + $0x100] sm:%s171] %v244
                %v246 = vld [vmem:[%s178 + $0x210] sm:%s171]
                %247 = vst [vmem:[%s179 + $0x108] sm:%s171] %v246
                %v248 = vld [vmem:[%s178 + $0x220] sm:%s171]
                %249 = vst [vmem:[%s179 + $0x110] sm:%s171] %v248
                %v250 = vld [vmem:[%s178 + $0x230] sm:%s171]
                %251 = vst [vmem:[%s179 + $0x118] sm:%s171] %v250
              $region49: #{closed_call.53} parent=43 // loop_footer
                %s177 = sadd.s32 1, %s173
              $region50: #{closed_call.53} parent=43 // loop_footer_branch
                %172 = sbr.rel target = $region46
              $region51: #{closed_call.53} parent=43 // loop_exit
                _
            $region44: #{closed_call.53} parent=35 // pred_fallthru
              _
          $region36: #{closed_call.53} parent=31 // pred_fallthru
            _
          %336 = vnop
        $region32: #{closed_call.53} parent=27 // pred_fallthru
          _
      $region28: #{closed_call.53} parent=5 // pred_fallthru
        _
      %p337 = scmp.le.s32.totalorder 1, %s11
      %p338 = scmp.lt.s32.totalorder %s11, 3
      %p339 = pnand %p337, %p338
      %p340 = pneg %p339
      // Predicated region
      $region67: #{closed_call.53} parent=5 // pred_check
        _
      $region68: #{closed_call.53} parent=5 // pred_check_branch
        %342 = sbr.rel (%p339) target = $region70
      $region69: #{closed_call.53} parent=5 // pred_region
        %s343 = ssub.s32 %s11, 1
        %s344 = sand.u32 %s45, 1
        %s345 = sand.u32 %s45, 1
        %s346 = smul.addr %s345, 288
        %s347 = scalar_lea.vmem [#allocation3], %s346
        // Predicated region
        $region71: #{closed_call.53} parent=69 // pred_check
          %p348 = pneg %p58
        $region72: #{closed_call.53} parent=69 // pred_check_branch
          %350 = sbr.rel (%p348) target = $region74
        $region73: #{closed_call.53} parent=69 // pred_region
          _
        $region74: #{closed_call.53} parent=69 // pred_fallthru
          _
        %p351 = pneg %p32
        %p352 = pneg %p29
        %s353 = sand.u32 %s45, 1
        %s354 = sand.u32 %s45, 1
        %s355 = smul.addr %s354, 288
        %s356 = scalar_lea.vmem [#allocation3], %s355
        %p357 = pneg %p58
        %p358 = pneg %p55
        %p359 = pneg %p79
        %p360 = pneg %p76
        %p361 = pneg %p100
        %p362 = pneg %p97
        %p363 = pneg %p126
        %p364 = pneg %p123
        %s365 = sand.u32 %s113, 1
        %s366 = sand.u32 %s113, 1
        %s367 = smul.addr %s366, 32
        %s368 = scalar_lea.vmem [#allocation4], %s367
        %s369 = smul.u32 2, %s16
        %s370 = smul.u32 2, %s16
        %v372 = vld [vmem:[%s0] sm:$0xff]
        %v373 = vld [vmem:[%s0 + $0x8] sm:$0xf]
        %v374 = vld [vmem:[%s0 + $0xc] sm:$0xff]
        %v375 = vld [vmem:[%s0 + $0x14] sm:$0xf]
        %v376 = vld [vmem:[%s0 + $0x18] sm:$0xff]
        %v377 = vld [vmem:[%s0 + $0x20] sm:$0xf]
        %v378 = vld [vmem:[%s0 + $0x24] sm:$0xff]
        %v379 = vld [vmem:[%s0 + $0x2c] sm:$0xf]
        %v380 = vld [vmem:[%s347] sm:$0xff]
        %v381 = vld [vmem:[%s347 + $0x8] sm:$0xff]
        %v382 = vld [vmem:[%s347 + $0x10] sm:$0xff]
        %v383 = vld [vmem:[%s347 + $0x18] sm:$0xff]
        %v384 = vld [vmem:[%s347 + $0x20] sm:$0xff]
        %v385 = vld [vmem:[%s347 + $0x28] sm:$0xff]
        %v386 = vld [vmem:[%s347 + $0x30] sm:$0xff]
        %v387 = vld [vmem:[%s347 + $0x38] sm:$0xff]
        %v388 = vld [vmem:[%s347 + $0x40] sm:$0xff]
        %v389 = vld [vmem:[%s347 + $0x48] sm:$0xff]
        %v390 = vld [vmem:[%s347 + $0x50] sm:$0xff]
        %v391 = vld [vmem:[%s347 + $0x58] sm:$0xff]
        %v392 = vld [vmem:[%s347 + $0x60] sm:$0xff]
        %v393 = vld [vmem:[%s347 + $0x68] sm:$0xff]
        %v394 = vld [vmem:[%s347 + $0x70] sm:$0xff]
        %v395 = vld [vmem:[%s347 + $0x78] sm:$0xff]
        %v396 = vld [vmem:[%s347 + $0x80] sm:$0xff]
        %v397 = vld [vmem:[%s347 + $0x88] sm:$0xff]
        %v398 = vld [vmem:[%s347 + $0x90] sm:$0xff]
        %v399 = vld [vmem:[%s347 + $0x98] sm:$0xff]
        %v400 = vld [vmem:[%s347 + $0xa0] sm:$0xff]
        %v401 = vld [vmem:[%s347 + $0xa8] sm:$0xff]
        %v402 = vld [vmem:[%s347 + $0xb0] sm:$0xff]
        %v403 = vld [vmem:[%s347 + $0xb8] sm:$0xff]
        %v404 = vld [vmem:[%s347 + $0xc0] sm:$0xff]
        %v405 = vld [vmem:[%s347 + $0xc8] sm:$0xff]
        %v406 = vld [vmem:[%s347 + $0xd0] sm:$0xff]
        %v407 = vld [vmem:[%s347 + $0xd8] sm:$0xff]
        %v408 = vld [vmem:[%s347 + $0xe0] sm:$0xff]
        %v409 = vld [vmem:[%s347 + $0xe8] sm:$0xff]
        %v410 = vld [vmem:[%s347 + $0xf0] sm:$0xff]
        %v411 = vld [vmem:[%s347 + $0xf8] sm:$0xff]
        %v412 = vld [vmem:[%s347 + $0x100] sm:$0xff]
        %v413 = vld [vmem:[%s347 + $0x108] sm:$0xff]
        %v414 = vld [vmem:[%s347 + $0x110] sm:$0xff]
        %v415 = vld [vmem:[%s347 + $0x118] sm:$0xff]
        %v416 = vld [vmem:[%s2] sm:$0xff]
        %v417 = vld [vmem:[%s2 + $0x8] sm:$0xff]
        %v418 = vld [vmem:[%s2 + $0x10] sm:$0xff]
        %v419 = vld [vmem:[%s2 + $0x18] sm:$0xff]
        %421 = vset.pattern.permute.xlu0 0
        %422 = vperm.xlu0 %421, %v416
        %v423 = vpop.permute.xlu0 %422
        %426 = vset.pattern.permute.xlu0 0
        %427 = vperm.xlu0 %426, %v417
        %v428 = vpop.permute.xlu0 %427
        %431 = vset.pattern.permute.xlu0 0
        %432 = vperm.xlu0 %431, %v418
        %v433 = vpop.permute.xlu0 %432
        %436 = vset.pattern.permute.xlu0 0
        %437 = vperm.xlu0 %436, %v419
        %v438 = vpop.permute.xlu0 %437
        %v448 = vunpack.c.l.b16 %v372
        %v449 = vunpack.c.h.b16 %v372
        %v450 = vunpack.c.l.b16 %v373
        %v451 = vunpack.c.l.b16 %v374
        %v452 = vunpack.c.h.b16 %v374
        %v453 = vunpack.c.l.b16 %v375
        %v454 = vunpack.c.l.b16 %v376
        %v455 = vunpack.c.h.b16 %v376
        %v456 = vunpack.c.l.b16 %v377
        %v457 = vunpack.c.l.b16 %v378
        %v458 = vunpack.c.h.b16 %v378
        %v459 = vunpack.c.l.b16 %v379
        %v460 = vpack.c.b16 %v451, %v448
        %v461 = vpack.c.b16 %v452, %v449
        %v462 = vpack.c.b16 %v453, %v450
        %v463 = vpack.c.b16 %v457, %v454
        %v464 = vpack.c.b16 %v458, %v455
        %v465 = vpack.c.b16 %v459, %v456
        %v506 = vunpack.c.l.b16 %v380
        %v507 = vunpack.c.h.b16 %v380
        %v508 = vunpack.c.l.b16 %v381
        %v509 = vunpack.c.h.b16 %v381
        %v510 = vunpack.c.l.b16 %v382
        %v511 = vunpack.c.h.b16 %v382
        %v512 = vunpack.c.l.b16 %v383
        %v513 = vunpack.c.h.b16 %v383
        %v514 = vunpack.c.l.b16 %v384
        %v515 = vunpack.c.h.b16 %v384
        %v516 = vunpack.c.l.b16 %v385
        %v517 = vunpack.c.h.b16 %v385
        %v518 = vunpack.c.l.b16 %v386
        %v519 = vunpack.c.h.b16 %v386
        %v520 = vunpack.c.l.b16 %v387
        %v521 = vunpack.c.h.b16 %v387
        %v522 = vunpack.c.l.b16 %v388
        %v523 = vunpack.c.h.b16 %v388
        %v524 = vunpack.c.l.b16 %v389
        %v525 = vunpack.c.h.b16 %v389
        %v526 = vunpack.c.l.b16 %v390
        %v527 = vunpack.c.h.b16 %v390
        %v528 = vunpack.c.l.b16 %v391
        %v529 = vunpack.c.h.b16 %v391
        %v530 = vunpack.c.l.b16 %v392
        %v531 = vunpack.c.h.b16 %v392
        %v532 = vunpack.c.l.b16 %v393
        %v533 = vunpack.c.h.b16 %v393
        %v534 = vunpack.c.l.b16 %v394
        %v535 = vunpack.c.h.b16 %v394
        %v536 = vunpack.c.l.b16 %v395
        %v537 = vunpack.c.h.b16 %v395
        %v538 = vunpack.c.l.b16 %v396
        %v539 = vunpack.c.h.b16 %v396
        %v540 = vunpack.c.l.b16 %v397
        %v541 = vunpack.c.h.b16 %v397
        %v542 = vunpack.c.l.b16 %v398
        %v543 = vunpack.c.h.b16 %v398
        %v544 = vunpack.c.l.b16 %v399
        %v545 = vunpack.c.h.b16 %v399
        %v546 = vunpack.c.l.b16 %v400
        %v547 = vunpack.c.h.b16 %v400
        %v548 = vunpack.c.l.b16 %v401
        %v549 = vunpack.c.h.b16 %v401
        %v550 = vunpack.c.l.b16 %v402
        %v551 = vunpack.c.h.b16 %v402
        %v552 = vunpack.c.l.b16 %v403
        %v553 = vunpack.c.h.b16 %v403
        %v554 = vunpack.c.l.b16 %v404
        %v555 = vunpack.c.h.b16 %v404
        %v556 = vunpack.c.l.b16 %v405
        %v557 = vunpack.c.h.b16 %v405
        %v558 = vunpack.c.l.b16 %v406
        %v559 = vunpack.c.h.b16 %v406
        %v560 = vunpack.c.l.b16 %v407
        %v561 = vunpack.c.h.b16 %v407
        %v562 = vunpack.c.l.b16 %v408
        %v563 = vunpack.c.h.b16 %v408
        %v564 = vunpack.c.l.b16 %v409
        %v565 = vunpack.c.h.b16 %v409
        %v566 = vunpack.c.l.b16 %v410
        %v567 = vunpack.c.h.b16 %v410
        %v568 = vunpack.c.l.b16 %v411
        %v569 = vunpack.c.h.b16 %v411
        %v570 = vunpack.c.l.b16 %v412
        %v571 = vunpack.c.h.b16 %v412
        %v572 = vunpack.c.l.b16 %v413
        %v573 = vunpack.c.h.b16 %v413
        %v574 = vunpack.c.l.b16 %v414
        %v575 = vunpack.c.h.b16 %v414
        %v576 = vunpack.c.l.b16 %v415
        %v577 = vunpack.c.h.b16 %v415
        %v578 = vpack.c.b16 %v508, %v506
        %v579 = vpack.c.b16 %v509, %v507
        %v580 = vpack.c.b16 %v512, %v510
        %v581 = vpack.c.b16 %v513, %v511
        %v582 = vpack.c.b16 %v516, %v514
        %v583 = vpack.c.b16 %v517, %v515
        %v584 = vpack.c.b16 %v520, %v518
        %v585 = vpack.c.b16 %v521, %v519
        %v586 = vpack.c.b16 %v524, %v522
        %v587 = vpack.c.b16 %v525, %v523
        %v588 = vpack.c.b16 %v528, %v526
        %v589 = vpack.c.b16 %v529, %v527
        %v590 = vpack.c.b16 %v532, %v530
        %v591 = vpack.c.b16 %v533, %v531
        %v592 = vpack.c.b16 %v536, %v534
        %v593 = vpack.c.b16 %v537, %v535
        %v594 = vpack.c.b16 %v540, %v538
        %v595 = vpack.c.b16 %v541, %v539
        %v596 = vpack.c.b16 %v544, %v542
        %v597 = vpack.c.b16 %v545, %v543
        %v598 = vpack.c.b16 %v548, %v546
        %v599 = vpack.c.b16 %v549, %v547
        %v600 = vpack.c.b16 %v552, %v550
        %v601 = vpack.c.b16 %v553, %v551
        %v602 = vpack.c.b16 %v556, %v554
        %v603 = vpack.c.b16 %v557, %v555
        %v604 = vpack.c.b16 %v560, %v558
        %v605 = vpack.c.b16 %v561, %v559
        %v606 = vpack.c.b16 %v564, %v562
        %v607 = vpack.c.b16 %v565, %v563
        %v608 = vpack.c.b16 %v568, %v566
        %v609 = vpack.c.b16 %v569, %v567
        %v610 = vpack.c.b16 %v572, %v570
        %v611 = vpack.c.b16 %v573, %v571
        %v612 = vpack.c.b16 %v576, %v574
        %v613 = vpack.c.b16 %v577, %v575
        %vm650 = vcmask 261120
        %v652 = vsel %vm650, %v462, 0
        %v655 = vsel %vm650, %v465, 0
        %657 = vmatprep.subr.bf16.mxu0 %v593
        %658 = vmatpush1.bf16.msra.mxu0 %v592
        %659 = vmatprep.subr.bf16.mxu0 %v591
        %660 = vmatpush1.bf16.msra.mxu0 %v590
        %661 = vmatprep.subr.bf16.mxu0 %v589
        %662 = vmatpush1.bf16.msra.mxu0 %v588
        %663 = vmatprep.subr.bf16.mxu0 %v587
        %664 = vmatpush1.bf16.msra.mxu0 %v586
        %665 = vmatprep.subr.bf16.mxu0 %v585
        %666 = vmatpush1.bf16.msra.mxu0 %v584
        %667 = vmatprep.subr.bf16.mxu0 %v583
        %668 = vmatpush1.bf16.msra.mxu0 %v582
        %669 = vmatprep.subr.bf16.mxu0 %v581
        %670 = vmatpush1.bf16.msra.mxu0 %v580
        %671 = vmatprep.subr.bf16.mxu0 %v579
        %672 = vmatpush1.bf16.msra.mxu0 %v578
        %673 = vmatprep.subr.bf16.mxu0 %v609
        %674 = vmatpush2.bf16.msra.mxu0 %v608
        %675 = vmatprep.subr.bf16.mxu0 %v607
        %676 = vmatpush2.bf16.msra.mxu0 %v606
        %677 = vmatprep.subr.bf16.mxu0 %v605
        %678 = vmatpush2.bf16.msra.mxu0 %v604
        %679 = vmatprep.subr.bf16.mxu0 %v603
        %680 = vmatpush2.bf16.msra.mxu0 %v602
        %681 = vmatprep.subr.bf16.mxu0 %v601
        %682 = vmatpush2.bf16.msra.mxu0 %v600
        %683 = vmatprep.subr.bf16.mxu0 %v599
        %684 = vmatpush2.bf16.msra.mxu0 %v598
        %685 = vmatprep.subr.bf16.mxu0 %v597
        %686 = vmatpush2.bf16.msra.mxu0 %v596
        %687 = vmatprep.subr.bf16.mxu0 %v595
        %688 = vmatpush2.bf16.msra.mxu0 %v594
        %689 = vmatprep.mubr.bf16.mxu0 %v461
        %690 = vmatmul.mubr.bf16.gmra.mxu0 %v460
        %v691 = vpop.f32.mrf.mxu0
        %v692 = vadd.f32 %v423, %v691
        %v693 = vpop.f32.mrf.mxu0
        %v694 = vadd.f32 %v423, %v693
        %v695 = vpop.f32.mrf.mxu0
        %v696 = vadd.f32 %v428, %v695
        %v697 = vpop.f32.mrf.mxu0
        %v698 = vadd.f32 %v428, %v697
        %699 = vmatprep.mubr.bf16.mxu0 %v464
        %700 = vmatmul.mubr.bf16.gmra.mxu0 %v463
        %v701 = vpop.f32.mrf.mxu0
        %v702 = vadd.f32 %v433, %v701
        %v703 = vpop.f32.mrf.mxu0
        %v704 = vadd.f32 %v433, %v703
        %v705 = vpop.f32.mrf.mxu0
        %v706 = vadd.f32 %v438, %v705
        %v707 = vpop.f32.mrf.mxu0
        %v708 = vadd.f32 %v438, %v707
        %709 = vdwg.mxu0
        %710 = vmatprep.subr.bf16.mxu0 0
        %711 = vmatpush1.bf16.msra.mxu0 0
        %712 = vmatprep.subr.bf16.mxu0 0
        %713 = vmatpush1.bf16.msra.mxu0 0
        %714 = vmatprep.subr.bf16.mxu0 0
        %715 = vmatpush1.bf16.msra.mxu0 0
        %716 = vmatprep.subr.bf16.mxu0 0
        %717 = vmatpush1.bf16.msra.mxu0 0
        %718 = vmatprep.subr.bf16.mxu0 0
        %719 = vmatpush1.bf16.msra.mxu0 0
        %720 = vmatprep.subr.bf16.mxu0 0
        %721 = vmatpush1.bf16.msra.mxu0 0
        %722 = vmatprep.subr.bf16.mxu0 %v613
        %723 = vmatpush1.bf16.msra.mxu0 %v612
        %724 = vmatprep.subr.bf16.mxu0 %v611
        %725 = vmatpush1.bf16.msra.mxu0 %v610
        %726 = vmatprep.subr.bf16.mxu0 0
        %727 = vmatpush2.bf16.msra.mxu0 0
        %728 = vmatprep.subr.bf16.mxu0 0
        %729 = vmatpush2.bf16.msra.mxu0 0
        %730 = vmatprep.subr.bf16.mxu0 0
        %731 = vmatpush2.bf16.msra.mxu0 0
        %732 = vmatprep.subr.bf16.mxu0 0
        %733 = vmatpush2.bf16.msra.mxu0 0
        %734 = vmatprep.subr.bf16.mxu0 0
        %735 = vmatpush2.bf16.msra.mxu0 0
        %736 = vmatprep.subr.bf16.mxu0 0
        %737 = vmatpush2.bf16.msra.mxu0 0
        %738 = vmatprep.subr.bf16.mxu0 0
        %739 = vmatpush2.bf16.msra.mxu0 0
        %740 = vmatprep.subr.bf16.mxu0 0
        %741 = vmatpush2.bf16.msra.mxu0 0
        %742 = vmatprep.mubr.bf16.mxu0 0
        %743 = vmatmul.mubr.bf16.gmra.mxu0 %v652
        %v744 = vpop.f32.mrf.mxu0
        %v745 = vadd.f32 %v692, %v744
        %v746 = vpop.f32.mrf.mxu0
        %v747 = vadd.f32 %v694, %v746
        %v748 = vpop.f32.mrf.mxu0
        %v749 = vadd.f32 %v696, %v748
        %v750 = vpop.f32.mrf.mxu0
        %v751 = vadd.f32 %v698, %v750
        %752 = vmatprep.mubr.bf16.mxu0 0
        %753 = vmatmul.mubr.bf16.gmra.mxu0 %v655
        %v754 = vpop.f32.mrf.mxu0
        %v755 = vadd.f32 %v702, %v754
        %v756 = vpop.f32.mrf.mxu0
        %v757 = vadd.f32 %v704, %v756
        %v758 = vpop.f32.mrf.mxu0
        %v759 = vadd.f32 %v706, %v758
        %v760 = vpop.f32.mrf.mxu0
        %v761 = vadd.f32 %v708, %v760
        %762 = vdwg.mxu0
        %s763 = sld [smem:[#allocation2]]
        %vm764 = vcmp.ge.f32.partialorder %v745, 0.0
        %vm765 = vcmp.ge.f32.partialorder %v747, 0.0
        %vm766 = vcmp.ge.f32.partialorder %v749, 0.0
        %vm767 = vcmp.ge.f32.partialorder %v751, 0.0
        %vm768 = vcmp.ge.f32.partialorder %v755, 0.0
        %vm769 = vcmp.ge.f32.partialorder %v757, 0.0
        %vm770 = vcmp.ge.f32.partialorder %v759, 0.0
        %vm771 = vcmp.ge.f32.partialorder %v761, 0.0
        %v772 = vstv %s763
        %v773 = vmul.f32 %v772, %v745
        %v774 = vmul.f32 %v772, %v747
        %v775 = vmul.f32 %v772, %v749
        %v776 = vmul.f32 %v772, %v751
        %v777 = vmul.f32 %v772, %v755
        %v778 = vmul.f32 %v772, %v757
        %v779 = vmul.f32 %v772, %v759
        %v780 = vmul.f32 %v772, %v761
        %v781 = vsel %vm764, %v745, %v773
        %v782 = vsel %vm765, %v747, %v774
        %v783 = vsel %vm766, %v749, %v775
        %v784 = vsel %vm767, %v751, %v776
        %v785 = vsel %vm768, %v755, %v777
        %v786 = vsel %vm769, %v757, %v778
        %v787 = vsel %vm770, %v759, %v779
        %v788 = vsel %vm771, %v761, %v780
        %v789 = vpack.c.bf16 %v783, %v781
        %v790 = vpack.c.bf16 %v784, %v782
        %v791 = vpack.c.bf16 %v787, %v785
        %v792 = vpack.c.bf16 %v788, %v786
        %v797 = vunpack.c.l.b16 %v789
        %v798 = vunpack.c.l.b16 %v790
        %v799 = vunpack.c.h.b16 %v789
        %v800 = vunpack.c.h.b16 %v790
        %v801 = vunpack.c.l.b16 %v791
        %v802 = vunpack.c.l.b16 %v792
        %v803 = vunpack.c.h.b16 %v791
        %v804 = vunpack.c.h.b16 %v792
        %v805 = vpack.c.b16 %v798, %v797
        %v806 = vpack.c.b16 %v800, %v799
        %v807 = vpack.c.b16 %v802, %v801
        %v808 = vpack.c.b16 %v804, %v803
        %813 = vst [vmem:[%s368] sm:$0xff] %v805
        %814 = vst [vmem:[%s368 + $0x8] sm:$0xff] %v806
        %815 = vst [vmem:[%s368 + $0x10] sm:$0xff] %v807
        %816 = vst [vmem:[%s368 + $0x18] sm:$0xff] %v808
        %s817 = sand.u32 %s113, 1
        %s818 = sand.u32 %s113, 1
        %s819 = smul.addr %s818, 32
        %s820 = scalar_lea.vmem [#allocation4], %s819
        // Predicated region
        $region75: #{closed_call.53} parent=69 // pred_check
          %p821 = pneg %p123
        $region76: #{closed_call.53} parent=69 // pred_check_branch
          %823 = sbr.rel (%p821) target = $region78
        $region77: #{closed_call.53} parent=69 // pred_region
          %s824 = smul.u32 2, %s16
          %s825 = smul.addr %s824, 4
          %s826 = scalar_lea.vmem %s4, %s825
          // Predicated region
          $region79: #{closed_call.53} parent=77 // pred_check
            _
          $region80: #{closed_call.53} parent=77 // pred_check_branch
            %828 = sbr.rel (0) target = $region82
          $region81: #{closed_call.53} parent=77 // pred_region
            // Predicated region
            $region83: #{closed_call.53} parent=81 // pred_check
              _
            $region84: #{closed_call.53} parent=81 // pred_check_branch
              %830 = sbr.rel (0) target = $region86
            $region85: #{closed_call.53} parent=81 // pred_region
              // Predicated region
              $region98: #{closed_call.53} parent=85 // pred_check
                _
              $region99: #{closed_call.53} parent=85 // pred_check_branch
                %852 = sbr.rel (0) target = $region101
              $region100: #{closed_call.53} parent=85 // pred_region
                loop: start=0, step=1, limit=1
                $region102: #{closed_call.53} parent=100 // loop_pre_header
                  _
                $region103: #{closed_call.53} parent=100 // loop_header
                  %s854 = sphi 0, %s858
                  %p855 = scmp.ge.s32.totalorder %s854, 1
                  %s859 = sphi %s820, %s820
                  %s860 = sphi %s826, %s826
                $region104: #{closed_call.53} parent=100 // loop_header_branch
                  %857 = sbr.rel (%p855) target = $region108
                $region105: #{closed_call.53} parent=100 // loop_body
                  %v861 = vld [vmem:[%s859] sm:$0xff]
                  %862 = vst [vmem:[%s860] sm:$0xff] %v861
                  %v863 = vld [vmem:[%s859 + $0x8] sm:$0xff]
                  %864 = vst [vmem:[%s860 + $0x10] sm:$0xff] %v863
                  %v865 = vld [vmem:[%s859 + $0x10] sm:$0xff]
                  %866 = vst [vmem:[%s860 + $0x20] sm:$0xff] %v865
                  %v867 = vld [vmem:[%s859 + $0x18] sm:$0xff]
                  %868 = vst [vmem:[%s860 + $0x30] sm:$0xff] %v867
                $region106: #{closed_call.53} parent=100 // loop_footer
                  %s858 = sadd.s32 1, %s854
                $region107: #{closed_call.53} parent=100 // loop_footer_branch
                  %853 = sbr.rel target = $region103
                $region108: #{closed_call.53} parent=100 // loop_exit
                  _
              $region101: #{closed_call.53} parent=85 // pred_fallthru
                _
              // Predicated region
              $region109: #{closed_call.53} parent=85 // pred_check
                _
              $region110: #{closed_call.53} parent=85 // pred_check_branch
                %870 = sbr.rel target = $region112
              $region111: #{closed_call.53} parent=85 // pred_region
                _
              $region112: #{closed_call.53} parent=85 // pred_fallthru
                _
            $region86: #{closed_call.53} parent=81 // pred_fallthru
              _
            // Predicated region
            $region87: #{closed_call.53} parent=81 // pred_check
              _
            $region88: #{closed_call.53} parent=81 // pred_check_branch
              %832 = sbr.rel target = $region90
            $region89: #{closed_call.53} parent=81 // pred_region
              %s834 = ssub.s32 256, 1
              loop: start=0, step=1, limit=1
              $region91: #{closed_call.53} parent=89 // loop_pre_header
                _
              $region92: #{closed_call.53} parent=89 // loop_header
                %s836 = sphi 0, %s840
                %p837 = scmp.ge.s32.totalorder %s836, 1
                %s841 = sphi %s820, %s820
                %s842 = sphi %s826, %s826
              $region93: #{closed_call.53} parent=89 // loop_header_branch
                %839 = sbr.rel (%p837) target = $region97
              $region94: #{closed_call.53} parent=89 // loop_body
                %v843 = vld [vmem:[%s841] sm:%s834]
                %844 = vst [vmem:[%s842] sm:%s834] %v843
                %v845 = vld [vmem:[%s841 + $0x8] sm:%s834]
                %846 = vst [vmem:[%s842 + $0x10] sm:%s834] %v845
                %v847 = vld [vmem:[%s841 + $0x10] sm:%s834]
                %848 = vst [vmem:[%s842 + $0x20] sm:%s834] %v847
                %v849 = vld [vmem:[%s841 + $0x18] sm:%s834]
                %850 = vst [vmem:[%s842 + $0x30] sm:%s834] %v849
              $region95: #{closed_call.53} parent=89 // loop_footer
                %s840 = sadd.s32 1, %s836
              $region96: #{closed_call.53} parent=89 // loop_footer_branch
                %835 = sbr.rel target = $region92
              $region97: #{closed_call.53} parent=89 // loop_exit
                _
            $region90: #{closed_call.53} parent=81 // pred_fallthru
              _
          $region82: #{closed_call.53} parent=77 // pred_fallthru
            _
          %871 = vnop
        $region78: #{closed_call.53} parent=69 // pred_fallthru
          _
      $region70: #{closed_call.53} parent=5 // pred_fallthru
        _
      %p872 = scmp.le.s32.totalorder 2, %s11
      // Predicated region
      $region113: #{closed_call.53} parent=5 // pred_check
        %p873 = pneg %p872
      $region114: #{closed_call.53} parent=5 // pred_check_branch
        %875 = sbr.rel (%p873) target = $region116
      $region115: #{closed_call.53} parent=5 // pred_region
        %s876 = ssub.s32 %s11, 2
        // Predicated region
        $region117: #{closed_call.53} parent=115 // pred_check
          %p877 = pneg %p129
        $region118: #{closed_call.53} parent=115 // pred_check_branch
          %879 = sbr.rel (%p877) target = $region120
        $region119: #{closed_call.53} parent=115 // pred_region
          %s880 = sand.u32 %s114, 1
          %s881 = sand.u32 %s114, 1
          %s882 = smul.addr %s881, 32
          %s883 = scalar_lea.vmem [#allocation4], %s882
        $region120: #{closed_call.53} parent=115 // pred_fallthru
          _
      $region116: #{closed_call.53} parent=5 // pred_fallthru
        _
    $region6: #{closed_call.53} parent=1 // loop_footer
      %s15 = sadd.s32 1, %s11
    $region7: #{closed_call.53} parent=1 // loop_footer_branch
      %10 = sbr.rel target = $region3
    $region8: #{closed_call.53} parent=1 // loop_exit
      _

// kernel: tile.42
$region0: #{tile.42}
  #allocation0 [shape = 's32[1]{0}', space=sflag, size = 0x4, scoped, tag = 'scoped memory for tile.42']
  %s0 = inlined_call_operand.vmem [shape: f32[32], index: 0, kind: input, shape index: {}]
  %s1 = inlined_call_operand.vmem [shape: f32[4,32], index: 1, kind: output, shape index: {}]
  // Predicated region
  $region2: #{tile.42} parent=0 // pred_check
    _
  $region3: #{tile.42} parent=0 // pred_check_branch
    %3 = sbr.rel (0) target = $region5
  $region4: #{tile.42} parent=0 // pred_region
    _
  $region5: #{tile.42} parent=0 // pred_fallthru
    _
  %v4 = vld [vmem:[%s0] ss:$0 sm:$0xff]
  %5 = vst [vmem:[%s1] sm:$0xf] %v4

// kernel: closed_call.54
$region0: #{closed_call.54}
  #allocation0 [shape = 'u32[]', space=smem, size = 0x4, offset = 0x4, fixed_abs, tag = 'smem constant byte address 0x4 - core index']
  #allocation1 [shape = 'u32[144,128]{1,0:T(1,128)}', space=vmem, size = 0x12000, scoped, tag = 'internal scratch']
  #allocation2 [shape = 'f32[1]{0:T(128)S(6)}', space=smem, size = 0x200, scoped, tag = 'scoped memory for closed_call.54']
  %s0 = inlined_call_operand.vmem [shape: bf16[128,288], index: 0, kind: input, shape index: {}]
  %s1 = inlined_call_operand.vmem [shape: bf16[288,512], index: 1, kind: input, shape index: {}]
  %s2 = inlined_call_operand.vmem [shape: f32[128,1], index: 2, kind: input, shape index: {}]
  %s3 = inlined_call_operand.<no memory space> [shape: f32[1], index: 3, kind: input, shape index: {}]
  %s4 = inlined_call_operand.vmem [shape: bf16[128,512], index: 4, kind: output, shape index: {}]
  %s5 = sld [smem:[#allocation0]]
  $region121: #{closed_call.54} parent=0
    _
  %s7 = ssub.s32 1, %s5
  %s8 = scalar_select 0, %s7, %s5
  %9 = sst [smem:[#allocation2]] %s3
  $region1: #{closed_call.54} parent=0
    #allocation3 [shape = 'u8[294912]{0}', space=vmem, size = 0x48000, scoped, tag = 'input window, operand 1']
    #allocation4 [shape = 'u8[131072]{0}', space=vmem, size = 0x20000, scoped, tag = 'output window, operand 0']
    loop: start=0, step=1, limit=4
    $region2: #{closed_call.54} parent=1 // loop_pre_header
      _
    $region3: #{closed_call.54} parent=1 // loop_header
      %s11 = sphi 0, %s15
      %p12 = scmp.ge.s32.totalorder %s11, 4
      %s19 = sphi 0, %s19
      %s21 = sphi 0, %s19
      %s22 = sphi 0, %s21
      %s36 = sphi 0, %s22
      %s42 = sphi 0, %s44
      %s45 = sphi 0, %s42
      %s46 = sphi 0, %s45
      %s62 = sphi 0, %s46
      %s66 = sphi 0, %s66
      %s68 = sphi 0, %s66
      %s69 = sphi 0, %s68
      %s83 = sphi 0, %s69
      %s87 = sphi 0, %s87
      %s89 = sphi 0, %s87
      %s90 = sphi 0, %s89
      %s104 = sphi 0, %s90
      %s110 = sphi 0, %s112
      %s113 = sphi 0, %s110
      %s114 = sphi 0, %s113
      %s130 = sphi 0, %s114
    $region4: #{closed_call.54} parent=1 // loop_header_branch
      %14 = sbr.rel (%p12) target = $region8
    $region5: #{closed_call.54} parent=1 // loop_body
      %s16 = ssub.s32 %s11, 1
      %s17 = ssub.s32 %s11, 2
      %s18 = sadd.s32 %s11, 1
      %s20 = sadd.s32 %s19, 1
      %p23 = scmp.eq.s32.totalorder %s11, 1
      %p24 = scmp.ne.s32.totalorder %s19, %s21
      %p25 = scmp.eq.s32.totalorder %s11, 0
      %p26 = por %p24, %p25
      %p27 = scmp.ne.s32.totalorder %s19, %s21
      %p28 = scmp.eq.s32.totalorder %s16, 1
      %p29 = por %p27, %p28
      %p30 = scmp.ne.s32.totalorder %s21, %s22
      %p31 = scmp.eq.s32.totalorder %s16, 0
      %p32 = por %p30, %p31
      %p33 = scmp.ne.s32.totalorder %s21, %s22
      %p34 = scmp.eq.s32.totalorder %s17, 1
      %p35 = por %p33, %p34
      %p37 = scmp.ne.s32.totalorder %s22, %s36
      %p38 = scmp.eq.s32.totalorder %s17, 0
      %p39 = por %p37, %p38
      %s40 = ssub.s32 %s11, %s18
      %p41 = scmp.eq.s32.totalorder %s40, 0
      %s43 = sadd.s32 %s42, 1
      %s44 = scalar_select %p41, %s42, %s43
      %p47 = pneg %p41
      %p48 = scmp.eq.s32.totalorder %s11, 1
      %p49 = por %p47, %p48
      %p50 = scmp.ne.s32.totalorder %s42, %s45
      %p51 = scmp.eq.s32.totalorder %s11, 0
      %p52 = por %p50, %p51
      %p53 = scmp.ne.s32.totalorder %s42, %s45
      %p54 = scmp.eq.s32.totalorder %s16, 1
      %p55 = por %p53, %p54
      %p56 = scmp.ne.s32.totalorder %s45, %s46
      %p57 = scmp.eq.s32.totalorder %s16, 0
      %p58 = por %p56, %p57
      %p59 = scmp.ne.s32.totalorder %s45, %s46
      %p60 = scmp.eq.s32.totalorder %s17, 1
      %p61 = por %p59, %p60
      %p63 = scmp.ne.s32.totalorder %s46, %s62
      %p64 = scmp.eq.s32.totalorder %s17, 0
      %p65 = por %p63, %p64
      %s67 = sadd.s32 %s66, 1
      %p70 = scmp.eq.s32.totalorder %s11, 1
      %p71 = scmp.ne.s32.totalorder %s66, %s68
      %p72 = scmp.eq.s32.totalorder %s11, 0
      %p73 = por %p71, %p72
      %p74 = scmp.ne.s32.totalorder %s66, %s68
      %p75 = scmp.eq.s32.totalorder %s16, 1
      %p76 = por %p74, %p75
      %p77 = scmp.ne.s32.totalorder %s68, %s69
      %p78 = scmp.eq.s32.totalorder %s16, 0
      %p79 = por %p77, %p78
      %p80 = scmp.ne.s32.totalorder %s68, %s69
      %p81 = scmp.eq.s32.totalorder %s17, 1
      %p82 = por %p80, %p81
      %p84 = scmp.ne.s32.totalorder %s69, %s83
      %p85 = scmp.eq.s32.totalorder %s17, 0
      %p86 = por %p84, %p85
      %s88 = sadd.s32 %s87, 1
      %p91 = scmp.eq.s32.totalorder %s11, 1
      %p92 = scmp.ne.s32.totalorder %s87, %s89
      %p93 = scmp.eq.s32.totalorder %s11, 0
      %p94 = por %p92, %p93
      %p95 = scmp.ne.s32.totalorder %s87, %s89
      %p96 = scmp.eq.s32.totalorder %s16, 1
      %p97 = por %p95, %p96
      %p98 = scmp.ne.s32.totalorder %s89, %s90
      %p99 = scmp.eq.s32.totalorder %s16, 0
      %p100 = por %p98, %p99
      %p101 = scmp.ne.s32.totalorder %s89, %s90
      %p102 = scmp.eq.s32.totalorder %s17, 1
      %p103 = por %p101, %p102
      %p105 = scmp.ne.s32.totalorder %s90, %s104
      %p106 = scmp.eq.s32.totalorder %s17, 0
      %p107 = por %p105, %p106
      %s108 = ssub.s32 %s11, %s18
      %p109 = scmp.eq.s32.totalorder %s108, 0
      %s111 = sadd.s32 %s110, 1
      %s112 = scalar_select %p109, %s110, %s111
      %p115 = pneg %p109
      %p116 = scmp.eq.s32.totalorder %s11, 1
      %p117 = por %p115, %p116
      %p118 = scmp.ne.s32.totalorder %s110, %s113
      %p119 = scmp.eq.s32.totalorder %s11, 0
      %p120 = por %p118, %p119
      %p121 = scmp.ne.s32.totalorder %s110, %s113
      %p122 = scmp.eq.s32.totalorder %s16, 1
      %p123 = por %p121, %p122
      %p124 = scmp.ne.s32.totalorder %s113, %s114
      %p125 = scmp.eq.s32.totalorder %s16, 0
      %p126 = por %p124, %p125
      %p127 = scmp.ne.s32.totalorder %s113, %s114
      %p128 = scmp.eq.s32.totalorder %s17, 1
      %p129 = por %p127, %p128
      %p131 = scmp.ne.s32.totalorder %s114, %s130
      %p132 = scmp.eq.s32.totalorder %s17, 0
      %p133 = por %p131, %p132
      %p134 = scmp.le.s32.totalorder 1, %s11
      %p135 = scmp.lt.s32.totalorder %s11, 3
      %p136 = pnand %p134, %p135
      %p137 = pneg %p136
      // Predicated region
      $region9: #{closed_call.54} parent=5 // pred_check
        _
      $region10: #{closed_call.54} parent=5 // pred_check_branch
        %139 = sbr.rel (%p136) target = $region12
      $region11: #{closed_call.54} parent=5 // pred_region
        %s140 = ssub.s32 %s11, 1
        // Predicated region
        $region13: #{closed_call.54} parent=11 // pred_check
          %p141 = pneg %p32
        $region14: #{closed_call.54} parent=11 // pred_check_branch
          %143 = sbr.rel (%p141) target = $region16
        $region15: #{closed_call.54} parent=11 // pred_region
          _
        $region16: #{closed_call.54} parent=11 // pred_fallthru
          _
        // Predicated region
        $region17: #{closed_call.54} parent=11 // pred_check
          %p144 = pneg %p79
        $region18: #{closed_call.54} parent=11 // pred_check_branch
          %146 = sbr.rel (%p144) target = $region20
        $region19: #{closed_call.54} parent=11 // pred_region
          _
        $region20: #{closed_call.54} parent=11 // pred_fallthru
          _
        // Predicated region
        $region21: #{closed_call.54} parent=11 // pred_check
          %p147 = pneg %p100
        $region22: #{closed_call.54} parent=11 // pred_check_branch
          %149 = sbr.rel (%p147) target = $region24
        $region23: #{closed_call.54} parent=11 // pred_region
          _
        $region24: #{closed_call.54} parent=11 // pred_fallthru
          _
      $region12: #{closed_call.54} parent=5 // pred_fallthru
        _
      %p150 = scmp.lt.s32.totalorder %s11, 2
      // Predicated region
      $region25: #{closed_call.54} parent=5 // pred_check
        %p151 = pneg %p150
      $region26: #{closed_call.54} parent=5 // pred_check_branch
        %153 = sbr.rel (%p151) target = $region28
      $region27: #{closed_call.54} parent=5 // pred_region
        // Predicated region
        $region29: #{closed_call.54} parent=27 // pred_check
          %p154 = pneg %p52
        $region30: #{closed_call.54} parent=27 // pred_check_branch
          %156 = sbr.rel (%p154) target = $region32
        $region31: #{closed_call.54} parent=27 // pred_region
          %s157 = sand.u32 %s42, 1
          %s158 = sand.u32 %s42, 1
          %s159 = smul.addr %s158, 288
          %s160 = scalar_lea.vmem [#allocation3], %s159
          %s161 = smul.u32 2, %s11
          %s162 = smul.addr %s161, 4
          %s163 = scalar_lea.vmem %s1, %s162
          // Predicated region
          $region33: #{closed_call.54} parent=31 // pred_check
            _
          $region34: #{closed_call.54} parent=31 // pred_check_branch
            %165 = sbr.rel (0) target = $region36
          $region35: #{closed_call.54} parent=31 // pred_region
            // Predicated region
            $region37: #{closed_call.54} parent=35 // pred_check
              _
            $region38: #{closed_call.54} parent=35 // pred_check_branch
              %167 = sbr.rel (0) target = $region40
            $region39: #{closed_call.54} parent=35 // pred_region
              // Predicated region
              $region52: #{closed_call.54} parent=39 // pred_check
                _
              $region53: #{closed_call.54} parent=39 // pred_check_branch
                %253 = sbr.rel (0) target = $region55
              $region54: #{closed_call.54} parent=39 // pred_region
                loop: start=0, step=1, limit=1
                $region56: #{closed_call.54} parent=54 // loop_pre_header
                  _
                $region57: #{closed_call.54} parent=54 // loop_header
                  %s255 = sphi 0, %s259
                  %p256 = scmp.ge.s32.totalorder %s255, 1
                  %s260 = sphi %s163, %s163
                  %s261 = sphi %s160, %s160
                $region58: #{closed_call.54} parent=54 // loop_header_branch
                  %258 = sbr.rel (%p256) target = $region62
                $region59: #{closed_call.54} parent=54 // loop_body
                  %v262 = vld [vmem:[%s260] sm:$0xff]
                  %263 = vst [vmem:[%s261] sm:$0xff] %v262
                  %v264 = vld [vmem:[%s260 + $0x10] sm:$0xff]
                  %265 = vst [vmem:[%s261 + $0x8] sm:$0xff] %v264
                  %v266 = vld [vmem:[%s260 + $0x20] sm:$0xff]
                  %267 = vst [vmem:[%s261 + $0x10] sm:$0xff] %v266
                  %v268 = vld [vmem:[%s260 + $0x30] sm:$0xff]
                  %269 = vst [vmem:[%s261 + $0x18] sm:$0xff] %v268
                  %v270 = vld [vmem:[%s260 + $0x40] sm:$0xff]
                  %271 = vst [vmem:[%s261 + $0x20] sm:$0xff] %v270
                  %v272 = vld [vmem:[%s260 + $0x50] sm:$0xff]
                  %273 = vst [vmem:[%s261 + $0x28] sm:$0xff] %v272
                  %v274 = vld [vmem:[%s260 + $0x60] sm:$0xff]
                  %275 = vst [vmem:[%s261 + $0x30] sm:$0xff] %v274
                  %v276 = vld [vmem:[%s260 + $0x70] sm:$0xff]
                  %277 = vst [vmem:[%s261 + $0x38] sm:$0xff] %v276
                  %v278 = vld [vmem:[%s260 + $0x80] sm:$0xff]
                  %279 = vst [vmem:[%s261 + $0x40] sm:$0xff] %v278
                  %v280 = vld [vmem:[%s260 + $0x90] sm:$0xff]
                  %281 = vst [vmem:[%s261 + $0x48] sm:$0xff] %v280
                  %v282 = vld [vmem:[%s260 + $0xa0] sm:$0xff]
                  %283 = vst [vmem:[%s261 + $0x50] sm:$0xff] %v282
                  %v284 = vld [vmem:[%s260 + $0xb0] sm:$0xff]
                  %285 = vst [vmem:[%s261 + $0x58] sm:$0xff] %v284
                  %v286 = vld [vmem:[%s260 + $0xc0] sm:$0xff]
                  %287 = vst [vmem:[%s261 + $0x60] sm:$0xff] %v286
                  %v288 = vld [vmem:[%s260 + $0xd0] sm:$0xff]
                  %289 = vst [vmem:[%s261 + $0x68] sm:$0xff] %v288
                  %v290 = vld [vmem:[%s260 + $0xe0] sm:$0xff]
                  %291 = vst [vmem:[%s261 + $0x70] sm:$0xff] %v290
                  %v292 = vld [vmem:[%s260 + $0xf0] sm:$0xff]
                  %293 = vst [vmem:[%s261 + $0x78] sm:$0xff] %v292
                  %v294 = vld [vmem:[%s260 + $0x100] sm:$0xff]
                  %295 = vst [vmem:[%s261 + $0x80] sm:$0xff] %v294
                  %v296 = vld [vmem:[%s260 + $0x110] sm:$0xff]
                  %297 = vst [vmem:[%s261 + $0x88] sm:$0xff] %v296
                  %v298 = vld [vmem:[%s260 + $0x120] sm:$0xff]
                  %299 = vst [vmem:[%s261 + $0x90] sm:$0xff] %v298
                  %v300 = vld [vmem:[%s260 + $0x130] sm:$0xff]
                  %301 = vst [vmem:[%s261 + $0x98] sm:$0xff] %v300
                  %v302 = vld [vmem:[%s260 + $0x140] sm:$0xff]
                  %303 = vst [vmem:[%s261 + $0xa0] sm:$0xff] %v302
                  %v304 = vld [vmem:[%s260 + $0x150] sm:$0xff]
                  %305 = vst [vmem:[%s261 + $0xa8] sm:$0xff] %v304
                  %v306 = vld [vmem:[%s260 + $0x160] sm:$0xff]
                  %307 = vst [vmem:[%s261 + $0xb0] sm:$0xff] %v306
                  %v308 = vld [vmem:[%s260 + $0x170] sm:$0xff]
                  %309 = vst [vmem:[%s261 + $0xb8] sm:$0xff] %v308
                  %v310 = vld [vmem:[%s260 + $0x180] sm:$0xff]
                  %311 = vst [vmem:[%s261 + $0xc0] sm:$0xff] %v310
                  %v312 = vld [vmem:[%s260 + $0x190] sm:$0xff]
                  %313 = vst [vmem:[%s261 + $0xc8] sm:$0xff] %v312
                  %v314 = vld [vmem:[%s260 + $0x1a0] sm:$0xff]
                  %315 = vst [vmem:[%s261 + $0xd0] sm:$0xff] %v314
                  %v316 = vld [vmem:[%s260 + $0x1b0] sm:$0xff]
                  %317 = vst [vmem:[%s261 + $0xd8] sm:$0xff] %v316
                  %v318 = vld [vmem:[%s260 + $0x1c0] sm:$0xff]
                  %319 = vst [vmem:[%s261 + $0xe0] sm:$0xff] %v318
                  %v320 = vld [vmem:[%s260 + $0x1d0] sm:$0xff]
                  %321 = vst [vmem:[%s261 + $0xe8] sm:$0xff] %v320
                  %v322 = vld [vmem:[%s260 + $0x1e0] sm:$0xff]
                  %323 = vst [vmem:[%s261 + $0xf0] sm:$0xff] %v322
                  %v324 = vld [vmem:[%s260 + $0x1f0] sm:$0xff]
                  %325 = vst [vmem:[%s261 + $0xf8] sm:$0xff] %v324
                  %v326 = vld [vmem:[%s260 + $0x200] sm:$0xff]
                  %327 = vst [vmem:[%s261 + $0x100] sm:$0xff] %v326
                  %v328 = vld [vmem:[%s260 + $0x210] sm:$0xff]
                  %329 = vst [vmem:[%s261 + $0x108] sm:$0xff] %v328
                  %v330 = vld [vmem:[%s260 + $0x220] sm:$0xff]
                  %331 = vst [vmem:[%s261 + $0x110] sm:$0xff] %v330
                  %v332 = vld [vmem:[%s260 + $0x230] sm:$0xff]
                  %333 = vst [vmem:[%s261 + $0x118] sm:$0xff] %v332
                $region60: #{closed_call.54} parent=54 // loop_footer
                  %s259 = sadd.s32 1, %s255
                $region61: #{closed_call.54} parent=54 // loop_footer_branch
                  %254 = sbr.rel target = $region57
                $region62: #{closed_call.54} parent=54 // loop_exit
                  _
              $region55: #{closed_call.54} parent=39 // pred_fallthru
                _
              // Predicated region
              $region63: #{closed_call.54} parent=39 // pred_check
                _
              $region64: #{closed_call.54} parent=39 // pred_check_branch
                %335 = sbr.rel target = $region66
              $region65: #{closed_call.54} parent=39 // pred_region
                _
              $region66: #{closed_call.54} parent=39 // pred_fallthru
                _
            $region40: #{closed_call.54} parent=35 // pred_fallthru
              _
            // Predicated region
            $region41: #{closed_call.54} parent=35 // pred_check
              _
            $region42: #{closed_call.54} parent=35 // pred_check_branch
              %169 = sbr.rel target = $region44
            $region43: #{closed_call.54} parent=35 // pred_region
              %s171 = ssub.s32 256, 1
              loop: start=0, step=1, limit=1
              $region45: #{closed_call.54} parent=43 // loop_pre_header
                _
              $region46: #{closed_call.54} parent=43 // loop_header
                %s173 = sphi 0, %s177
                %p174 = scmp.ge.s32.totalorder %s173, 1
                %s178 = sphi %s163, %s163
                %s179 = sphi %s160, %s160
              $region47: #{closed_call.54} parent=43 // loop_header_branch
                %176 = sbr.rel (%p174) target = $region51
              $region48: #{closed_call.54} parent=43 // loop_body
                %v180 = vld [vmem:[%s178] sm:%s171]
                %181 = vst [vmem:[%s179] sm:%s171] %v180
                %v182 = vld [vmem:[%s178 + $0x10] sm:%s171]
                %183 = vst [vmem:[%s179 + $0x8] sm:%s171] %v182
                %v184 = vld [vmem:[%s178 + $0x20] sm:%s171]
                %185 = vst [vmem:[%s179 + $0x10] sm:%s171] %v184
                %v186 = vld [vmem:[%s178 + $0x30] sm:%s171]
                %187 = vst [vmem:[%s179 + $0x18] sm:%s171] %v186
                %v188 = vld [vmem:[%s178 + $0x40] sm:%s171]
                %189 = vst [vmem:[%s179 + $0x20] sm:%s171] %v188
                %v190 = vld [vmem:[%s178 + $0x50] sm:%s171]
                %191 = vst [vmem:[%s179 + $0x28] sm:%s171] %v190
                %v192 = vld [vmem:[%s178 + $0x60] sm:%s171]
                %193 = vst [vmem:[%s179 + $0x30] sm:%s171] %v192
                %v194 = vld [vmem:[%s178 + $0x70] sm:%s171]
                %195 = vst [vmem:[%s179 + $0x38] sm:%s171] %v194
                %v196 = vld [vmem:[%s178 + $0x80] sm:%s171]
                %197 = vst [vmem:[%s179 + $0x40] sm:%s171] %v196
                %v198 = vld [vmem:[%s178 + $0x90] sm:%s171]
                %199 = vst [vmem:[%s179 + $0x48] sm:%s171] %v198
                %v200 = vld [vmem:[%s178 + $0xa0] sm:%s171]
                %201 = vst [vmem:[%s179 + $0x50] sm:%s171] %v200
                %v202 = vld [vmem:[%s178 + $0xb0] sm:%s171]
                %203 = vst [vmem:[%s179 + $0x58] sm:%s171] %v202
                %v204 = vld [vmem:[%s178 + $0xc0] sm:%s171]
                %205 = vst [vmem:[%s179 + $0x60] sm:%s171] %v204
                %v206 = vld [vmem:[%s178 + $0xd0] sm:%s171]
                %207 = vst [vmem:[%s179 + $0x68] sm:%s171] %v206
                %v208 = vld [vmem:[%s178 + $0xe0] sm:%s171]
                %209 = vst [vmem:[%s179 + $0x70] sm:%s171] %v208
                %v210 = vld [vmem:[%s178 + $0xf0] sm:%s171]
                %211 = vst [vmem:[%s179 + $0x78] sm:%s171] %v210
                %v212 = vld [vmem:[%s178 + $0x100] sm:%s171]
                %213 = vst [vmem:[%s179 + $0x80] sm:%s171] %v212
                %v214 = vld [vmem:[%s178 + $0x110] sm:%s171]
                %215 = vst [vmem:[%s179 + $0x88] sm:%s171] %v214
                %v216 = vld [vmem:[%s178 + $0x120] sm:%s171]
                %217 = vst [vmem:[%s179 + $0x90] sm:%s171] %v216
                %v218 = vld [vmem:[%s178 + $0x130] sm:%s171]
                %219 = vst [vmem:[%s179 + $0x98] sm:%s171] %v218
                %v220 = vld [vmem:[%s178 + $0x140] sm:%s171]
                %221 = vst [vmem:[%s179 + $0xa0] sm:%s171] %v220
                %v222 = vld [vmem:[%s178 + $0x150] sm:%s171]
                %223 = vst [vmem:[%s179 + $0xa8] sm:%s171] %v222
                %v224 = vld [vmem:[%s178 + $0x160] sm:%s171]
                %225 = vst [vmem:[%s179 + $0xb0] sm:%s171] %v224
                %v226 = vld [vmem:[%s178 + $0x170] sm:%s171]
                %227 = vst [vmem:[%s179 + $0xb8] sm:%s171] %v226
                %v228 = vld [vmem:[%s178 + $0x180] sm:%s171]
                %229 = vst [vmem:[%s179 + $0xc0] sm:%s171] %v228
                %v230 = vld [vmem:[%s178 + $0x190] sm:%s171]
                %231 = vst [vmem:[%s179 + $0xc8] sm:%s171] %v230
                %v232 = vld [vmem:[%s178 + $0x1a0] sm:%s171]
                %233 = vst [vmem:[%s179 + $0xd0] sm:%s171] %v232
                %v234 = vld [vmem:[%s178 + $0x1b0] sm:%s171]
                %235 = vst [vmem:[%s179 + $0xd8] sm:%s171] %v234
                %v236 = vld [vmem:[%s178 + $0x1c0] sm:%s171]
                %237 = vst [vmem:[%s179 + $0xe0] sm:%s171] %v236
                %v238 = vld [vmem:[%s178 + $0x1d0] sm:%s171]
                %239 = vst [vmem:[%s179 + $0xe8] sm:%s171] %v238
                %v240 = vld [vmem:[%s178 + $0x1e0] sm:%s171]
                %241 = vst [vmem:[%s179 + $0xf0] sm:%s171] %v240
                %v242 = vld [vmem:[%s178 + $0x1f0] sm:%s171]
                %243 = vst [vmem:[%s179 + $0xf8] sm:%s171] %v242
                %v244 = vld [vmem:[%s178 + $0x200] sm:%s171]
                %245 = vst [vmem:[%s179 + $0x100] sm:%s171] %v244
                %v246 = vld [vmem:[%s178 + $0x210] sm:%s171]
                %247 = vst [vmem:[%s179 + $0x108] sm:%s171] %v246
                %v248 = vld [vmem:[%s178 + $0x220] sm:%s171]
                %249 = vst [vmem:[%s179 + $0x110] sm:%s171] %v248
                %v250 = vld [vmem:[%s178 + $0x230] sm:%s171]
                %251 = vst [vmem:[%s179 + $0x118] sm:%s171] %v250
              $region49: #{closed_call.54} parent=43 // loop_footer
                %s177 = sadd.s32 1, %s173
              $region50: #{closed_call.54} parent=43 // loop_footer_branch
                %172 = sbr.rel target = $region46
              $region51: #{closed_call.54} parent=43 // loop_exit
                _
            $region44: #{closed_call.54} parent=35 // pred_fallthru
              _
          $region36: #{closed_call.54} parent=31 // pred_fallthru
            _
          %336 = vnop
        $region32: #{closed_call.54} parent=27 // pred_fallthru
          _
      $region28: #{closed_call.54} parent=5 // pred_fallthru
        _
      %p337 = scmp.le.s32.totalorder 1, %s11
      %p338 = scmp.lt.s32.totalorder %s11, 3
      %p339 = pnand %p337, %p338
      %p340 = pneg %p339
      // Predicated region
      $region67: #{closed_call.54} parent=5 // pred_check
        _
      $region68: #{closed_call.54} parent=5 // pred_check_branch
        %342 = sbr.rel (%p339) target = $region70
      $region69: #{closed_call.54} parent=5 // pred_region
        %s343 = ssub.s32 %s11, 1
        %s344 = sand.u32 %s45, 1
        %s345 = sand.u32 %s45, 1
        %s346 = smul.addr %s345, 288
        %s347 = scalar_lea.vmem [#allocation3], %s346
        // Predicated region
        $region71: #{closed_call.54} parent=69 // pred_check
          %p348 = pneg %p58
        $region72: #{closed_call.54} parent=69 // pred_check_branch
          %350 = sbr.rel (%p348) target = $region74
        $region73: #{closed_call.54} parent=69 // pred_region
          _
        $region74: #{closed_call.54} parent=69 // pred_fallthru
          _
        %p351 = pneg %p32
        %p352 = pneg %p29
        %s353 = sand.u32 %s45, 1
        %s354 = sand.u32 %s45, 1
        %s355 = smul.addr %s354, 288
        %s356 = scalar_lea.vmem [#allocation3], %s355
        %p357 = pneg %p58
        %p358 = pneg %p55
        %p359 = pneg %p79
        %p360 = pneg %p76
        %p361 = pneg %p100
        %p362 = pneg %p97
        %p363 = pneg %p126
        %p364 = pneg %p123
        %s365 = sand.u32 %s113, 1
        %s366 = sand.u32 %s113, 1
        %s367 = smul.addr %s366, 128
        %s368 = scalar_lea.vmem [#allocation4], %s367
        %s369 = smul.u32 2, %s16
        %s370 = smul.u32 2, %s16
        %v372 = vld [vmem:[%s0] sm:$0xff]
        %v373 = vld [vmem:[%s0 + $0x8] sm:$0xf]
        %v374 = vld [vmem:[%s0 + $0xc] sm:$0xff]
        %v375 = vld [vmem:[%s0 + $0x14] sm:$0xf]
        %v376 = vld [vmem:[%s0 + $0x18] sm:$0xff]
        %v377 = vld [vmem:[%s0 + $0x20] sm:$0xf]
        %v378 = vld [vmem:[%s0 + $0x24] sm:$0xff]
        %v379 = vld [vmem:[%s0 + $0x2c] sm:$0xf]
        %v380 = vld [vmem:[%s0 + $0x30] sm:$0xff]
        %v381 = vld [vmem:[%s0 + $0x38] sm:$0xf]
        %v382 = vld [vmem:[%s0 + $0x3c] sm:$0xff]
        %v383 = vld [vmem:[%s0 + $0x44] sm:$0xf]
        %v384 = vld [vmem:[%s0 + $0x48] sm:$0xff]
        %v385 = vld [vmem:[%s0 + $0x50] sm:$0xf]
        %v386 = vld [vmem:[%s0 + $0x54] sm:$0xff]
        %v387 = vld [vmem:[%s0 + $0x5c] sm:$0xf]
        %v388 = vld [vmem:[%s0 + $0x60] sm:$0xff]
        %v389 = vld [vmem:[%s0 + $0x68] sm:$0xf]
        %v390 = vld [vmem:[%s0 + $0x6c] sm:$0xff]
        %v391 = vld [vmem:[%s0 + $0x74] sm:$0xf]
        %v392 = vld [vmem:[%s0 + $0x78] sm:$0xff]
        %v393 = vld [vmem:[%s0 + $0x80] sm:$0xf]
        %v394 = vld [vmem:[%s0 + $0x84] sm:$0xff]
        %v395 = vld [vmem:[%s0 + $0x8c] sm:$0xf]
        %v396 = vld [vmem:[%s0 + $0x90] sm:$0xff]
        %v397 = vld [vmem:[%s0 + $0x98] sm:$0xf]
        %v398 = vld [vmem:[%s0 + $0x9c] sm:$0xff]
        %v399 = vld [vmem:[%s0 + $0xa4] sm:$0xf]
        %v400 = vld [vmem:[%s0 + $0xa8] sm:$0xff]
        %v401 = vld [vmem:[%s0 + $0xb0] sm:$0xf]
        %v402 = vld [vmem:[%s0 + $0xb4] sm:$0xff]
        %v403 = vld [vmem:[%s0 + $0xbc] sm:$0xf]
        %v404 = vld [vmem:[%s347] sm:$0xff]
        %v405 = vld [vmem:[%s347 + $0x8] sm:$0xff]
        %v406 = vld [vmem:[%s347 + $0x10] sm:$0xff]
        %v407 = vld [vmem:[%s347 + $0x18] sm:$0xff]
        %v408 = vld [vmem:[%s347 + $0x20] sm:$0xff]
        %v409 = vld [vmem:[%s347 + $0x28] sm:$0xff]
        %v410 = vld [vmem:[%s347 + $0x30] sm:$0xff]
        %v411 = vld [vmem:[%s347 + $0x38] sm:$0xff]
        %v412 = vld [vmem:[%s347 + $0x40] sm:$0xff]
        %v413 = vld [vmem:[%s347 + $0x48] sm:$0xff]
        %v414 = vld [vmem:[%s347 + $0x50] sm:$0xff]
        %v415 = vld [vmem:[%s347 + $0x58] sm:$0xff]
        %v416 = vld [vmem:[%s347 + $0x60] sm:$0xff]
        %v417 = vld [vmem:[%s347 + $0x68] sm:$0xff]
        %v418 = vld [vmem:[%s347 + $0x70] sm:$0xff]
        %v419 = vld [vmem:[%s347 + $0x78] sm:$0xff]
        %v420 = vld [vmem:[%s347 + $0x80] sm:$0xff]
        %v421 = vld [vmem:[%s347 + $0x88] sm:$0xff]
        %v422 = vld [vmem:[%s347 + $0x90] sm:$0xff]
        %v423 = vld [vmem:[%s347 + $0x98] sm:$0xff]
        %v424 = vld [vmem:[%s347 + $0xa0] sm:$0xff]
        %v425 = vld [vmem:[%s347 + $0xa8] sm:$0xff]
        %v426 = vld [vmem:[%s347 + $0xb0] sm:$0xff]
        %v427 = vld [vmem:[%s347 + $0xb8] sm:$0xff]
        %v428 = vld [vmem:[%s347 + $0xc0] sm:$0xff]
        %v429 = vld [vmem:[%s347 + $0xc8] sm:$0xff]
        %v430 = vld [vmem:[%s347 + $0xd0] sm:$0xff]
        %v431 = vld [vmem:[%s347 + $0xd8] sm:$0xff]
        %v432 = vld [vmem:[%s347 + $0xe0] sm:$0xff]
        %v433 = vld [vmem:[%s347 + $0xe8] sm:$0xff]
        %v434 = vld [vmem:[%s347 + $0xf0] sm:$0xff]
        %v435 = vld [vmem:[%s347 + $0xf8] sm:$0xff]
        %v436 = vld [vmem:[%s347 + $0x100] sm:$0xff]
        %v437 = vld [vmem:[%s347 + $0x108] sm:$0xff]
        %v438 = vld [vmem:[%s347 + $0x110] sm:$0xff]
        %v439 = vld [vmem:[%s347 + $0x118] sm:$0xff]
        %v440 = vld [vmem:[%s2] sm:$0xff]
        %v441 = vld [vmem:[%s2 + $0x8] sm:$0xff]
        %v442 = vld [vmem:[%s2 + $0x10] sm:$0xff]
        %v443 = vld [vmem:[%s2 + $0x18] sm:$0xff]
        %v444 = vld [vmem:[%s2 + $0x20] sm:$0xff]
        %v445 = vld [vmem:[%s2 + $0x28] sm:$0xff]
        %v446 = vld [vmem:[%s2 + $0x30] sm:$0xff]
        %v447 = vld [vmem:[%s2 + $0x38] sm:$0xff]
        %v448 = vld [vmem:[%s2 + $0x40] sm:$0xff]
        %v449 = vld [vmem:[%s2 + $0x48] sm:$0xff]
        %v450 = vld [vmem:[%s2 + $0x50] sm:$0xff]
        %v451 = vld [vmem:[%s2 + $0x58] sm:$0xff]
        %v452 = vld [vmem:[%s2 + $0x60] sm:$0xff]
        %v453 = vld [vmem:[%s2 + $0x68] sm:$0xff]
        %v454 = vld [vmem:[%s2 + $0x70] sm:$0xff]
        %v455 = vld [vmem:[%s2 + $0x78] sm:$0xff]
        %457 = vset.pattern.permute.xlu0 0
        %458 = vperm.xlu0 %457, %v440
        %v459 = vpop.permute.xlu0 %458
        %462 = vset.pattern.permute.xlu0 0
        %463 = vperm.xlu0 %462, %v441
        %v464 = vpop.permute.xlu0 %463
        %467 = vset.pattern.permute.xlu0 0
        %468 = vperm.xlu0 %467, %v442
        %v469 = vpop.permute.xlu0 %468
        %472 = vset.pattern.permute.xlu0 0
        %473 = vperm.xlu0 %472, %v443
        %v474 = vpop.permute.xlu0 %473
        %477 = vset.pattern.permute.xlu0 0
        %478 = vperm.xlu0 %477, %v444
        %v479 = vpop.permute.xlu0 %478
        %482 = vset.pattern.permute.xlu0 0
        %483 = vperm.xlu0 %482, %v445
        %v484 = vpop.permute.xlu0 %483
        %487 = vset.pattern.permute.xlu0 0
        %488 = vperm.xlu0 %487, %v446
        %v489 = vpop.permute.xlu0 %488
        %492 = vset.pattern.permute.xlu0 0
        %493 = vperm.xlu0 %492, %v447
        %v494 = vpop.permute.xlu0 %493
        %497 = vset.pattern.permute.xlu0 0
        %498 = vperm.xlu0 %497, %v448
        %v499 = vpop.permute.xlu0 %498
        %502 = vset.pattern.permute.xlu0 0
        %503 = vperm.xlu0 %502, %v449
        %v504 = vpop.permute.xlu0 %503
        %507 = vset.pattern.permute.xlu0 0
        %508 = vperm.xlu0 %507, %v450
        %v509 = vpop.permute.xlu0 %508
        %512 = vset.pattern.permute.xlu0 0
        %513 = vperm.xlu0 %512, %v451
        %v514 = vpop.permute.xlu0 %513
        %517 = vset.pattern.permute.xlu0 0
        %518 = vperm.xlu0 %517, %v452
        %v519 = vpop.permute.xlu0 %518
        %522 = vset.pattern.permute.xlu0 0
        %523 = vperm.xlu0 %522, %v453
        %v524 = vpop.permute.xlu0 %523
        %527 = vset.pattern.permute.xlu0 0
        %528 = vperm.xlu0 %527, %v454
        %v529 = vpop.permute.xlu0 %528
        %532 = vset.pattern.permute.xlu0 0
        %533 = vperm.xlu0 %532, %v455
        %v534 = vpop.permute.xlu0 %533
        %v568 = vunpack.c.l.b16 %v372
        %v569 = vunpack.c.h.b16 %v372
        %v570 = vunpack.c.l.b16 %v373
        %v571 = vunpack.c.l.b16 %v374
        %v572 = vunpack.c.h.b16 %v374
        %v573 = vunpack.c.l.b16 %v375
        %v574 = vunpack.c.l.b16 %v376
        %v575 = vunpack.c.h.b16 %v376
        %v576 = vunpack.c.l.b16 %v377
        %v577 = vunpack.c.l.b16 %v378
        %v578 = vunpack.c.h.b16 %v378
        %v579 = vunpack.c.l.b16 %v379
        %v580 = vunpack.c.l.b16 %v380
        %v581 = vunpack.c.h.b16 %v380
        %v582 = vunpack.c.l.b16 %v381
        %v583 = vunpack.c.l.b16 %v382
        %v584 = vunpack.c.h.b16 %v382
        %v585 = vunpack.c.l.b16 %v383
        %v586 = vunpack.c.l.b16 %v384
        %v587 = vunpack.c.h.b16 %v384
        %v588 = vunpack.c.l.b16 %v385
        %v589 = vunpack.c.l.b16 %v386
        %v590 = vunpack.c.h.b16 %v386
        %v591 = vunpack.c.l.b16 %v387
        %v592 = vunpack.c.l.b16 %v388
        %v593 = vunpack.c.h.b16 %v388
        %v594 = vunpack.c.l.b16 %v389
        %v595 = vunpack.c.l.b16 %v390
        %v596 = vunpack.c.h.b16 %v390
        %v597 = vunpack.c.l.b16 %v391
        %v598 = vunpack.c.l.b16 %v392
        %v599 = vunpack.c.h.b16 %v392
        %v600 = vunpack.c.l.b16 %v393
        %v601 = vunpack.c.l.b16 %v394
        %v602 = vunpack.c.h.b16 %v394
        %v603 = vunpack.c.l.b16 %v395
        %v604 = vunpack.c.l.b16 %v396
        %v605 = vunpack.c.h.b16 %v396
        %v606 = vunpack.c.l.b16 %v397
        %v607 = vunpack.c.l.b16 %v398
        %v608 = vunpack.c.h.b16 %v398
        %v609 = vunpack.c.l.b16 %v399
        %v610 = vunpack.c.l.b16 %v400
        %v611 = vunpack.c.h.b16 %v400
        %v612 = vunpack.c.l.b16 %v401
        %v613 = vunpack.c.l.b16 %v402
        %v614 = vunpack.c.h.b16 %v402
        %v615 = vunpack.c.l.b16 %v403
        %v616 = vpack.c.b16 %v571, %v568
        %v617 = vpack.c.b16 %v572, %v569
        %v618 = vpack.c.b16 %v573, %v570
        %v619 = vpack.c.b16 %v577, %v574
        %v620 = vpack.c.b16 %v578, %v575
        %v621 = vpack.c.b16 %v579, %v576
        %v622 = vpack.c.b16 %v583, %v580
        %v623 = vpack.c.b16 %v584, %v581
        %v624 = vpack.c.b16 %v585, %v582
        %v625 = vpack.c.b16 %v589, %v586
        %v626 = vpack.c.b16 %v590, %v587
        %v627 = vpack.c.b16 %v591, %v588
        %v628 = vpack.c.b16 %v595, %v592
        %v629 = vpack.c.b16 %v596, %v593
        %v630 = vpack.c.b16 %v597, %v594
        %v631 = vpack.c.b16 %v601, %v598
        %v632 = vpack.c.b16 %v602, %v599
        %v633 = vpack.c.b16 %v603, %v600
        %v634 = vpack.c.b16 %v607, %v604
        %v635 = vpack.c.b16 %v608, %v605
        %v636 = vpack.c.b16 %v609, %v606
        %v637 = vpack.c.b16 %v613, %v610
        %v638 = vpack.c.b16 %v614, %v611
        %v639 = vpack.c.b16 %v615, %v612
        %v692 = vunpack.c.l.b16 %v404
        %v693 = vunpack.c.h.b16 %v404
        %v694 = vunpack.c.l.b16 %v405
        %v695 = vunpack.c.h.b16 %v405
        %v696 = vunpack.c.l.b16 %v406
        %v697 = vunpack.c.h.b16 %v406
        %v698 = vunpack.c.l.b16 %v407
        %v699 = vunpack.c.h.b16 %v407
        %v700 = vunpack.c.l.b16 %v408
        %v701 = vunpack.c.h.b16 %v408
        %v702 = vunpack.c.l.b16 %v409
        %v703 = vunpack.c.h.b16 %v409
        %v704 = vunpack.c.l.b16 %v410
        %v705 = vunpack.c.h.b16 %v410
        %v706 = vunpack.c.l.b16 %v411
        %v707 = vunpack.c.h.b16 %v411
        %v708 = vunpack.c.l.b16 %v412
        %v709 = vunpack.c.h.b16 %v412
        %v710 = vunpack.c.l.b16 %v413
        %v711 = vunpack.c.h.b16 %v413
        %v712 = vunpack.c.l.b16 %v414
        %v713 = vunpack.c.h.b16 %v414
        %v714 = vunpack.c.l.b16 %v415
        %v715 = vunpack.c.h.b16 %v415
        %v716 = vunpack.c.l.b16 %v416
        %v717 = vunpack.c.h.b16 %v416
        %v718 = vunpack.c.l.b16 %v417
        %v719 = vunpack.c.h.b16 %v417
        %v720 = vunpack.c.l.b16 %v418
        %v721 = vunpack.c.h.b16 %v418
        %v722 = vunpack.c.l.b16 %v419
        %v723 = vunpack.c.h.b16 %v419
        %v724 = vunpack.c.l.b16 %v420
        %v725 = vunpack.c.h.b16 %v420
        %v726 = vunpack.c.l.b16 %v421
        %v727 = vunpack.c.h.b16 %v421
        %v728 = vunpack.c.l.b16 %v422
        %v729 = vunpack.c.h.b16 %v422
        %v730 = vunpack.c.l.b16 %v423
        %v731 = vunpack.c.h.b16 %v423
        %v732 = vunpack.c.l.b16 %v424
        %v733 = vunpack.c.h.b16 %v424
        %v734 = vunpack.c.l.b16 %v425
        %v735 = vunpack.c.h.b16 %v425
        %v736 = vunpack.c.l.b16 %v426
        %v737 = vunpack.c.h.b16 %v426
        %v738 = vunpack.c.l.b16 %v427
        %v739 = vunpack.c.h.b16 %v427
        %v740 = vunpack.c.l.b16 %v428
        %v741 = vunpack.c.h.b16 %v428
        %v742 = vunpack.c.l.b16 %v429
        %v743 = vunpack.c.h.b16 %v429
        %v744 = vunpack.c.l.b16 %v430
        %v745 = vunpack.c.h.b16 %v430
        %v746 = vunpack.c.l.b16 %v431
        %v747 = vunpack.c.h.b16 %v431
        %v748 = vunpack.c.l.b16 %v432
        %v749 = vunpack.c.h.b16 %v432
        %v750 = vunpack.c.l.b16 %v433
        %v751 = vunpack.c.h.b16 %v433
        %v752 = vunpack.c.l.b16 %v434
        %v753 = vunpack.c.h.b16 %v434
        %v754 = vunpack.c.l.b16 %v435
        %v755 = vunpack.c.h.b16 %v435
        %v756 = vunpack.c.l.b16 %v436
        %v757 = vunpack.c.h.b16 %v436
        %v758 = vunpack.c.l.b16 %v437
        %v759 = vunpack.c.h.b16 %v437
        %v760 = vunpack.c.l.b16 %v438
        %v761 = vunpack.c.h.b16 %v438
        %v762 = vunpack.c.l.b16 %v439
        %v763 = vunpack.c.h.b16 %v439
        %v764 = vpack.c.b16 %v694, %v692
        %v765 = vpack.c.b16 %v695, %v693
        %v766 = vpack.c.b16 %v698, %v696
        %v767 = vpack.c.b16 %v699, %v697
        %v768 = vpack.c.b16 %v702, %v700
        %v769 = vpack.c.b16 %v703, %v701
        %v770 = vpack.c.b16 %v706, %v704
        %v771 = vpack.c.b16 %v707, %v705
        %v772 = vpack.c.b16 %v710, %v708
        %v773 = vpack.c.b16 %v711, %v709
        %v774 = vpack.c.b16 %v714, %v712
        %v775 = vpack.c.b16 %v715, %v713
        %v776 = vpack.c.b16 %v718, %v716
        %v777 = vpack.c.b16 %v719, %v717
        %v778 = vpack.c.b16 %v722, %v720
        %v779 = vpack.c.b16 %v723, %v721
        %v780 = vpack.c.b16 %v726, %v724
        %v781 = vpack.c.b16 %v727, %v725
        %v782 = vpack.c.b16 %v730, %v728
        %v783 = vpack.c.b16 %v731, %v729
        %v784 = vpack.c.b16 %v734, %v732
        %v785 = vpack.c.b16 %v735, %v733
        %v786 = vpack.c.b16 %v738, %v736
        %v787 = vpack.c.b16 %v739, %v737
        %v788 = vpack.c.b16 %v742, %v740
        %v789 = vpack.c.b16 %v743, %v741
        %v790 = vpack.c.b16 %v746, %v744
        %v791 = vpack.c.b16 %v747, %v745
        %v792 = vpack.c.b16 %v750, %v748
        %v793 = vpack.c.b16 %v751, %v749
        %v794 = vpack.c.b16 %v754, %v752
        %v795 = vpack.c.b16 %v755, %v753
        %v796 = vpack.c.b16 %v758, %v756
        %v797 = vpack.c.b16 %v759, %v757
        %v798 = vpack.c.b16 %v762, %v760
        %v799 = vpack.c.b16 %v763, %v761
        %vm836 = vcmask 261120
        %v838 = vsel %vm836, %v618, 0
        %v841 = vsel %vm836, %v621, 0
        %v844 = vsel %vm836, %v624, 0
        %v847 = vsel %vm836, %v627, 0
        %v850 = vsel %vm836, %v630, 0
        %v853 = vsel %vm836, %v633, 0
        %v856 = vsel %vm836, %v636, 0
        %v859 = vsel %vm836, %v639, 0
        %861 = vmatprep.subr.bf16.mxu0 %v779
        %862 = vmatpush1.bf16.msra.mxu0 %v778
        %863 = vmatprep.subr.bf16.mxu0 %v777
        %864 = vmatpush1.bf16.msra.mxu0 %v776
        %865 = vmatprep.subr.bf16.mxu0 %v775
        %866 = vmatpush1.bf16.msra.mxu0 %v774
        %867 = vmatprep.subr.bf16.mxu0 %v773
        %868 = vmatpush1.bf16.msra.mxu0 %v772
        %869 = vmatprep.subr.bf16.mxu0 %v771
        %870 = vmatpush1.bf16.msra.mxu0 %v770
        %871 = vmatprep.subr.bf16.mxu0 %v769
        %872 = vmatpush1.bf16.msra.mxu0 %v768
        %873 = vmatprep.subr.bf16.mxu0 %v767
        %874 = vmatpush1.bf16.msra.mxu0 %v766
        %875 = vmatprep.subr.bf16.mxu0 %v765
        %876 = vmatpush1.bf16.msra.mxu0 %v764
        %877 = vmatprep.subr.bf16.mxu0 %v795
        %878 = vmatpush2.bf16.msra.mxu0 %v794
        %879 = vmatprep.subr.bf16.mxu0 %v793
        %880 = vmatpush2.bf16.msra.mxu0 %v792
        %881 = vmatprep.subr.bf16.mxu0 %v791
        %882 = vmatpush2.bf16.msra.mxu0 %v790
        %883 = vmatprep.subr.bf16.mxu0 %v789
        %884 = vmatpush2.bf16.msra.mxu0 %v788
        %885 = vmatprep.subr.bf16.mxu0 %v787
        %886 = vmatpush2.bf16.msra.mxu0 %v786
        %887 = vmatprep.subr.bf16.mxu0 %v785
        %888 = vmatpush2.bf16.msra.mxu0 %v784
        %889 = vmatprep.subr.bf16.mxu0 %v783
        %890 = vmatpush2.bf16.msra.mxu0 %v782
        %891 = vmatprep.subr.bf16.mxu0 %v781
        %892 = vmatpush2.bf16.msra.mxu0 %v780
        %893 = vmatprep.mubr.bf16.mxu0 %v617
        %894 = vmatmul.mubr.bf16.gmra.mxu0 %v616
        %v895 = vpop.f32.mrf.mxu0
        %v896 = vadd.f32 %v459, %v895
        %v897 = vpop.f32.mrf.mxu0
        %v898 = vadd.f32 %v459, %v897
        %v899 = vpop.f32.mrf.mxu0
        %v900 = vadd.f32 %v464, %v899
        %v901 = vpop.f32.mrf.mxu0
        %v902 = vadd.f32 %v464, %v901
        %903 = vmatprep.mubr.bf16.mxu0 %v620
        %904 = vmatmul.mubr.bf16.gmra.mxu0 %v619
        %v905 = vpop.f32.mrf.mxu0
        %v906 = vadd.f32 %v469, %v905
        %v907 = vpop.f32.mrf.mxu0
        %v908 = vadd.f32 %v469, %v907
        %v909 = vpop.f32.mrf.mxu0
        %v910 = vadd.f32 %v474, %v909
        %v911 = vpop.f32.mrf.mxu0
        %v912 = vadd.f32 %v474, %v911
        %913 = vmatprep.mubr.bf16.mxu0 %v623
        %914 = vmatmul.mubr.bf16.gmra.mxu0 %v622
        %v915 = vpop.f32.mrf.mxu0
        %v916 = vadd.f32 %v479, %v915
        %v917 = vpop.f32.mrf.mxu0
        %v918 = vadd.f32 %v479, %v917
        %v919 = vpop.f32.mrf.mxu0
        %v920 = vadd.f32 %v484, %v919
        %v921 = vpop.f32.mrf.mxu0
        %v922 = vadd.f32 %v484, %v921
        %923 = vmatprep.mubr.bf16.mxu0 %v626
        %924 = vmatmul.mubr.bf16.gmra.mxu0 %v625
        %v925 = vpop.f32.mrf.mxu0
        %v926 = vadd.f32 %v489, %v925
        %v927 = vpop.f32.mrf.mxu0
        %v928 = vadd.f32 %v489, %v927
        %v929 = vpop.f32.mrf.mxu0
        %v930 = vadd.f32 %v494, %v929
        %v931 = vpop.f32.mrf.mxu0
        %v932 = vadd.f32 %v494, %v931
        %933 = vmatprep.mubr.bf16.mxu0 %v629
        %934 = vmatmul.mubr.bf16.gmra.mxu0 %v628
        %v935 = vpop.f32.mrf.mxu0
        %v936 = vadd.f32 %v499, %v935
        %v937 = vpop.f32.mrf.mxu0
        %v938 = vadd.f32 %v499, %v937
        %v939 = vpop.f32.mrf.mxu0
        %v940 = vadd.f32 %v504, %v939
        %v941 = vpop.f32.mrf.mxu0
        %v942 = vadd.f32 %v504, %v941
        %943 = vmatprep.mubr.bf16.mxu0 %v632
        %944 = vmatmul.mubr.bf16.gmra.mxu0 %v631
        %v945 = vpop.f32.mrf.mxu0
        %v946 = vadd.f32 %v509, %v945
        %v947 = vpop.f32.mrf.mxu0
        %v948 = vadd.f32 %v509, %v947
        %v949 = vpop.f32.mrf.mxu0
        %v950 = vadd.f32 %v514, %v949
        %v951 = vpop.f32.mrf.mxu0
        %v952 = vadd.f32 %v514, %v951
        %953 = vmatprep.mubr.bf16.mxu0 %v635
        %954 = vmatmul.mubr.bf16.gmra.mxu0 %v634
        %v955 = vpop.f32.mrf.mxu0
        %v956 = vadd.f32 %v519, %v955
        %v957 = vpop.f32.mrf.mxu0
        %v958 = vadd.f32 %v519, %v957
        %v959 = vpop.f32.mrf.mxu0
        %v960 = vadd.f32 %v524, %v959
        %v961 = vpop.f32.mrf.mxu0
        %v962 = vadd.f32 %v524, %v961
        %963 = vmatprep.mubr.bf16.mxu0 %v638
        %964 = vmatmul.mubr.bf16.gmra.mxu0 %v637
        %v965 = vpop.f32.mrf.mxu0
        %v966 = vadd.f32 %v529, %v965
        %v967 = vpop.f32.mrf.mxu0
        %v968 = vadd.f32 %v529, %v967
        %v969 = vpop.f32.mrf.mxu0
        %v970 = vadd.f32 %v534, %v969
        %v971 = vpop.f32.mrf.mxu0
        %v972 = vadd.f32 %v534, %v971
        %973 = vdwg.mxu0
        %974 = vmatprep.subr.bf16.mxu0 0
        %975 = vmatpush1.bf16.msra.mxu0 0
        %976 = vmatprep.subr.bf16.mxu0 0
        %977 = vmatpush1.bf16.msra.mxu0 0
        %978 = vmatprep.subr.bf16.mxu0 0
        %979 = vmatpush1.bf16.msra.mxu0 0
        %980 = vmatprep.subr.bf16.mxu0 0
        %981 = vmatpush1.bf16.msra.mxu0 0
        %982 = vmatprep.subr.bf16.mxu0 0
        %983 = vmatpush1.bf16.msra.mxu0 0
        %984 = vmatprep.subr.bf16.mxu0 0
        %985 = vmatpush1.bf16.msra.mxu0 0
        %986 = vmatprep.subr.bf16.mxu0 %v799
        %987 = vmatpush1.bf16.msra.mxu0 %v798
        %988 = vmatprep.subr.bf16.mxu0 %v797
        %989 = vmatpush1.bf16.msra.mxu0 %v796
        %990 = vmatprep.subr.bf16.mxu0 0
        %991 = vmatpush2.bf16.msra.mxu0 0
        %992 = vmatprep.subr.bf16.mxu0 0
        %993 = vmatpush2.bf16.msra.mxu0 0
        %994 = vmatprep.subr.bf16.mxu0 0
        %995 = vmatpush2.bf16.msra.mxu0 0
        %996 = vmatprep.subr.bf16.mxu0 0
        %997 = vmatpush2.bf16.msra.mxu0 0
        %998 = vmatprep.subr.bf16.mxu0 0
        %999 = vmatpush2.bf16.msra.mxu0 0
        %1000 = vmatprep.subr.bf16.mxu0 0
        %1001 = vmatpush2.bf16.msra.mxu0 0
        %1002 = vmatprep.subr.bf16.mxu0 0
        %1003 = vmatpush2.bf16.msra.mxu0 0
        %1004 = vmatprep.subr.bf16.mxu0 0
        %1005 = vmatpush2.bf16.msra.mxu0 0
        %1006 = vmatprep.mubr.bf16.mxu0 0
        %1007 = vmatmul.mubr.bf16.gmra.mxu0 %v838
        %v1008 = vpop.f32.mrf.mxu0
        %v1009 = vadd.f32 %v896, %v1008
        %v1010 = vpop.f32.mrf.mxu0
        %v1011 = vadd.f32 %v898, %v1010
        %v1012 = vpop.f32.mrf.mxu0
        %v1013 = vadd.f32 %v900, %v1012
        %v1014 = vpop.f32.mrf.mxu0
        %v1015 = vadd.f32 %v902, %v1014
        %1016 = vmatprep.mubr.bf16.mxu0 0
        %1017 = vmatmul.mubr.bf16.gmra.mxu0 %v841
        %v1018 = vpop.f32.mrf.mxu0
        %v1019 = vadd.f32 %v906, %v1018
        %v1020 = vpop.f32.mrf.mxu0
        %v1021 = vadd.f32 %v908, %v1020
        %v1022 = vpop.f32.mrf.mxu0
        %v1023 = vadd.f32 %v910, %v1022
        %v1024 = vpop.f32.mrf.mxu0
        %v1025 = vadd.f32 %v912, %v1024
        %1026 = vmatprep.mubr.bf16.mxu0 0
        %1027 = vmatmul.mubr.bf16.gmra.mxu0 %v844
        %v1028 = vpop.f32.mrf.mxu0
        %v1029 = vadd.f32 %v916, %v1028
        %v1030 = vpop.f32.mrf.mxu0
        %v1031 = vadd.f32 %v918, %v1030
        %v1032 = vpop.f32.mrf.mxu0
        %v1033 = vadd.f32 %v920, %v1032
        %v1034 = vpop.f32.mrf.mxu0
        %v1035 = vadd.f32 %v922, %v1034
        %1036 = vmatprep.mubr.bf16.mxu0 0
        %1037 = vmatmul.mubr.bf16.gmra.mxu0 %v847
        %v1038 = vpop.f32.mrf.mxu0
        %v1039 = vadd.f32 %v926, %v1038
        %v1040 = vpop.f32.mrf.mxu0
        %v1041 = vadd.f32 %v928, %v1040
        %v1042 = vpop.f32.mrf.mxu0
        %v1043 = vadd.f32 %v930, %v1042
        %v1044 = vpop.f32.mrf.mxu0
        %v1045 = vadd.f32 %v932, %v1044
        %1046 = vmatprep.mubr.bf16.mxu0 0
        %1047 = vmatmul.mubr.bf16.gmra.mxu0 %v850
        %v1048 = vpop.f32.mrf.mxu0
        %v1049 = vadd.f32 %v936, %v1048
        %v1050 = vpop.f32.mrf.mxu0
        %v1051 = vadd.f32 %v938, %v1050
        %v1052 = vpop.f32.mrf.mxu0
        %v1053 = vadd.f32 %v940, %v1052
        %v1054 = vpop.f32.mrf.mxu0
        %v1055 = vadd.f32 %v942, %v1054
        %1056 = vmatprep.mubr.bf16.mxu0 0
        %1057 = vmatmul.mubr.bf16.gmra.mxu0 %v853
        %v1058 = vpop.f32.mrf.mxu0
        %v1059 = vadd.f32 %v946, %v1058
        %v1060 = vpop.f32.mrf.mxu0
        %v1061 = vadd.f32 %v948, %v1060
        %v1062 = vpop.f32.mrf.mxu0
        %v1063 = vadd.f32 %v950, %v1062
        %v1064 = vpop.f32.mrf.mxu0
        %v1065 = vadd.f32 %v952, %v1064
        %1066 = vmatprep.mubr.bf16.mxu0 0
        %1067 = vmatmul.mubr.bf16.gmra.mxu0 %v856
        %v1068 = vpop.f32.mrf.mxu0
        %v1069 = vadd.f32 %v956, %v1068
        %v1070 = vpop.f32.mrf.mxu0
        %v1071 = vadd.f32 %v958, %v1070
        %v1072 = vpop.f32.mrf.mxu0
        %v1073 = vadd.f32 %v960, %v1072
        %v1074 = vpop.f32.mrf.mxu0
        %v1075 = vadd.f32 %v962, %v1074
        %1076 = vmatprep.mubr.bf16.mxu0 0
        %1077 = vmatmul.mubr.bf16.gmra.mxu0 %v859
        %v1078 = vpop.f32.mrf.mxu0
        %v1079 = vadd.f32 %v966, %v1078
        %v1080 = vpop.f32.mrf.mxu0
        %v1081 = vadd.f32 %v968, %v1080
        %v1082 = vpop.f32.mrf.mxu0
        %v1083 = vadd.f32 %v970, %v1082
        %v1084 = vpop.f32.mrf.mxu0
        %v1085 = vadd.f32 %v972, %v1084
        %1086 = vdwg.mxu0
        %s1087 = sld [smem:[#allocation2]]
        %vm1088 = vcmp.ge.f32.partialorder %v1009, 0.0
        %vm1089 = vcmp.ge.f32.partialorder %v1011, 0.0
        %vm1090 = vcmp.ge.f32.partialorder %v1013, 0.0
        %vm1091 = vcmp.ge.f32.partialorder %v1015, 0.0
        %vm1092 = vcmp.ge.f32.partialorder %v1019, 0.0
        %vm1093 = vcmp.ge.f32.partialorder %v1021, 0.0
        %vm1094 = vcmp.ge.f32.partialorder %v1023, 0.0
        %vm1095 = vcmp.ge.f32.partialorder %v1025, 0.0
        %vm1096 = vcmp.ge.f32.partialorder %v1029, 0.0
        %vm1097 = vcmp.ge.f32.partialorder %v1031, 0.0
        %vm1098 = vcmp.ge.f32.partialorder %v1033, 0.0
        %vm1099 = vcmp.ge.f32.partialorder %v1035, 0.0
        %vm1100 = vcmp.ge.f32.partialorder %v1039, 0.0
        %vm1101 = vcmp.ge.f32.partialorder %v1041, 0.0
        %vm1102 = vcmp.ge.f32.partialorder %v1043, 0.0
        %vm1103 = vcmp.ge.f32.partialorder %v1045, 0.0
        %vm1104 = vcmp.ge.f32.partialorder %v1049, 0.0
        %vm1105 = vcmp.ge.f32.partialorder %v1051, 0.0
        %vm1106 = vcmp.ge.f32.partialorder %v1053, 0.0
        %vm1107 = vcmp.ge.f32.partialorder %v1055, 0.0
        %vm1108 = vcmp.ge.f32.partialorder %v1059, 0.0
        %vm1109 = vcmp.ge.f32.partialorder %v1061, 0.0
        %vm1110 = vcmp.ge.f32.partialorder %v1063, 0.0
        %vm1111 = vcmp.ge.f32.partialorder %v1065, 0.0
        %vm1112 = vcmp.ge.f32.partialorder %v1069, 0.0
        %vm1113 = vcmp.ge.f32.partialorder %v1071, 0.0
        %vm1114 = vcmp.ge.f32.partialorder %v1073, 0.0
        %vm1115 = vcmp.ge.f32.partialorder %v1075, 0.0
        %vm1116 = vcmp.ge.f32.partialorder %v1079, 0.0
        %vm1117 = vcmp.ge.f32.partialorder %v1081, 0.0
        %vm1118 = vcmp.ge.f32.partialorder %v1083, 0.0
        %vm1119 = vcmp.ge.f32.partialorder %v1085, 0.0
        %v1120 = vstv %s1087
        %v1121 = vmul.f32 %v1120, %v1009
        %v1122 = vmul.f32 %v1120, %v1011
        %v1123 = vmul.f32 %v1120, %v1013
        %v1124 = vmul.f32 %v1120, %v1015
        %v1125 = vmul.f32 %v1120, %v1019
        %v1126 = vmul.f32 %v1120, %v1021
        %v1127 = vmul.f32 %v1120, %v1023
        %v1128 = vmul.f32 %v1120, %v1025
        %v1129 = vmul.f32 %v1120, %v1029
        %v1130 = vmul.f32 %v1120, %v1031
        %v1131 = vmul.f32 %v1120, %v1033
        %v1132 = vmul.f32 %v1120, %v1035
        %v1133 = vmul.f32 %v1120, %v1039
        %v1134 = vmul.f32 %v1120, %v1041
        %v1135 = vmul.f32 %v1120, %v1043
        %v1136 = vmul.f32 %v1120, %v1045
        %v1137 = vmul.f32 %v1120, %v1049
        %v1138 = vmul.f32 %v1120, %v1051
        %v1139 = vmul.f32 %v1120, %v1053
        %v1140 = vmul.f32 %v1120, %v1055
        %v1141 = vmul.f32 %v1120, %v1059
        %v1142 = vmul.f32 %v1120, %v1061
        %v1143 = vmul.f32 %v1120, %v1063
        %v1144 = vmul.f32 %v1120, %v1065
        %v1145 = vmul.f32 %v1120, %v1069
        %v1146 = vmul.f32 %v1120, %v1071
        %v1147 = vmul.f32 %v1120, %v1073
        %v1148 = vmul.f32 %v1120, %v1075
        %v1149 = vmul.f32 %v1120, %v1079
        %v1150 = vmul.f32 %v1120, %v1081
        %v1151 = vmul.f32 %v1120, %v1083
        %v1152 = vmul.f32 %v1120, %v1085
        %v1153 = vsel %vm1088, %v1009, %v1121
        %v1154 = vsel %vm1089, %v1011, %v1122
        %v1155 = vsel %vm1090, %v1013, %v1123
        %v1156 = vsel %vm1091, %v1015, %v1124
        %v1157 = vsel %vm1092, %v1019, %v1125
        %v1158 = vsel %vm1093, %v1021, %v1126
        %v1159 = vsel %vm1094, %v1023, %v1127
        %v1160 = vsel %vm1095, %v1025, %v1128
        %v1161 = vsel %vm1096, %v1029, %v1129
        %v1162 = vsel %vm1097, %v1031, %v1130
        %v1163 = vsel %vm1098, %v1033, %v1131
        %v1164 = vsel %vm1099, %v1035, %v1132
        %v1165 = vsel %vm1100, %v1039, %v1133
        %v1166 = vsel %vm1101, %v1041, %v1134
        %v1167 = vsel %vm1102, %v1043, %v1135
        %v1168 = vsel %vm1103, %v1045, %v1136
        %v1169 = vsel %vm1104, %v1049, %v1137
        %v1170 = vsel %vm1105, %v1051, %v1138
        %v1171 = vsel %vm1106, %v1053, %v1139
        %v1172 = vsel %vm1107, %v1055, %v1140
        %v1173 = vsel %vm1108, %v1059, %v1141
        %v1174 = vsel %vm1109, %v1061, %v1142
        %v1175 = vsel %vm1110, %v1063, %v1143
        %v1176 = vsel %vm1111, %v1065, %v1144
        %v1177 = vsel %vm1112, %v1069, %v1145
        %v1178 = vsel %vm1113, %v1071, %v1146
        %v1179 = vsel %vm1114, %v1073, %v1147
        %v1180 = vsel %vm1115, %v1075, %v1148
        %v1181 = vsel %vm1116, %v1079, %v1149
        %v1182 = vsel %vm1117, %v1081, %v1150
        %v1183 = vsel %vm1118, %v1083, %v1151
        %v1184 = vsel %vm1119, %v1085, %v1152
        %v1185 = vpack.c.bf16 %v1155, %v1153
        %v1186 = vpack.c.bf16 %v1156, %v1154
        %v1187 = vpack.c.bf16 %v1159, %v1157
        %v1188 = vpack.c.bf16 %v1160, %v1158
        %v1189 = vpack.c.bf16 %v1163, %v1161
        %v1190 = vpack.c.bf16 %v1164, %v1162
        %v1191 = vpack.c.bf16 %v1167, %v1165
        %v1192 = vpack.c.bf16 %v1168, %v1166
        %v1193 = vpack.c.bf16 %v1171, %v1169
        %v1194 = vpack.c.bf16 %v1172, %v1170
        %v1195 = vpack.c.bf16 %v1175, %v1173
        %v1196 = vpack.c.bf16 %v1176, %v1174
        %v1197 = vpack.c.bf16 %v1179, %v1177
        %v1198 = vpack.c.bf16 %v1180, %v1178
        %v1199 = vpack.c.bf16 %v1183, %v1181
        %v1200 = vpack.c.bf16 %v1184, %v1182
        %v1217 = vunpack.c.l.b16 %v1185
        %v1218 = vunpack.c.l.b16 %v1186
        %v1219 = vunpack.c.h.b16 %v1185
        %v1220 = vunpack.c.h.b16 %v1186
        %v1221 = vunpack.c.l.b16 %v1187
        %v1222 = vunpack.c.l.b16 %v1188
        %v1223 = vunpack.c.h.b16 %v1187
        %v1224 = vunpack.c.h.b16 %v1188
        %v1225 = vunpack.c.l.b16 %v1189
        %v1226 = vunpack.c.l.b16 %v1190
        %v1227 = vunpack.c.h.b16 %v1189
        %v1228 = vunpack.c.h.b16 %v1190
        %v1229 = vunpack.c.l.b16 %v1191
        %v1230 = vunpack.c.l.b16 %v1192
        %v1231 = vunpack.c.h.b16 %v1191
        %v1232 = vunpack.c.h.b16 %v1192
        %v1233 = vunpack.c.l.b16 %v1193
        %v1234 = vunpack.c.l.b16 %v1194
        %v1235 = vunpack.c.h.b16 %v1193
        %v1236 = vunpack.c.h.b16 %v1194
        %v1237 = vunpack.c.l.b16 %v1195
        %v1238 = vunpack.c.l.b16 %v1196
        %v1239 = vunpack.c.h.b16 %v1195
        %v1240 = vunpack.c.h.b16 %v1196
        %v1241 = vunpack.c.l.b16 %v1197
        %v1242 = vunpack.c.l.b16 %v1198
        %v1243 = vunpack.c.h.b16 %v1197
        %v1244 = vunpack.c.h.b16 %v1198
        %v1245 = vunpack.c.l.b16 %v1199
        %v1246 = vunpack.c.l.b16 %v1200
        %v1247 = vunpack.c.h.b16 %v1199
        %v1248 = vunpack.c.h.b16 %v1200
        %v1249 = vpack.c.b16 %v1218, %v1217
        %v1250 = vpack.c.b16 %v1220, %v1219
        %v1251 = vpack.c.b16 %v1222, %v1221
        %v1252 = vpack.c.b16 %v1224, %v1223
        %v1253 = vpack.c.b16 %v1226, %v1225
        %v1254 = vpack.c.b16 %v1228, %v1227
        %v1255 = vpack.c.b16 %v1230, %v1229
        %v1256 = vpack.c.b16 %v1232, %v1231
        %v1257 = vpack.c.b16 %v1234, %v1233
        %v1258 = vpack.c.b16 %v1236, %v1235
        %v1259 = vpack.c.b16 %v1238, %v1237
        %v1260 = vpack.c.b16 %v1240, %v1239
        %v1261 = vpack.c.b16 %v1242, %v1241
        %v1262 = vpack.c.b16 %v1244, %v1243
        %v1263 = vpack.c.b16 %v1246, %v1245
        %v1264 = vpack.c.b16 %v1248, %v1247
        %1281 = vst [vmem:[%s368] sm:$0xff] %v1249
        %1282 = vst [vmem:[%s368 + $0x8] sm:$0xff] %v1250
        %1283 = vst [vmem:[%s368 + $0x10] sm:$0xff] %v1251
        %1284 = vst [vmem:[%s368 + $0x18] sm:$0xff] %v1252
        %1285 = vst [vmem:[%s368 + $0x20] sm:$0xff] %v1253
        %1286 = vst [vmem:[%s368 + $0x28] sm:$0xff] %v1254
        %1287 = vst [vmem:[%s368 + $0x30] sm:$0xff] %v1255
        %1288 = vst [vmem:[%s368 + $0x38] sm:$0xff] %v1256
        %1289 = vst [vmem:[%s368 + $0x40] sm:$0xff] %v1257
        %1290 = vst [vmem:[%s368 + $0x48] sm:$0xff] %v1258
        %1291 = vst [vmem:[%s368 + $0x50] sm:$0xff] %v1259
        %1292 = vst [vmem:[%s368 + $0x58] sm:$0xff] %v1260
        %1293 = vst [vmem:[%s368 + $0x60] sm:$0xff] %v1261
        %1294 = vst [vmem:[%s368 + $0x68] sm:$0xff] %v1262
        %1295 = vst [vmem:[%s368 + $0x70] sm:$0xff] %v1263
        %1296 = vst [vmem:[%s368 + $0x78] sm:$0xff] %v1264
        %s1297 = sand.u32 %s113, 1
        %s1298 = sand.u32 %s113, 1
        %s1299 = smul.addr %s1298, 128
        %s1300 = scalar_lea.vmem [#allocation4], %s1299
        // Predicated region
        $region75: #{closed_call.54} parent=69 // pred_check
          %p1301 = pneg %p123
        $region76: #{closed_call.54} parent=69 // pred_check_branch
          %1303 = sbr.rel (%p1301) target = $region78
        $region77: #{closed_call.54} parent=69 // pred_region
          %s1304 = smul.u32 2, %s16
          %s1305 = smul.addr %s1304, 4
          %s1306 = scalar_lea.vmem %s4, %s1305
          // Predicated region
          $region79: #{closed_call.54} parent=77 // pred_check
            _
          $region80: #{closed_call.54} parent=77 // pred_check_branch
            %1308 = sbr.rel (0) target = $region82
          $region81: #{closed_call.54} parent=77 // pred_region
            // Predicated region
            $region83: #{closed_call.54} parent=81 // pred_check
              _
            $region84: #{closed_call.54} parent=81 // pred_check_branch
              %1310 = sbr.rel (0) target = $region86
            $region85: #{closed_call.54} parent=81 // pred_region
              // Predicated region
              $region98: #{closed_call.54} parent=85 // pred_check
                _
              $region99: #{closed_call.54} parent=85 // pred_check_branch
                %1356 = sbr.rel (0) target = $region101
              $region100: #{closed_call.54} parent=85 // pred_region
                loop: start=0, step=1, limit=1
                $region102: #{closed_call.54} parent=100 // loop_pre_header
                  _
                $region103: #{closed_call.54} parent=100 // loop_header
                  %s1358 = sphi 0, %s1362
                  %p1359 = scmp.ge.s32.totalorder %s1358, 1
                  %s1363 = sphi %s1300, %s1300
                  %s1364 = sphi %s1306, %s1306
                $region104: #{closed_call.54} parent=100 // loop_header_branch
                  %1361 = sbr.rel (%p1359) target = $region108
                $region105: #{closed_call.54} parent=100 // loop_body
                  %v1365 = vld [vmem:[%s1363] sm:$0xff]
                  %1366 = vst [vmem:[%s1364] sm:$0xff] %v1365
                  %v1367 = vld [vmem:[%s1363 + $0x8] sm:$0xff]
                  %1368 = vst [vmem:[%s1364 + $0x10] sm:$0xff] %v1367
                  %v1369 = vld [vmem:[%s1363 + $0x10] sm:$0xff]
                  %1370 = vst [vmem:[%s1364 + $0x20] sm:$0xff] %v1369
                  %v1371 = vld [vmem:[%s1363 + $0x18] sm:$0xff]
                  %1372 = vst [vmem:[%s1364 + $0x30] sm:$0xff] %v1371
                  %v1373 = vld [vmem:[%s1363 + $0x20] sm:$0xff]
                  %1374 = vst [vmem:[%s1364 + $0x40] sm:$0xff] %v1373
                  %v1375 = vld [vmem:[%s1363 + $0x28] sm:$0xff]
                  %1376 = vst [vmem:[%s1364 + $0x50] sm:$0xff] %v1375
                  %v1377 = vld [vmem:[%s1363 + $0x30] sm:$0xff]
                  %1378 = vst [vmem:[%s1364 + $0x60] sm:$0xff] %v1377
                  %v1379 = vld [vmem:[%s1363 + $0x38] sm:$0xff]
                  %1380 = vst [vmem:[%s1364 + $0x70] sm:$0xff] %v1379
                  %v1381 = vld [vmem:[%s1363 + $0x40] sm:$0xff]
                  %1382 = vst [vmem:[%s1364 + $0x80] sm:$0xff] %v1381
                  %v1383 = vld [vmem:[%s1363 + $0x48] sm:$0xff]
                  %1384 = vst [vmem:[%s1364 + $0x90] sm:$0xff] %v1383
                  %v1385 = vld [vmem:[%s1363 + $0x50] sm:$0xff]
                  %1386 = vst [vmem:[%s1364 + $0xa0] sm:$0xff] %v1385
                  %v1387 = vld [vmem:[%s1363 + $0x58] sm:$0xff]
                  %1388 = vst [vmem:[%s1364 + $0xb0] sm:$0xff] %v1387
                  %v1389 = vld [vmem:[%s1363 + $0x60] sm:$0xff]
                  %1390 = vst [vmem:[%s1364 + $0xc0] sm:$0xff] %v1389
                  %v1391 = vld [vmem:[%s1363 + $0x68] sm:$0xff]
                  %1392 = vst [vmem:[%s1364 + $0xd0] sm:$0xff] %v1391
                  %v1393 = vld [vmem:[%s1363 + $0x70] sm:$0xff]
                  %1394 = vst [vmem:[%s1364 + $0xe0] sm:$0xff] %v1393
                  %v1395 = vld [vmem:[%s1363 + $0x78] sm:$0xff]
                  %1396 = vst [vmem:[%s1364 + $0xf0] sm:$0xff] %v1395
                $region106: #{closed_call.54} parent=100 // loop_footer
                  %s1362 = sadd.s32 1, %s1358
                $region107: #{closed_call.54} parent=100 // loop_footer_branch
                  %1357 = sbr.rel target = $region103
                $region108: #{closed_call.54} parent=100 // loop_exit
                  _
              $region101: #{closed_call.54} parent=85 // pred_fallthru
                _
              // Predicated region
              $region109: #{closed_call.54} parent=85 // pred_check
                _
              $region110: #{closed_call.54} parent=85 // pred_check_branch
                %1398 = sbr.rel target = $region112
              $region111: #{closed_call.54} parent=85 // pred_region
                _
              $region112: #{closed_call.54} parent=85 // pred_fallthru
                _
            $region86: #{closed_call.54} parent=81 // pred_fallthru
              _
            // Predicated region
            $region87: #{closed_call.54} parent=81 // pred_check
              _
            $region88: #{closed_call.54} parent=81 // pred_check_branch
              %1312 = sbr.rel target = $region90
            $region89: #{closed_call.54} parent=81 // pred_region
              %s1314 = ssub.s32 256, 1
              loop: start=0, step=1, limit=1
              $region91: #{closed_call.54} parent=89 // loop_pre_header
                _
              $region92: #{closed_call.54} parent=89 // loop_header
                %s1316 = sphi 0, %s1320
                %p1317 = scmp.ge.s32.totalorder %s1316, 1
                %s1321 = sphi %s1300, %s1300
                %s1322 = sphi %s1306, %s1306
              $region93: #{closed_call.54} parent=89 // loop_header_branch
                %1319 = sbr.rel (%p1317) target = $region97
              $region94: #{closed_call.54} parent=89 // loop_body
                %v1323 = vld [vmem:[%s1321] sm:%s1314]
                %1324 = vst [vmem:[%s1322] sm:%s1314] %v1323
                %v1325 = vld [vmem:[%s1321 + $0x8] sm:%s1314]
                %1326 = vst [vmem:[%s1322 + $0x10] sm:%s1314] %v1325
                %v1327 = vld [vmem:[%s1321 + $0x10] sm:%s1314]
                %1328 = vst [vmem:[%s1322 + $0x20] sm:%s1314] %v1327
                %v1329 = vld [vmem:[%s1321 + $0x18] sm:%s1314]
                %1330 = vst [vmem:[%s1322 + $0x30] sm:%s1314] %v1329
                %v1331 = vld [vmem:[%s1321 + $0x20] sm:%s1314]
                %1332 = vst [vmem:[%s1322 + $0x40] sm:%s1314] %v1331
                %v1333 = vld [vmem:[%s1321 + $0x28] sm:%s1314]
                %1334 = vst [vmem:[%s1322 + $0x50] sm:%s1314] %v1333
                %v1335 = vld [vmem:[%s1321 + $0x30] sm:%s1314]
                %1336 = vst [vmem:[%s1322 + $0x60] sm:%s1314] %v1335
                %v1337 = vld [vmem:[%s1321 + $0x38] sm:%s1314]
                %1338 = vst [vmem:[%s1322 + $0x70] sm:%s1314] %v1337
                %v1339 = vld [vmem:[%s1321 + $0x40] sm:%s1314]
                %1340 = vst [vmem:[%s1322 + $0x80] sm:%s1314] %v1339
                %v1341 = vld [vmem:[%s1321 + $0x48] sm:%s1314]
                %1342 = vst [vmem:[%s1322 + $0x90] sm:%s1314] %v1341
                %v1343 = vld [vmem:[%s1321 + $0x50] sm:%s1314]
                %1344 = vst [vmem:[%s1322 + $0xa0] sm:%s1314] %v1343
                %v1345 = vld [vmem:[%s1321 + $0x58] sm:%s1314]
                %1346 = vst [vmem:[%s1322 + $0xb0] sm:%s1314] %v1345
                %v1347 = vld [vmem:[%s1321 + $0x60] sm:%s1314]
                %1348 = vst [vmem:[%s1322 + $0xc0] sm:%s1314] %v1347
                %v1349 = vld [vmem:[%s1321 + $0x68] sm:%s1314]
                %1350 = vst [vmem:[%s1322 + $0xd0] sm:%s1314] %v1349
                %v1351 = vld [vmem:[%s1321 + $0x70] sm:%s1314]
                %1352 = vst [vmem:[%s1322 + $0xe0] sm:%s1314] %v1351
                %v1353 = vld [vmem:[%s1321 + $0x78] sm:%s1314]
                %1354 = vst [vmem:[%s1322 + $0xf0] sm:%s1314] %v1353
              $region95: #{closed_call.54} parent=89 // loop_footer
                %s1320 = sadd.s32 1, %s1316
              $region96: #{closed_call.54} parent=89 // loop_footer_branch
                %1315 = sbr.rel target = $region92
              $region97: #{closed_call.54} parent=89 // loop_exit
                _
            $region90: #{closed_call.54} parent=81 // pred_fallthru
              _
          $region82: #{closed_call.54} parent=77 // pred_fallthru
            _
          %1399 = vnop
        $region78: #{closed_call.54} parent=69 // pred_fallthru
          _
      $region70: #{closed_call.54} parent=5 // pred_fallthru
        _
      %p1400 = scmp.le.s32.totalorder 2, %s11
      // Predicated region
      $region113: #{closed_call.54} parent=5 // pred_check
        %p1401 = pneg %p1400
      $region114: #{closed_call.54} parent=5 // pred_check_branch
        %1403 = sbr.rel (%p1401) target = $region116
      $region115: #{closed_call.54} parent=5 // pred_region
        %s1404 = ssub.s32 %s11, 2
        // Predicated region
        $region117: #{closed_call.54} parent=115 // pred_check
          %p1405 = pneg %p129
        $region118: #{closed_call.54} parent=115 // pred_check_branch
          %1407 = sbr.rel (%p1405) target = $region120
        $region119: #{closed_call.54} parent=115 // pred_region
          %s1408 = sand.u32 %s114, 1
          %s1409 = sand.u32 %s114, 1
          %s1410 = smul.addr %s1409, 128
          %s1411 = scalar_lea.vmem [#allocation4], %s1410
        $region120: #{closed_call.54} parent=115 // pred_fallthru
          _
      $region116: #{closed_call.54} parent=5 // pred_fallthru
        _
    $region6: #{closed_call.54} parent=1 // loop_footer
      %s15 = sadd.s32 1, %s11
    $region7: #{closed_call.54} parent=1 // loop_footer_branch
      %10 = sbr.rel target = $region3
    $region8: #{closed_call.54} parent=1 // loop_exit
      _

// kernel: rapn_forward.2
$region0: #{rapn_forward.2}
  #allocation0 [shape = 'u32[]', space=smem, size = 0x4, offset = 0x4, fixed_abs, tag = 'smem constant byte address 0x4 - core index']
  #allocation1 [shape = 'u32[144,128]{1,0:T(1,128)}', space=vmem, size = 0x12000, scoped, tag = 'internal scratch']
  %s0 = inlined_call_operand.vmem [shape: bf16[64,96], index: 0, kind: input, shape index: {}]
  %s1 = inlined_call_operand.vmem [shape: bf16[96,2048], index: 1, kind: input, shape index: {}]
  %s2 = inlined_call_operand.vmem [shape: f32[64,1], index: 2, kind: input, shape index: {}]
  %s3 = inlined_call_operand.vmem [shape: f32[64,2048], index: 3, kind: output, shape index: {}]
  %s4 = sld [smem:[#allocation0]]
  $region87: #{rapn_forward.2} parent=0
    _
  %s6 = ssub.s32 1, %s4
  %s7 = scalar_select 0, %s6, %s4
  $region1: #{rapn_forward.2} parent=0
    #allocation2 [shape = 'u8[393216]{0}', space=vmem, size = 0x60000, scoped, tag = 'input window, operand 1']
    #allocation3 [shape = 'u8[524288]{0}', space=vmem, size = 0x80000, scoped, tag = 'output window, operand 0']
    loop: start=0, step=1, limit=4
    $region2: #{rapn_forward.2} parent=1 // loop_pre_header
      _
    $region3: #{rapn_forward.2} parent=1 // loop_header
      %s9 = sphi 0, %s13
      %p10 = scmp.ge.s32.totalorder %s9, 4
      %s17 = sphi 0, %s17
      %s19 = sphi 0, %s17
      %s20 = sphi 0, %s19
      %s34 = sphi 0, %s20
      %s40 = sphi 0, %s42
      %s43 = sphi 0, %s40
      %s44 = sphi 0, %s43
      %s60 = sphi 0, %s44
      %s64 = sphi 0, %s64
      %s66 = sphi 0, %s64
      %s67 = sphi 0, %s66
      %s81 = sphi 0, %s67
      %s87 = sphi 0, %s89
      %s90 = sphi 0, %s87
      %s91 = sphi 0, %s90
      %s107 = sphi 0, %s91
    $region4: #{rapn_forward.2} parent=1 // loop_header_branch
      %12 = sbr.rel (%p10) target = $region8
    $region5: #{rapn_forward.2} parent=1 // loop_body
      %s14 = ssub.s32 %s9, 1
      %s15 = ssub.s32 %s9, 2
      %s16 = sadd.s32 %s9, 1
      %s18 = sadd.s32 %s17, 1
      %p21 = scmp.eq.s32.totalorder %s9, 1
      %p22 = scmp.ne.s32.totalorder %s17, %s19
      %p23 = scmp.eq.s32.totalorder %s9, 0
      %p24 = por %p22, %p23
      %p25 = scmp.ne.s32.totalorder %s17, %s19
      %p26 = scmp.eq.s32.totalorder %s14, 1
      %p27 = por %p25, %p26
      %p28 = scmp.ne.s32.totalorder %s19, %s20
      %p29 = scmp.eq.s32.totalorder %s14, 0
      %p30 = por %p28, %p29
      %p31 = scmp.ne.s32.totalorder %s19, %s20
      %p32 = scmp.eq.s32.totalorder %s15, 1
      %p33 = por %p31, %p32
      %p35 = scmp.ne.s32.totalorder %s20, %s34
      %p36 = scmp.eq.s32.totalorder %s15, 0
      %p37 = por %p35, %p36
      %s38 = ssub.s32 %s9, %s16
      %p39 = scmp.eq.s32.totalorder %s38, 0
      %s41 = sadd.s32 %s40, 1
      %s42 = scalar_select %p39, %s40, %s41
      %p45 = pneg %p39
      %p46 = scmp.eq.s32.totalorder %s9, 1
      %p47 = por %p45, %p46
      %p48 = scmp.ne.s32.totalorder %s40, %s43
      %p49 = scmp.eq.s32.totalorder %s9, 0
      %p50 = por %p48, %p49
      %p51 = scmp.ne.s32.totalorder %s40, %s43
      %p52 = scmp.eq.s32.totalorder %s14, 1
      %p53 = por %p51, %p52
      %p54 = scmp.ne.s32.totalorder %s43, %s44
      %p55 = scmp.eq.s32.totalorder %s14, 0
      %p56 = por %p54, %p55
      %p57 = scmp.ne.s32.totalorder %s43, %s44
      %p58 = scmp.eq.s32.totalorder %s15, 1
      %p59 = por %p57, %p58
      %p61 = scmp.ne.s32.totalorder %s44, %s60
      %p62 = scmp.eq.s32.totalorder %s15, 0
      %p63 = por %p61, %p62
      %s65 = sadd.s32 %s64, 1
      %p68 = scmp.eq.s32.totalorder %s9, 1
      %p69 = scmp.ne.s32.totalorder %s64, %s66
      %p70 = scmp.eq.s32.totalorder %s9, 0
      %p71 = por %p69, %p70
      %p72 = scmp.ne.s32.totalorder %s64, %s66
      %p73 = scmp.eq.s32.totalorder %s14, 1
      %p74 = por %p72, %p73
      %p75 = scmp.ne.s32.totalorder %s66, %s67
      %p76 = scmp.eq.s32.totalorder %s14, 0
      %p77 = por %p75, %p76
      %p78 = scmp.ne.s32.totalorder %s66, %s67
      %p79 = scmp.eq.s32.totalorder %s15, 1
      %p80 = por %p78, %p79
      %p82 = scmp.ne.s32.totalorder %s67, %s81
      %p83 = scmp.eq.s32.totalorder %s15, 0
      %p84 = por %p82, %p83
      %s85 = ssub.s32 %s9, %s16
      %p86 = scmp.eq.s32.totalorder %s85, 0
      %s88 = sadd.s32 %s87, 1
      %s89 = scalar_select %p86, %s87, %s88
      %p92 = pneg %p86
      %p93 = scmp.eq.s32.totalorder %s9, 1
      %p94 = por %p92, %p93
      %p95 = scmp.ne.s32.totalorder %s87, %s90
      %p96 = scmp.eq.s32.totalorder %s9, 0
      %p97 = por %p95, %p96
      %p98 = scmp.ne.s32.totalorder %s87, %s90
      %p99 = scmp.eq.s32.totalorder %s14, 1
      %p100 = por %p98, %p99
      %p101 = scmp.ne.s32.totalorder %s90, %s91
      %p102 = scmp.eq.s32.totalorder %s14, 0
      %p103 = por %p101, %p102
      %p104 = scmp.ne.s32.totalorder %s90, %s91
      %p105 = scmp.eq.s32.totalorder %s15, 1
      %p106 = por %p104, %p105
      %p108 = scmp.ne.s32.totalorder %s91, %s107
      %p109 = scmp.eq.s32.totalorder %s15, 0
      %p110 = por %p108, %p109
      %p111 = scmp.le.s32.totalorder 1, %s9
      %p112 = scmp.lt.s32.totalorder %s9, 3
      %p113 = pnand %p111, %p112
      %p114 = pneg %p113
      // Predicated region
      $region9: #{rapn_forward.2} parent=5 // pred_check
        _
      $region10: #{rapn_forward.2} parent=5 // pred_check_branch
        %116 = sbr.rel (%p113) target = $region12
      $region11: #{rapn_forward.2} parent=5 // pred_region
        %s117 = ssub.s32 %s9, 1
        // Predicated region
        $region13: #{rapn_forward.2} parent=11 // pred_check
          %p118 = pneg %p30
        $region14: #{rapn_forward.2} parent=11 // pred_check_branch
          %120 = sbr.rel (%p118) target = $region16
        $region15: #{rapn_forward.2} parent=11 // pred_region
          _
        $region16: #{rapn_forward.2} parent=11 // pred_fallthru
          _
        // Predicated region
        $region17: #{rapn_forward.2} parent=11 // pred_check
          %p121 = pneg %p77
        $region18: #{rapn_forward.2} parent=11 // pred_check_branch
          %123 = sbr.rel (%p121) target = $region20
        $region19: #{rapn_forward.2} parent=11 // pred_region
          _
        $region20: #{rapn_forward.2} parent=11 // pred_fallthru
          _
      $region12: #{rapn_forward.2} parent=5 // pred_fallthru
        _
      %p124 = scmp.lt.s32.totalorder %s9, 2
      // Predicated region
      $region21: #{rapn_forward.2} parent=5 // pred_check
        %p125 = pneg %p124
      $region22: #{rapn_forward.2} parent=5 // pred_check_branch
        %127 = sbr.rel (%p125) target = $region24
      $region23: #{rapn_forward.2} parent=5 // pred_region
        // Predicated region
        $region25: #{rapn_forward.2} parent=23 // pred_check
          %p128 = pneg %p50
        $region26: #{rapn_forward.2} parent=23 // pred_check_branch
          %130 = sbr.rel (%p128) target = $region28
        $region27: #{rapn_forward.2} parent=23 // pred_region
          %s131 = sand.u32 %s40, 1
          %s132 = sand.u32 %s40, 1
          %s133 = smul.addr %s132, 384
          %s134 = scalar_lea.vmem [#allocation2], %s133
          %s135 = smul.u32 8, %s9
          %s136 = smul.addr %s135, 4
          %s137 = scalar_lea.vmem %s1, %s136
          // Predicated region
          $region29: #{rapn_forward.2} parent=27 // pred_check
            _
          $region30: #{rapn_forward.2} parent=27 // pred_check_branch
            %139 = sbr.rel (0) target = $region32
          $region31: #{rapn_forward.2} parent=27 // pred_region
            // Predicated region
            $region33: #{rapn_forward.2} parent=31 // pred_check
              _
            $region34: #{rapn_forward.2} parent=31 // pred_check_branch
              %141 = sbr.rel (0) target = $region36
            $region35: #{rapn_forward.2} parent=31 // pred_region
              loop: start=0, step=1, limit=1
              $region37: #{rapn_forward.2} parent=35 // loop_pre_header
                _
              $region38: #{rapn_forward.2} parent=35 // loop_header
                %s143 = sphi 0, %s147
                %p144 = scmp.ge.s32.totalorder %s143, 1
                %s148 = sphi %s137, %s137
                %s149 = sphi %s134, %s134
              $region39: #{rapn_forward.2} parent=35 // loop_header_branch
                %146 = sbr.rel (%p144) target = $region43
              $region40: #{rapn_forward.2} parent=35 // loop_body
                %v150 = vld [vmem:[%s148] sm:$0xff]
                %151 = vst [vmem:[%s149] sm:$0xff] %v150
                %v152 = vld [vmem:[%s148 + $0x8] sm:$0xff]
                %153 = vst [vmem:[%s149 + $0x8] sm:$0xff] %v152
                %v154 = vld [vmem:[%s148 + $0x10] sm:$0xff]
                %155 = vst [vmem:[%s149 + $0x10] sm:$0xff] %v154
                %v156 = vld [vmem:[%s148 + $0x18] sm:$0xff]
                %157 = vst [vmem:[%s149 + $0x18] sm:$0xff] %v156
                %v158 = vld [vmem:[%s148 + $0x40] sm:$0xff]
                %159 = vst [vmem:[%s149 + $0x20] sm:$0xff] %v158
                %v160 = vld [vmem:[%s148 + $0x48] sm:$0xff]
                %161 = vst [vmem:[%s149 + $0x28] sm:$0xff] %v160
                %v162 = vld [vmem:[%s148 + $0x50] sm:$0xff]
                %163 = vst [vmem:[%s149 + $0x30] sm:$0xff] %v162
                %v164 = vld [vmem:[%s148 + $0x58] sm:$0xff]
                %165 = vst [vmem:[%s149 + $0x38] sm:$0xff] %v164
                %v166 = vld [vmem:[%s148 + $0x80] sm:$0xff]
                %167 = vst [vmem:[%s149 + $0x40] sm:$0xff] %v166
                %v168 = vld [vmem:[%s148 + $0x88] sm:$0xff]
                %169 = vst [vmem:[%s149 + $0x48] sm:$0xff] %v168
                %v170 = vld [vmem:[%s148 + $0x90] sm:$0xff]
                %171 = vst [vmem:[%s149 + $0x50] sm:$0xff] %v170
                %v172 = vld [vmem:[%s148 + $0x98] sm:$0xff]
                %173 = vst [vmem:[%s149 + $0x58] sm:$0xff] %v172
                %v174 = vld [vmem:[%s148 + $0xc0] sm:$0xff]
                %175 = vst [vmem:[%s149 + $0x60] sm:$0xff] %v174
                %v176 = vld [vmem:[%s148 + $0xc8] sm:$0xff]
                %177 = vst [vmem:[%s149 + $0x68] sm:$0xff] %v176
                %v178 = vld [vmem:[%s148 + $0xd0] sm:$0xff]
                %179 = vst [vmem:[%s149 + $0x70] sm:$0xff] %v178
                %v180 = vld [vmem:[%s148 + $0xd8] sm:$0xff]
                %181 = vst [vmem:[%s149 + $0x78] sm:$0xff] %v180
                %v182 = vld [vmem:[%s148 + $0x100] sm:$0xff]
                %183 = vst [vmem:[%s149 + $0x80] sm:$0xff] %v182
                %v184 = vld [vmem:[%s148 + $0x108] sm:$0xff]
                %185 = vst [vmem:[%s149 + $0x88] sm:$0xff] %v184
                %v186 = vld [vmem:[%s148 + $0x110] sm:$0xff]
                %187 = vst [vmem:[%s149 + $0x90] sm:$0xff] %v186
                %v188 = vld [vmem:[%s148 + $0x118] sm:$0xff]
                %189 = vst [vmem:[%s149 + $0x98] sm:$0xff] %v188
                %v190 = vld [vmem:[%s148 + $0x140] sm:$0xff]
                %191 = vst [vmem:[%s149 + $0xa0] sm:$0xff] %v190
                %v192 = vld [vmem:[%s148 + $0x148] sm:$0xff]
                %193 = vst [vmem:[%s149 + $0xa8] sm:$0xff] %v192
                %v194 = vld [vmem:[%s148 + $0x150] sm:$0xff]
                %195 = vst [vmem:[%s149 + $0xb0] sm:$0xff] %v194
                %v196 = vld [vmem:[%s148 + $0x158] sm:$0xff]
                %197 = vst [vmem:[%s149 + $0xb8] sm:$0xff] %v196
                %v198 = vld [vmem:[%s148 + $0x180] sm:$0xff]
                %199 = vst [vmem:[%s149 + $0xc0] sm:$0xff] %v198
                %v200 = vld [vmem:[%s148 + $0x188] sm:$0xff]
                %201 = vst [vmem:[%s149 + $0xc8] sm:$0xff] %v200
                %v202 = vld [vmem:[%s148 + $0x190] sm:$0xff]
                %203 = vst [vmem:[%s149 + $0xd0] sm:$0xff] %v202
                %v204 = vld [vmem:[%s148 + $0x198] sm:$0xff]
                %205 = vst [vmem:[%s149 + $0xd8] sm:$0xff] %v204
                %v206 = vld [vmem:[%s148 + $0x1c0] sm:$0xff]
                %207 = vst [vmem:[%s149 + $0xe0] sm:$0xff] %v206
                %v208 = vld [vmem:[%s148 + $0x1c8] sm:$0xff]
                %209 = vst [vmem:[%s149 + $0xe8] sm:$0xff] %v208
                %v210 = vld [vmem:[%s148 + $0x1d0] sm:$0xff]
                %211 = vst [vmem:[%s149 + $0xf0] sm:$0xff] %v210
                %v212 = vld [vmem:[%s148 + $0x1d8] sm:$0xff]
                %213 = vst [vmem:[%s149 + $0xf8] sm:$0xff] %v212
                %v214 = vld [vmem:[%s148 + $0x200] sm:$0xff]
                %215 = vst [vmem:[%s149 + $0x100] sm:$0xff] %v214
                %v216 = vld [vmem:[%s148 + $0x208] sm:$0xff]
                %217 = vst [vmem:[%s149 + $0x108] sm:$0xff] %v216
                %v218 = vld [vmem:[%s148 + $0x210] sm:$0xff]
                %219 = vst [vmem:[%s149 + $0x110] sm:$0xff] %v218
                %v220 = vld [vmem:[%s148 + $0x218] sm:$0xff]
                %221 = vst [vmem:[%s149 + $0x118] sm:$0xff] %v220
                %v222 = vld [vmem:[%s148 + $0x240] sm:$0xff]
                %223 = vst [vmem:[%s149 + $0x120] sm:$0xff] %v222
                %v224 = vld [vmem:[%s148 + $0x248] sm:$0xff]
                %225 = vst [vmem:[%s149 + $0x128] sm:$0xff] %v224
                %v226 = vld [vmem:[%s148 + $0x250] sm:$0xff]
                %227 = vst [vmem:[%s149 + $0x130] sm:$0xff] %v226
                %v228 = vld [vmem:[%s148 + $0x258] sm:$0xff]
                %229 = vst [vmem:[%s149 + $0x138] sm:$0xff] %v228
                %v230 = vld [vmem:[%s148 + $0x280] sm:$0xff]
                %231 = vst [vmem:[%s149 + $0x140] sm:$0xff] %v230
                %v232 = vld [vmem:[%s148 + $0x288] sm:$0xff]
                %233 = vst [vmem:[%s149 + $0x148] sm:$0xff] %v232
                %v234 = vld [vmem:[%s148 + $0x290] sm:$0xff]
                %235 = vst [vmem:[%s149 + $0x150] sm:$0xff] %v234
                %v236 = vld [vmem:[%s148 + $0x298] sm:$0xff]
                %237 = vst [vmem:[%s149 + $0x158] sm:$0xff] %v236
                %v238 = vld [vmem:[%s148 + $0x2c0] sm:$0xff]
                %239 = vst [vmem:[%s149 + $0x160] sm:$0xff] %v238
                %v240 = vld [vmem:[%s148 + $0x2c8] sm:$0xff]
                %241 = vst [vmem:[%s149 + $0x168] sm:$0xff] %v240
                %v242 = vld [vmem:[%s148 + $0x2d0] sm:$0xff]
                %243 = vst [vmem:[%s149 + $0x170] sm:$0xff] %v242
                %v244 = vld [vmem:[%s148 + $0x2d8] sm:$0xff]
                %245 = vst [vmem:[%s149 + $0x178] sm:$0xff] %v244
              $region41: #{rapn_forward.2} parent=35 // loop_footer
                %s147 = sadd.s32 1, %s143
              $region42: #{rapn_forward.2} parent=35 // loop_footer_branch
                %142 = sbr.rel target = $region38
              $region43: #{rapn_forward.2} parent=35 // loop_exit
                _
            $region36: #{rapn_forward.2} parent=31 // pred_fallthru
              _
            // Predicated region
            $region44: #{rapn_forward.2} parent=31 // pred_check
              _
            $region45: #{rapn_forward.2} parent=31 // pred_check_branch
              %247 = sbr.rel target = $region47
            $region46: #{rapn_forward.2} parent=31 // pred_region
              _
            $region47: #{rapn_forward.2} parent=31 // pred_fallthru
              _
          $region32: #{rapn_forward.2} parent=27 // pred_fallthru
            _
          %248 = vnop
        $region28: #{rapn_forward.2} parent=23 // pred_fallthru
          _
      $region24: #{rapn_forward.2} parent=5 // pred_fallthru
        _
      %p249 = scmp.le.s32.totalorder 1, %s9
      %p250 = scmp.lt.s32.totalorder %s9, 3
      %p251 = pnand %p249, %p250
      %p252 = pneg %p251
      // Predicated region
      $region48: #{rapn_forward.2} parent=5 // pred_check
        _
      $region49: #{rapn_forward.2} parent=5 // pred_check_branch
        %254 = sbr.rel (%p251) target = $region51
      $region50: #{rapn_forward.2} parent=5 // pred_region
        %s255 = ssub.s32 %s9, 1
        %s256 = sand.u32 %s43, 1
        %s257 = sand.u32 %s43, 1
        %s258 = smul.addr %s257, 384
        %s259 = scalar_lea.vmem [#allocation2], %s258
        // Predicated region
        $region52: #{rapn_forward.2} parent=50 // pred_check
          %p260 = pneg %p56
        $region53: #{rapn_forward.2} parent=50 // pred_check_branch
          %262 = sbr.rel (%p260) target = $region55
        $region54: #{rapn_forward.2} parent=50 // pred_region
          _
        $region55: #{rapn_forward.2} parent=50 // pred_fallthru
          _
        %p263 = pneg %p30
        %p264 = pneg %p27
        %s265 = sand.u32 %s43, 1
        %s266 = sand.u32 %s43, 1
        %s267 = smul.addr %s266, 384
        %s268 = scalar_lea.vmem [#allocation2], %s267
        %p269 = pneg %p56
        %p270 = pneg %p53
        %p271 = pneg %p77
        %p272 = pneg %p74
        %p273 = pneg %p103
        %p274 = pneg %p100
        %s275 = sand.u32 %s90, 1
        %s276 = sand.u32 %s90, 1
        %s277 = smul.addr %s276, 512
        %s278 = scalar_lea.vmem [#allocation3], %s277
        %s279 = smul.u32 8, %s14
        %s280 = smul.u32 8, %s14
        %v282 = vld [vmem:[%s0] sm:$0xf]
        %v283 = vld [vmem:[%s0 + $0x4] sm:$0xf]
        %v284 = vld [vmem:[%s0 + $0x8] sm:$0xf]
        %v285 = vld [vmem:[%s0 + $0xc] sm:$0xf]
        %v286 = vld [vmem:[%s0 + $0x10] sm:$0xf]
        %v287 = vld [vmem:[%s0 + $0x14] sm:$0xf]
        %v288 = vld [vmem:[%s0 + $0x18] sm:$0xf]
        %v289 = vld [vmem:[%s0 + $0x1c] sm:$0xf]
        %v290 = vld [vmem:[%s259] sm:$0xff]
        %v291 = vld [vmem:[%s259 + $0x8] sm:$0xff]
        %v292 = vld [vmem:[%s259 + $0x10] sm:$0xff]
        %v293 = vld [vmem:[%s259 + $0x18] sm:$0xff]
        %v294 = vld [vmem:[%s259 + $0x20] sm:$0xff]
        %v295 = vld [vmem:[%s259 + $0x28] sm:$0xff]
        %v296 = vld [vmem:[%s259 + $0x30] sm:$0xff]
        %v297 = vld [vmem:[%s259 + $0x38] sm:$0xff]
        %v298 = vld [vmem:[%s259 + $0x40] sm:$0xff]
        %v299 = vld [vmem:[%s259 + $0x48] sm:$0xff]
        %v300 = vld [vmem:[%s259 + $0x50] sm:$0xff]
        %v301 = vld [vmem:[%s259 + $0x58] sm:$0xff]
        %v302 = vld [vmem:[%s259 + $0x60] sm:$0xff]
        %v303 = vld [vmem:[%s259 + $0x68] sm:$0xff]
        %v304 = vld [vmem:[%s259 + $0x70] sm:$0xff]
        %v305 = vld [vmem:[%s259 + $0x78] sm:$0xff]
        %v306 = vld [vmem:[%s259 + $0x80] sm:$0xff]
        %v307 = vld [vmem:[%s259 + $0x88] sm:$0xff]
        %v308 = vld [vmem:[%s259 + $0x90] sm:$0xff]
        %v309 = vld [vmem:[%s259 + $0x98] sm:$0xff]
        %v310 = vld [vmem:[%s259 + $0xa0] sm:$0xff]
        %v311 = vld [vmem:[%s259 + $0xa8] sm:$0xff]
        %v312 = vld [vmem:[%s259 + $0xb0] sm:$0xff]
        %v313 = vld [vmem:[%s259 + $0xb8] sm:$0xff]
        %v314 = vld [vmem:[%s259 + $0xc0] sm:$0xff]
        %v315 = vld [vmem:[%s259 + $0xc8] sm:$0xff]
        %v316 = vld [vmem:[%s259 + $0xd0] sm:$0xff]
        %v317 = vld [vmem:[%s259 + $0xd8] sm:$0xff]
        %v318 = vld [vmem:[%s259 + $0xe0] sm:$0xff]
        %v319 = vld [vmem:[%s259 + $0xe8] sm:$0xff]
        %v320 = vld [vmem:[%s259 + $0xf0] sm:$0xff]
        %v321 = vld [vmem:[%s259 + $0xf8] sm:$0xff]
        %v322 = vld [vmem:[%s259 + $0x100] sm:$0xff]
        %v323 = vld [vmem:[%s259 + $0x108] sm:$0xff]
        %v324 = vld [vmem:[%s259 + $0x110] sm:$0xff]
        %v325 = vld [vmem:[%s259 + $0x118] sm:$0xff]
        %v326 = vld [vmem:[%s259 + $0x120] sm:$0xff]
        %v327 = vld [vmem:[%s259 + $0x128] sm:$0xff]
        %v328 = vld [vmem:[%s259 + $0x130] sm:$0xff]
        %v329 = vld [vmem:[%s259 + $0x138] sm:$0xff]
        %v330 = vld [vmem:[%s259 + $0x140] sm:$0xff]
        %v331 = vld [vmem:[%s259 + $0x148] sm:$0xff]
        %v332 = vld [vmem:[%s259 + $0x150] sm:$0xff]
        %v333 = vld [vmem:[%s259 + $0x158] sm:$0xff]
        %v334 = vld [vmem:[%s259 + $0x160] sm:$0xff]
        %v335 = vld [vmem:[%s259 + $0x168] sm:$0xff]
        %v336 = vld [vmem:[%s259 + $0x170] sm:$0xff]
        %v337 = vld [vmem:[%s259 + $0x178] sm:$0xff]
        %v338 = vld [vmem:[%s2] sm:$0xff]
        %v339 = vld [vmem:[%s2 + $0x8] sm:$0xff]
        %v340 = vld [vmem:[%s2 + $0x10] sm:$0xff]
        %v341 = vld [vmem:[%s2 + $0x18] sm:$0xff]
        %v342 = vld [vmem:[%s2 + $0x20] sm:$0xff]
        %v343 = vld [vmem:[%s2 + $0x28] sm:$0xff]
        %v344 = vld [vmem:[%s2 + $0x30] sm:$0xff]
        %v345 = vld [vmem:[%s2 + $0x38] sm:$0xff]
        %347 = vset.pattern.permute.xlu0 0
        %348 = vperm.xlu0 %347, %v338
        %v349 = vpop.permute.xlu0 %348
        %352 = vset.pattern.permute.xlu0 0
        %353 = vperm.xlu0 %352, %v339
        %v354 = vpop.permute.xlu0 %353
        %357 = vset.pattern.permute.xlu0 0
        %358 = vperm.xlu0 %357, %v340
        %v359 = vpop.permute.xlu0 %358
        %362 = vset.pattern.permute.xlu0 0
        %363 = vperm.xlu0 %362, %v341
        %v364 = vpop.permute.xlu0 %363
        %367 = vset.pattern.permute.xlu0 0
        %368 = vperm.xlu0 %367, %v342
        %v369 = vpop.permute.xlu0 %368
        %372 = vset.pattern.permute.xlu0 0
        %373 = vperm.xlu0 %372, %v343
        %v374 = vpop.permute.xlu0 %373
        %377 = vset.pattern.permute.xlu0 0
        %378 = vperm.xlu0 %377, %v344
        %v379 = vpop.permute.xlu0 %378
        %382 = vset.pattern.permute.xlu0 0
        %383 = vperm.xlu0 %382, %v345
        %v384 = vpop.permute.xlu0 %383
        %v394 = vunpack.c.l.b16 %v282
        %v395 = vunpack.c.l.b16 %v283
        %v396 = vunpack.c.l.b16 %v284
        %v397 = vunpack.c.l.b16 %v285
        %v398 = vunpack.c.l.b16 %v286
        %v399 = vunpack.c.l.b16 %v287
        %v400 = vunpack.c.l.b16 %v288
        %v401 = vunpack.c.l.b16 %v289
        %v402 = vpack.c.b16 %v395, %v394
        %v403 = vpack.c.b16 %v397, %v396
        %v404 = vpack.c.b16 %v399, %v398
        %v405 = vpack.c.b16 %v401, %v400
        %v454 = vunpack.c.l.b16 %v290
        %v455 = vunpack.c.h.b16 %v290
        %v456 = vunpack.c.l.b16 %v291
        %v457 = vunpack.c.h.b16 %v291
        %v458 = vunpack.c.l.b16 %v292
        %v459 = vunpack.c.h.b16 %v292
        %v460 = vunpack.c.l.b16 %v293
        %v461 = vunpack.c.h.b16 %v293
        %v462 = vunpack.c.l.b16 %v294
        %v463 = vunpack.c.h.b16 %v294
        %v464 = vunpack.c.l.b16 %v295
        %v465 = vunpack.c.h.b16 %v295
        %v466 = vunpack.c.l.b16 %v296
        %v467 = vunpack.c.h.b16 %v296
        %v468 = vunpack.c.l.b16 %v297
        %v469 = vunpack.c.h.b16 %v297
        %v470 = vunpack.c.l.b16 %v298
        %v471 = vunpack.c.h.b16 %v298
        %v472 = vunpack.c.l.b16 %v299
        %v473 = vunpack.c.h.b16 %v299
        %v474 = vunpack.c.l.b16 %v300
        %v475 = vunpack.c.h.b16 %v300
        %v476 = vunpack.c.l.b16 %v301
        %v477 = vunpack.c.h.b16 %v301
        %v478 = vunpack.c.l.b16 %v302
        %v479 = vunpack.c.h.b16 %v302
        %v480 = vunpack.c.l.b16 %v303
        %v481 = vunpack.c.h.b16 %v303
        %v482 = vunpack.c.l.b16 %v304
        %v483 = vunpack.c.h.b16 %v304
        %v484 = vunpack.c.l.b16 %v305
        %v485 = vunpack.c.h.b16 %v305
        %v486 = vunpack.c.l.b16 %v306
        %v487 = vunpack.c.h.b16 %v306
        %v488 = vunpack.c.l.b16 %v307
        %v489 = vunpack.c.h.b16 %v307
        %v490 = vunpack.c.l.b16 %v308
        %v491 = vunpack.c.h.b16 %v308
        %v492 = vunpack.c.l.b16 %v309
        %v493 = vunpack.c.h.b16 %v309
        %v494 = vunpack.c.l.b16 %v310
        %v495 = vunpack.c.h.b16 %v310
        %v496 = vunpack.c.l.b16 %v311
        %v497 = vunpack.c.h.b16 %v311
        %v498 = vunpack.c.l.b16 %v312
        %v499 = vunpack.c.h.b16 %v312
        %v500 = vunpack.c.l.b16 %v313
        %v501 = vunpack.c.h.b16 %v313
        %v502 = vunpack.c.l.b16 %v314
        %v503 = vunpack.c.h.b16 %v314
        %v504 = vunpack.c.l.b16 %v315
        %v505 = vunpack.c.h.b16 %v315
        %v506 = vunpack.c.l.b16 %v316
        %v507 = vunpack.c.h.b16 %v316
        %v508 = vunpack.c.l.b16 %v317
        %v509 = vunpack.c.h.b16 %v317
        %v510 = vunpack.c.l.b16 %v318
        %v511 = vunpack.c.h.b16 %v318
        %v512 = vunpack.c.l.b16 %v319
        %v513 = vunpack.c.h.b16 %v319
        %v514 = vunpack.c.l.b16 %v320
        %v515 = vunpack.c.h.b16 %v320
        %v516 = vunpack.c.l.b16 %v321
        %v517 = vunpack.c.h.b16 %v321
        %v518 = vunpack.c.l.b16 %v322
        %v519 = vunpack.c.h.b16 %v322
        %v520 = vunpack.c.l.b16 %v323
        %v521 = vunpack.c.h.b16 %v323
        %v522 = vunpack.c.l.b16 %v324
        %v523 = vunpack.c.h.b16 %v324
        %v524 = vunpack.c.l.b16 %v325
        %v525 = vunpack.c.h.b16 %v325
        %v526 = vunpack.c.l.b16 %v326
        %v527 = vunpack.c.h.b16 %v326
        %v528 = vunpack.c.l.b16 %v327
        %v529 = vunpack.c.h.b16 %v327
        %v530 = vunpack.c.l.b16 %v328
        %v531 = vunpack.c.h.b16 %v328
        %v532 = vunpack.c.l.b16 %v329
        %v533 = vunpack.c.h.b16 %v329
        %v534 = vunpack.c.l.b16 %v330
        %v535 = vunpack.c.h.b16 %v330
        %v536 = vunpack.c.l.b16 %v331
        %v537 = vunpack.c.h.b16 %v331
        %v538 = vunpack.c.l.b16 %v332
        %v539 = vunpack.c.h.b16 %v332
        %v540 = vunpack.c.l.b16 %v333
        %v541 = vunpack.c.h.b16 %v333
        %v542 = vunpack.c.l.b16 %v334
        %v543 = vunpack.c.h.b16 %v334
        %v544 = vunpack.c.l.b16 %v335
        %v545 = vunpack.c.h.b16 %v335
        %v546 = vunpack.c.l.b16 %v336
        %v547 = vunpack.c.h.b16 %v336
        %v548 = vunpack.c.l.b16 %v337
        %v549 = vunpack.c.h.b16 %v337
        %v550 = vpack.c.b16 %v462, %v454
        %v551 = vpack.c.b16 %v463, %v455
        %v552 = vpack.c.b16 %v464, %v456
        %v553 = vpack.c.b16 %v465, %v457
        %v554 = vpack.c.b16 %v466, %v458
        %v555 = vpack.c.b16 %v467, %v459
        %v556 = vpack.c.b16 %v468, %v460
        %v557 = vpack.c.b16 %v469, %v461
        %v558 = vpack.c.b16 %v478, %v470
        %v559 = vpack.c.b16 %v479, %v471
        %v560 = vpack.c.b16 %v480, %v472
        %v561 = vpack.c.b16 %v481, %v473
        %v562 = vpack.c.b16 %v482, %v474
        %v563 = vpack.c.b16 %v483, %v475
        %v564 = vpack.c.b16 %v484, %v476
        %v565 = vpack.c.b16 %v485, %v477
        %v566 = vpack.c.b16 %v494, %v486
        %v567 = vpack.c.b16 %v495, %v487
        %v568 = vpack.c.b16 %v496, %v488
        %v569 = vpack.c.b16 %v497, %v489
        %v570 = vpack.c.b16 %v498, %v490
        %v571 = vpack.c.b16 %v499, %v491
        %v572 = vpack.c.b16 %v500, %v492
        %v573 = vpack.c.b16 %v501, %v493
        %v574 = vpack.c.b16 %v510, %v502
        %v575 = vpack.c.b16 %v511, %v503
        %v576 = vpack.c.b16 %v512, %v504
        %v577 = vpack.c.b16 %v513, %v505
        %v578 = vpack.c.b16 %v514, %v506
        %v579 = vpack.c.b16 %v515, %v507
        %v580 = vpack.c.b16 %v516, %v508
        %v581 = vpack.c.b16 %v517, %v509
        %v582 = vpack.c.b16 %v526, %v518
        %v583 = vpack.c.b16 %v527, %v519
        %v584 = vpack.c.b16 %v528, %v520
        %v585 = vpack.c.b16 %v529, %v521
        %v586 = vpack.c.b16 %v530, %v522
        %v587 = vpack.c.b16 %v531, %v523
        %v588 = vpack.c.b16 %v532, %v524
        %v589 = vpack.c.b16 %v533, %v525
        %v590 = vpack.c.b16 %v542, %v534
        %v591 = vpack.c.b16 %v543, %v535
        %v592 = vpack.c.b16 %v544, %v536
        %v593 = vpack.c.b16 %v545, %v537
        %v594 = vpack.c.b16 %v546, %v538
        %v595 = vpack.c.b16 %v547, %v539
        %v596 = vpack.c.b16 %v548, %v540
        %v597 = vpack.c.b16 %v549, %v541
        %vm646 = vcmask 785408
        %v648 = vsel %vm646, %v402, 0
        %v651 = vsel %vm646, %v403, 0
        %v654 = vsel %vm646, %v404, 0
        %v657 = vsel %vm646, %v405, 0
        %659 = vmatprep.subr.bf16.mxu0 0
        %660 = vmatpush1.bf16.msra.mxu0 0
        %661 = vmatprep.subr.bf16.mxu0 0
        %662 = vmatpush1.bf16.msra.mxu0 0
        %663 = vmatprep.subr.bf16.mxu0 %v591
        %664 = vmatpush1.bf16.msra.mxu0 %v590
        %665 = vmatprep.subr.bf16.mxu0 %v583
        %666 = vmatpush1.bf16.msra.mxu0 %v582
        %667 = vmatprep.subr.bf16.mxu0 %v575
        %668 = vmatpush1.bf16.msra.mxu0 %v574
        %669 = vmatprep.subr.bf16.mxu0 %v567
        %670 = vmatpush1.bf16.msra.mxu0 %v566
        %671 = vmatprep.subr.bf16.mxu0 %v559
        %672 = vmatpush1.bf16.msra.mxu0 %v558
        %673 = vmatprep.subr.bf16.mxu0 %v551
        %674 = vmatpush1.bf16.msra.mxu0 %v550
        %675 = vmatprep.subr.bf16.mxu0 0
        %676 = vmatpush2.bf16.msra.mxu0 0
        %677 = vmatprep.subr.bf16.mxu0 0
        %678 = vmatpush2.bf16.msra.mxu0 0
        %679 = vmatprep.subr.bf16.mxu0 0
        %680 = vmatpush2.bf16.msra.mxu0 0
        %681 = vmatprep.subr.bf16.mxu0 0
        %682 = vmatpush2.bf16.msra.mxu0 0
        %683 = vmatprep.subr.bf16.mxu0 0
        %684 = vmatpush2.bf16.msra.mxu0 0
        %685 = vmatprep.subr.bf16.mxu0 0
        %686 = vmatpush2.bf16.msra.mxu0 0
        %687 = vmatprep.subr.bf16.mxu0 0
        %688 = vmatpush2.bf16.msra.mxu0 0
        %689 = vmatprep.subr.bf16.mxu0 0
        %690 = vmatpush2.bf16.msra.mxu0 0
        %691 = vmatprep.mubr.bf16.mxu0 0
        %692 = vmatmul.mubr.bf16.gmra.mxu0 %v648
        %v693 = vpop.f32.mrf.mxu0
        %v694 = vadd.f32 %v349, %v693
        %v695 = vpop.f32.mrf.mxu0
        %v696 = vadd.f32 %v349, %v695
        %v697 = vpop.f32.mrf.mxu0
        %v698 = vadd.f32 %v354, %v697
        %v699 = vpop.f32.mrf.mxu0
        %v700 = vadd.f32 %v354, %v699
        %701 = vmatprep.mubr.bf16.mxu0 0
        %702 = vmatmul.mubr.bf16.gmra.mxu0 %v651
        %v703 = vpop.f32.mrf.mxu0
        %v704 = vadd.f32 %v359, %v703
        %v705 = vpop.f32.mrf.mxu0
        %v706 = vadd.f32 %v359, %v705
        %v707 = vpop.f32.mrf.mxu0
        %v708 = vadd.f32 %v364, %v707
        %v709 = vpop.f32.mrf.mxu0
        %v710 = vadd.f32 %v364, %v709
        %711 = vmatprep.mubr.bf16.mxu0 0
        %712 = vmatmul.mubr.bf16.gmra.mxu0 %v654
        %v713 = vpop.f32.mrf.mxu0
        %v714 = vadd.f32 %v369, %v713
        %v715 = vpop.f32.mrf.mxu0
        %v716 = vadd.f32 %v369, %v715
        %v717 = vpop.f32.mrf.mxu0
        %v718 = vadd.f32 %v374, %v717
        %v719 = vpop.f32.mrf.mxu0
        %v720 = vadd.f32 %v374, %v719
        %721 = vmatprep.mubr.bf16.mxu0 0
        %722 = vmatmul.mubr.bf16.gmra.mxu0 %v657
        %v723 = vpop.f32.mrf.mxu0
        %v724 = vadd.f32 %v379, %v723
        %v725 = vpop.f32.mrf.mxu0
        %v726 = vadd.f32 %v379, %v725
        %v727 = vpop.f32.mrf.mxu0
        %v728 = vadd.f32 %v384, %v727
        %v729 = vpop.f32.mrf.mxu0
        %v730 = vadd.f32 %v384, %v729
        %731 = vdwg.mxu0
        %732 = vmatprep.subr.bf16.mxu0 0
        %733 = vmatpush1.bf16.msra.mxu0 0
        %734 = vmatprep.subr.bf16.mxu0 0
        %735 = vmatpush1.bf16.msra.mxu0 0
        %736 = vmatprep.subr.bf16.mxu0 %v593
        %737 = vmatpush1.bf16.msra.mxu0 %v592
        %738 = vmatprep.subr.bf16.mxu0 %v585
        %739 = vmatpush1.bf16.msra.mxu0 %v584
        %740 = vmatprep.subr.bf16.mxu0 %v577
        %741 = vmatpush1.bf16.msra.mxu0 %v576
        %742 = vmatprep.subr.bf16.mxu0 %v569
        %743 = vmatpush1.bf16.msra.mxu0 %v568
        %744 = vmatprep.subr.bf16.mxu0 %v561
        %745 = vmatpush1.bf16.msra.mxu0 %v560
        %746 = vmatprep.subr.bf16.mxu0 %v553
        %747 = vmatpush1.bf16.msra.mxu0 %v552
        %748 = vmatprep.subr.bf16.mxu0 0
        %749 = vmatpush2.bf16.msra.mxu0 0
        %750 = vmatprep.subr.bf16.mxu0 0
        %751 = vmatpush2.bf16.msra.mxu0 0
        %752 = vmatprep.subr.bf16.mxu0 0
        %753 = vmatpush2.bf16.msra.mxu0 0
        %754 = vmatprep.subr.bf16.mxu0 0
        %755 = vmatpush2.bf16.msra.mxu0 0
        %756 = vmatprep.subr.bf16.mxu0 0
        %757 = vmatpush2.bf16.msra.mxu0 0
        %758 = vmatprep.subr.bf16.mxu0 0
        %759 = vmatpush2.bf16.msra.mxu0 0
        %760 = vmatprep.subr.bf16.mxu0 0
        %761 = vmatpush2.bf16.msra.mxu0 0
        %762 = vmatprep.subr.bf16.mxu0 0
        %763 = vmatpush2.bf16.msra.mxu0 0
        %764 = vmatprep.mubr.bf16.mxu0 0
        %765 = vmatmul.mubr.bf16.gmra.mxu0 %v648
        %v766 = vpop.f32.mrf.mxu0
        %v767 = vadd.f32 %v349, %v766
        %v768 = vpop.f32.mrf.mxu0
        %v769 = vadd.f32 %v349, %v768
        %v770 = vpop.f32.mrf.mxu0
        %v771 = vadd.f32 %v354, %v770
        %v772 = vpop.f32.mrf.mxu0
        %v773 = vadd.f32 %v354, %v772
        %774 = vmatprep.mubr.bf16.mxu0 0
        %775 = vmatmul.mubr.bf16.gmra.mxu0 %v651
        %v776 = vpop.f32.mrf.mxu0
        %v777 = vadd.f32 %v359, %v776
        %v778 = vpop.f32.mrf.mxu0
        %v779 = vadd.f32 %v359, %v778
        %v780 = vpop.f32.mrf.mxu0
        %v781 = vadd.f32 %v364, %v780
        %v782 = vpop.f32.mrf.mxu0
        %v783 = vadd.f32 %v364, %v782
        %784 = vmatprep.mubr.bf16.mxu0 0
        %785 = vmatmul.mubr.bf16.gmra.mxu0 %v654
        %v786 = vpop.f32.mrf.mxu0
        %v787 = vadd.f32 %v369, %v786
        %v788 = vpop.f32.mrf.mxu0
        %v789 = vadd.f32 %v369, %v788
        %v790 = vpop.f32.mrf.mxu0
        %v791 = vadd.f32 %v374, %v790
        %v792 = vpop.f32.mrf.mxu0
        %v793 = vadd.f32 %v374, %v792
        %794 = vmatprep.mubr.bf16.mxu0 0
        %795 = vmatmul.mubr.bf16.gmra.mxu0 %v657
        %v796 = vpop.f32.mrf.mxu0
        %v797 = vadd.f32 %v379, %v796
        %v798 = vpop.f32.mrf.mxu0
        %v799 = vadd.f32 %v379, %v798
        %v800 = vpop.f32.mrf.mxu0
        %v801 = vadd.f32 %v384, %v800
        %v802 = vpop.f32.mrf.mxu0
        %v803 = vadd.f32 %v384, %v802
        %804 = vdwg.mxu0
        %805 = vmatprep.subr.bf16.mxu0 0
        %806 = vmatpush1.bf16.msra.mxu0 0
        %807 = vmatprep.subr.bf16.mxu0 0
        %808 = vmatpush1.bf16.msra.mxu0 0
        %809 = vmatprep.subr.bf16.mxu0 %v595
        %810 = vmatpush1.bf16.msra.mxu0 %v594
        %811 = vmatprep.subr.bf16.mxu0 %v587
        %812 = vmatpush1.bf16.msra.mxu0 %v586
        %813 = vmatprep.subr.bf16.mxu0 %v579
        %814 = vmatpush1.bf16.msra.mxu0 %v578
        %815 = vmatprep.subr.bf16.mxu0 %v571
        %816 = vmatpush1.bf16.msra.mxu0 %v570
        %817 = vmatprep.subr.bf16.mxu0 %v563
        %818 = vmatpush1.bf16.msra.mxu0 %v562
        %819 = vmatprep.subr.bf16.mxu0 %v555
        %820 = vmatpush1.bf16.msra.mxu0 %v554
        %821 = vmatprep.subr.bf16.mxu0 0
        %822 = vmatpush2.bf16.msra.mxu0 0
        %823 = vmatprep.subr.bf16.mxu0 0
        %824 = vmatpush2.bf16.msra.mxu0 0
        %825 = vmatprep.subr.bf16.mxu0 0
        %826 = vmatpush2.bf16.msra.mxu0 0
        %827 = vmatprep.subr.bf16.mxu0 0
        %828 = vmatpush2.bf16.msra.mxu0 0
        %829 = vmatprep.subr.bf16.mxu0 0
        %830 = vmatpush2.bf16.msra.mxu0 0
        %831 = vmatprep.subr.bf16.mxu0 0
        %832 = vmatpush2.bf16.msra.mxu0 0
        %833 = vmatprep.subr.bf16.mxu0 0
        %834 = vmatpush2.bf16.msra.mxu0 0
        %835 = vmatprep.subr.bf16.mxu0 0
        %836 = vmatpush2.bf16.msra.mxu0 0
        %837 = vmatprep.mubr.bf16.mxu0 0
        %838 = vmatmul.mubr.bf16.gmra.mxu0 %v648
        %v839 = vpop.f32.mrf.mxu0
        %v840 = vadd.f32 %v349, %v839
        %v841 = vpop.f32.mrf.mxu0
        %v842 = vadd.f32 %v349, %v841
        %v843 = vpop.f32.mrf.mxu0
        %v844 = vadd.f32 %v354, %v843
        %v845 = vpop.f32.mrf.mxu0
        %v846 = vadd.f32 %v354, %v845
        %847 = vmatprep.mubr.bf16.mxu0 0
        %848 = vmatmul.mubr.bf16.gmra.mxu0 %v651
        %v849 = vpop.f32.mrf.mxu0
        %v850 = vadd.f32 %v359, %v849
        %v851 = vpop.f32.mrf.mxu0
        %v852 = vadd.f32 %v359, %v851
        %v853 = vpop.f32.mrf.mxu0
        %v854 = vadd.f32 %v364, %v853
        %v855 = vpop.f32.mrf.mxu0
        %v856 = vadd.f32 %v364, %v855
        %857 = vmatprep.mubr.bf16.mxu0 0
        %858 = vmatmul.mubr.bf16.gmra.mxu0 %v654
        %v859 = vpop.f32.mrf.mxu0
        %v860 = vadd.f32 %v369, %v859
        %v861 = vpop.f32.mrf.mxu0
        %v862 = vadd.f32 %v369, %v861
        %v863 = vpop.f32.mrf.mxu0
        %v864 = vadd.f32 %v374, %v863
        %v865 = vpop.f32.mrf.mxu0
        %v866 = vadd.f32 %v374, %v865
        %867 = vmatprep.mubr.bf16.mxu0 0
        %868 = vmatmul.mubr.bf16.gmra.mxu0 %v657
        %v869 = vpop.f32.mrf.mxu0
        %v870 = vadd.f32 %v379, %v869
        %v871 = vpop.f32.mrf.mxu0
        %v872 = vadd.f32 %v379, %v871
        %v873 = vpop.f32.mrf.mxu0
        %v874 = vadd.f32 %v384, %v873
        %v875 = vpop.f32.mrf.mxu0
        %v876 = vadd.f32 %v384, %v875
        %877 = vdwg.mxu0
        %878 = vmatprep.subr.bf16.mxu0 0
        %879 = vmatpush1.bf16.msra.mxu0 0
        %880 = vmatprep.subr.bf16.mxu0 0
        %881 = vmatpush1.bf16.msra.mxu0 0
        %882 = vmatprep.subr.bf16.mxu0 %v597
        %883 = vmatpush1.bf16.msra.mxu0 %v596
        %884 = vmatprep.subr.bf16.mxu0 %v589
        %885 = vmatpush1.bf16.msra.mxu0 %v588
        %886 = vmatprep.subr.bf16.mxu0 %v581
        %887 = vmatpush1.bf16.msra.mxu0 %v580
        %888 = vmatprep.subr.bf16.mxu0 %v573
        %889 = vmatpush1.bf16.msra.mxu0 %v572
        %890 = vmatprep.subr.bf16.mxu0 %v565
        %891 = vmatpush1.bf16.msra.mxu0 %v564
        %892 = vmatprep.subr.bf16.mxu0 %v557
        %893 = vmatpush1.bf16.msra.mxu0 %v556
        %894 = vmatprep.subr.bf16.mxu0 0
        %895 = vmatpush2.bf16.msra.mxu0 0
        %896 = vmatprep.subr.bf16.mxu0 0
        %897 = vmatpush2.bf16.msra.mxu0 0
        %898 = vmatprep.subr.bf16.mxu0 0
        %899 = vmatpush2.bf16.msra.mxu0 0
        %900 = vmatprep.subr.bf16.mxu0 0
        %901 = vmatpush2.bf16.msra.mxu0 0
        %902 = vmatprep.subr.bf16.mxu0 0
        %903 = vmatpush2.bf16.msra.mxu0 0
        %904 = vmatprep.subr.bf16.mxu0 0
        %905 = vmatpush2.bf16.msra.mxu0 0
        %906 = vmatprep.subr.bf16.mxu0 0
        %907 = vmatpush2.bf16.msra.mxu0 0
        %908 = vmatprep.subr.bf16.mxu0 0
        %909 = vmatpush2.bf16.msra.mxu0 0
        %910 = vmatprep.mubr.bf16.mxu0 0
        %911 = vmatmul.mubr.bf16.gmra.mxu0 %v648
        %v912 = vpop.f32.mrf.mxu0
        %v913 = vadd.f32 %v349, %v912
        %v914 = vpop.f32.mrf.mxu0
        %v915 = vadd.f32 %v349, %v914
        %v916 = vpop.f32.mrf.mxu0
        %v917 = vadd.f32 %v354, %v916
        %v918 = vpop.f32.mrf.mxu0
        %v919 = vadd.f32 %v354, %v918
        %920 = vmatprep.mubr.bf16.mxu0 0
        %921 = vmatmul.mubr.bf16.gmra.mxu0 %v651
        %v922 = vpop.f32.mrf.mxu0
        %v923 = vadd.f32 %v359, %v922
        %v924 = vpop.f32.mrf.mxu0
        %v925 = vadd.f32 %v359, %v924
        %v926 = vpop.f32.mrf.mxu0
        %v927 = vadd.f32 %v364, %v926
        %v928 = vpop.f32.mrf.mxu0
        %v929 = vadd.f32 %v364, %v928
        %930 = vmatprep.mubr.bf16.mxu0 0
        %931 = vmatmul.mubr.bf16.gmra.mxu0 %v654
        %v932 = vpop.f32.mrf.mxu0
        %v933 = vadd.f32 %v369, %v932
        %v934 = vpop.f32.mrf.mxu0
        %v935 = vadd.f32 %v369, %v934
        %v936 = vpop.f32.mrf.mxu0
        %v937 = vadd.f32 %v374, %v936
        %v938 = vpop.f32.mrf.mxu0
        %v939 = vadd.f32 %v374, %v938
        %940 = vmatprep.mubr.bf16.mxu0 0
        %941 = vmatmul.mubr.bf16.gmra.mxu0 %v657
        %v942 = vpop.f32.mrf.mxu0
        %v943 = vadd.f32 %v379, %v942
        %v944 = vpop.f32.mrf.mxu0
        %v945 = vadd.f32 %v379, %v944
        %v946 = vpop.f32.mrf.mxu0
        %v947 = vadd.f32 %v384, %v946
        %v948 = vpop.f32.mrf.mxu0
        %v949 = vadd.f32 %v384, %v948
        %950 = vdwg.mxu0
        %951 = vst [vmem:[%s278] sm:$0xff] %v694
        %952 = vst [vmem:[%s278 + $0x8] sm:$0xff] %v696
        %953 = vst [vmem:[%s278 + $0x10] sm:$0xff] %v767
        %954 = vst [vmem:[%s278 + $0x18] sm:$0xff] %v769
        %955 = vst [vmem:[%s278 + $0x20] sm:$0xff] %v840
        %956 = vst [vmem:[%s278 + $0x28] sm:$0xff] %v842
        %957 = vst [vmem:[%s278 + $0x30] sm:$0xff] %v913
        %958 = vst [vmem:[%s278 + $0x38] sm:$0xff] %v915
        %959 = vst [vmem:[%s278 + $0x40] sm:$0xff] %v698
        %960 = vst [vmem:[%s278 + $0x48] sm:$0xff] %v700
        %961 = vst [vmem:[%s278 + $0x50] sm:$0xff] %v771
        %962 = vst [vmem:[%s278 + $0x58] sm:$0xff] %v773
        %963 = vst [vmem:[%s278 + $0x60] sm:$0xff] %v844
        %964 = vst [vmem:[%s278 + $0x68] sm:$0xff] %v846
        %965 = vst [vmem:[%s278 + $0x70] sm:$0xff] %v917
        %966 = vst [vmem:[%s278 + $0x78] sm:$0xff] %v919
        %967 = vst [vmem:[%s278 + $0x80] sm:$0xff] %v704
        %968 = vst [vmem:[%s278 + $0x88] sm:$0xff] %v706
        %969 = vst [vmem:[%s278 + $0x90] sm:$0xff] %v777
        %970 = vst [vmem:[%s278 + $0x98] sm:$0xff] %v779
        %971 = vst [vmem:[%s278 + $0xa0] sm:$0xff] %v850
        %972 = vst [vmem:[%s278 + $0xa8] sm:$0xff] %v852
        %973 = vst [vmem:[%s278 + $0xb0] sm:$0xff] %v923
        %974 = vst [vmem:[%s278 + $0xb8] sm:$0xff] %v925
        %975 = vst [vmem:[%s278 + $0xc0] sm:$0xff] %v708
        %976 = vst [vmem:[%s278 + $0xc8] sm:$0xff] %v710
        %977 = vst [vmem:[%s278 + $0xd0] sm:$0xff] %v781
        %978 = vst [vmem:[%s278 + $0xd8] sm:$0xff] %v783
        %979 = vst [vmem:[%s278 + $0xe0] sm:$0xff] %v854
        %980 = vst [vmem:[%s278 + $0xe8] sm:$0xff] %v856
        %981 = vst [vmem:[%s278 + $0xf0] sm:$0xff] %v927
        %982 = vst [vmem:[%s278 + $0xf8] sm:$0xff] %v929
        %983 = vst [vmem:[%s278 + $0x100] sm:$0xff] %v714
        %984 = vst [vmem:[%s278 + $0x108] sm:$0xff] %v716
        %985 = vst [vmem:[%s278 + $0x110] sm:$0xff] %v787
        %986 = vst [vmem:[%s278 + $0x118] sm:$0xff] %v789
        %987 = vst [vmem:[%s278 + $0x120] sm:$0xff] %v860
        %988 = vst [vmem:[%s278 + $0x128] sm:$0xff] %v862
        %989 = vst [vmem:[%s278 + $0x130] sm:$0xff] %v933
        %990 = vst [vmem:[%s278 + $0x138] sm:$0xff] %v935
        %991 = vst [vmem:[%s278 + $0x140] sm:$0xff] %v718
        %992 = vst [vmem:[%s278 + $0x148] sm:$0xff] %v720
        %993 = vst [vmem:[%s278 + $0x150] sm:$0xff] %v791
        %994 = vst [vmem:[%s278 + $0x158] sm:$0xff] %v793
        %995 = vst [vmem:[%s278 + $0x160] sm:$0xff] %v864
        %996 = vst [vmem:[%s278 + $0x168] sm:$0xff] %v866
        %997 = vst [vmem:[%s278 + $0x170] sm:$0xff] %v937
        %998 = vst [vmem:[%s278 + $0x178] sm:$0xff] %v939
        %999 = vst [vmem:[%s278 + $0x180] sm:$0xff] %v724
        %1000 = vst [vmem:[%s278 + $0x188] sm:$0xff] %v726
        %1001 = vst [vmem:[%s278 + $0x190] sm:$0xff] %v797
        %1002 = vst [vmem:[%s278 + $0x198] sm:$0xff] %v799
        %1003 = vst [vmem:[%s278 + $0x1a0] sm:$0xff] %v870
        %1004 = vst [vmem:[%s278 + $0x1a8] sm:$0xff] %v872
        %1005 = vst [vmem:[%s278 + $0x1b0] sm:$0xff] %v943
        %1006 = vst [vmem:[%s278 + $0x1b8] sm:$0xff] %v945
        %1007 = vst [vmem:[%s278 + $0x1c0] sm:$0xff] %v728
        %1008 = vst [vmem:[%s278 + $0x1c8] sm:$0xff] %v730
        %1009 = vst [vmem:[%s278 + $0x1d0] sm:$0xff] %v801
        %1010 = vst [vmem:[%s278 + $0x1d8] sm:$0xff] %v803
        %1011 = vst [vmem:[%s278 + $0x1e0] sm:$0xff] %v874
        %1012 = vst [vmem:[%s278 + $0x1e8] sm:$0xff] %v876
        %1013 = vst [vmem:[%s278 + $0x1f0] sm:$0xff] %v947
        %1014 = vst [vmem:[%s278 + $0x1f8] sm:$0xff] %v949
        %s1015 = sand.u32 %s90, 1
        %s1016 = sand.u32 %s90, 1
        %s1017 = smul.addr %s1016, 512
        %s1018 = scalar_lea.vmem [#allocation3], %s1017
        // Predicated region
        $region56: #{rapn_forward.2} parent=50 // pred_check
          %p1019 = pneg %p100
        $region57: #{rapn_forward.2} parent=50 // pred_check_branch
          %1021 = sbr.rel (%p1019) target = $region59
        $region58: #{rapn_forward.2} parent=50 // pred_region
          %s1022 = smul.u32 8, %s14
          %s1023 = smul.addr %s1022, 8
          %s1024 = scalar_lea.vmem %s3, %s1023
          // Predicated region
          $region60: #{rapn_forward.2} parent=58 // pred_check
            _
          $region61: #{rapn_forward.2} parent=58 // pred_check_branch
            %1026 = sbr.rel (0) target = $region63
          $region62: #{rapn_forward.2} parent=58 // pred_region
            // Predicated region
            $region64: #{rapn_forward.2} parent=62 // pred_check
              _
            $region65: #{rapn_forward.2} parent=62 // pred_check_branch
              %1028 = sbr.rel (0) target = $region67
            $region66: #{rapn_forward.2} parent=62 // pred_region
              loop: start=0, step=1, limit=1
              $region68: #{rapn_forward.2} parent=66 // loop_pre_header
                _
              $region69: #{rapn_forward.2} parent=66 // loop_header
                %s1030 = sphi 0, %s1034
                %p1031 = scmp.ge.s32.totalorder %s1030, 1
                %s1035 = sphi %s1018, %s1018
                %s1036 = sphi %s1024, %s1024
              $region70: #{rapn_forward.2} parent=66 // loop_header_branch
                %1033 = sbr.rel (%p1031) target = $region74
              $region71: #{rapn_forward.2} parent=66 // loop_body
                %v1037 = vld [vmem:[%s1035] sm:$0xff]
                %1038 = vst [vmem:[%s1036] sm:$0xff] %v1037
                %v1039 = vld [vmem:[%s1035 + $0x8] sm:$0xff]
                %1040 = vst [vmem:[%s1036 + $0x8] sm:$0xff] %v1039
                %v1041 = vld [vmem:[%s1035 + $0x10] sm:$0xff]
                %1042 = vst [vmem:[%s1036 + $0x10] sm:$0xff] %v1041
                %v1043 = vld [vmem:[%s1035 + $0x18] sm:$0xff]
                %1044 = vst [vmem:[%s1036 + $0x18] sm:$0xff] %v1043
                %v1045 = vld [vmem:[%s1035 + $0x20] sm:$0xff]
                %1046 = vst [vmem:[%s1036 + $0x20] sm:$0xff] %v1045
                %v1047 = vld [vmem:[%s1035 + $0x28] sm:$0xff]
                %1048 = vst [vmem:[%s1036 + $0x28] sm:$0xff] %v1047
                %v1049 = vld [vmem:[%s1035 + $0x30] sm:$0xff]
                %1050 = vst [vmem:[%s1036 + $0x30] sm:$0xff] %v1049
                %v1051 = vld [vmem:[%s1035 + $0x38] sm:$0xff]
                %1052 = vst [vmem:[%s1036 + $0x38] sm:$0xff] %v1051
                %v1053 = vld [vmem:[%s1035 + $0x40] sm:$0xff]
                %1054 = vst [vmem:[%s1036 + $0x80] sm:$0xff] %v1053
                %v1055 = vld [vmem:[%s1035 + $0x48] sm:$0xff]
                %1056 = vst [vmem:[%s1036 + $0x88] sm:$0xff] %v1055
                %v1057 = vld [vmem:[%s1035 + $0x50] sm:$0xff]
                %1058 = vst [vmem:[%s1036 + $0x90] sm:$0xff] %v1057
                %v1059 = vld [vmem:[%s1035 + $0x58] sm:$0xff]
                %1060 = vst [vmem:[%s1036 + $0x98] sm:$0xff] %v1059
                %v1061 = vld [vmem:[%s1035 + $0x60] sm:$0xff]
                %1062 = vst [vmem:[%s1036 + $0xa0] sm:$0xff] %v1061
                %v1063 = vld [vmem:[%s1035 + $0x68] sm:$0xff]
                %1064 = vst [vmem:[%s1036 + $0xa8] sm:$0xff] %v1063
                %v1065 = vld [vmem:[%s1035 + $0x70] sm:$0xff]
                %1066 = vst [vmem:[%s1036 + $0xb0] sm:$0xff] %v1065
                %v1067 = vld [vmem:[%s1035 + $0x78] sm:$0xff]
                %1068 = vst [vmem:[%s1036 + $0xb8] sm:$0xff] %v1067
                %v1069 = vld [vmem:[%s1035 + $0x80] sm:$0xff]
                %1070 = vst [vmem:[%s1036 + $0x100] sm:$0xff] %v1069
                %v1071 = vld [vmem:[%s1035 + $0x88] sm:$0xff]
                %1072 = vst [vmem:[%s1036 + $0x108] sm:$0xff] %v1071
                %v1073 = vld [vmem:[%s1035 + $0x90] sm:$0xff]
                %1074 = vst [vmem:[%s1036 + $0x110] sm:$0xff] %v1073
                %v1075 = vld [vmem:[%s1035 + $0x98] sm:$0xff]
                %1076 = vst [vmem:[%s1036 + $0x118] sm:$0xff] %v1075
                %v1077 = vld [vmem:[%s1035 + $0xa0] sm:$0xff]
                %1078 = vst [vmem:[%s1036 + $0x120] sm:$0xff] %v1077
                %v1079 = vld [vmem:[%s1035 + $0xa8] sm:$0xff]
                %1080 = vst [vmem:[%s1036 + $0x128] sm:$0xff] %v1079
                %v1081 = vld [vmem:[%s1035 + $0xb0] sm:$0xff]
                %1082 = vst [vmem:[%s1036 + $0x130] sm:$0xff] %v1081
                %v1083 = vld [vmem:[%s1035 + $0xb8] sm:$0xff]
                %1084 = vst [vmem:[%s1036 + $0x138] sm:$0xff] %v1083
                %v1085 = vld [vmem:[%s1035 + $0xc0] sm:$0xff]
                %1086 = vst [vmem:[%s1036 + $0x180] sm:$0xff] %v1085
                %v1087 = vld [vmem:[%s1035 + $0xc8] sm:$0xff]
                %1088 = vst [vmem:[%s1036 + $0x188] sm:$0xff] %v1087
                %v1089 = vld [vmem:[%s1035 + $0xd0] sm:$0xff]
                %1090 = vst [vmem:[%s1036 + $0x190] sm:$0xff] %v1089
                %v1091 = vld [vmem:[%s1035 + $0xd8] sm:$0xff]
                %1092 = vst [vmem:[%s1036 + $0x198] sm:$0xff] %v1091
                %v1093 = vld [vmem:[%s1035 + $0xe0] sm:$0xff]
                %1094 = vst [vmem:[%s1036 + $0x1a0] sm:$0xff] %v1093
                %v1095 = vld [vmem:[%s1035 + $0xe8] sm:$0xff]
                %1096 = vst [vmem:[%s1036 + $0x1a8] sm:$0xff] %v1095
                %v1097 = vld [vmem:[%s1035 + $0xf0] sm:$0xff]
                %1098 = vst [vmem:[%s1036 + $0x1b0] sm:$0xff] %v1097
                %v1099 = vld [vmem:[%s1035 + $0xf8] sm:$0xff]
                %1100 = vst [vmem:[%s1036 + $0x1b8] sm:$0xff] %v1099
                %v1101 = vld [vmem:[%s1035 + $0x100] sm:$0xff]
                %1102 = vst [vmem:[%s1036 + $0x200] sm:$0xff] %v1101
                %v1103 = vld [vmem:[%s1035 + $0x108] sm:$0xff]
                %1104 = vst [vmem:[%s1036 + $0x208] sm:$0xff] %v1103
                %v1105 = vld [vmem:[%s1035 + $0x110] sm:$0xff]
                %1106 = vst [vmem:[%s1036 + $0x210] sm:$0xff] %v1105
                %v1107 = vld [vmem:[%s1035 + $0x118] sm:$0xff]
                %1108 = vst [vmem:[%s1036 + $0x218] sm:$0xff] %v1107
                %v1109 = vld [vmem:[%s1035 + $0x120] sm:$0xff]
                %1110 = vst [vmem:[%s1036 + $0x220] sm:$0xff] %v1109
                %v1111 = vld [vmem:[%s1035 + $0x128] sm:$0xff]
                %1112 = vst [vmem:[%s1036 + $0x228] sm:$0xff] %v1111
                %v1113 = vld [vmem:[%s1035 + $0x130] sm:$0xff]
                %1114 = vst [vmem:[%s1036 + $0x230] sm:$0xff] %v1113
                %v1115 = vld [vmem:[%s1035 + $0x138] sm:$0xff]
                %1116 = vst [vmem:[%s1036 + $0x238] sm:$0xff] %v1115
                %v1117 = vld [vmem:[%s1035 + $0x140] sm:$0xff]
                %1118 = vst [vmem:[%s1036 + $0x280] sm:$0xff] %v1117
                %v1119 = vld [vmem:[%s1035 + $0x148] sm:$0xff]
                %1120 = vst [vmem:[%s1036 + $0x288] sm:$0xff] %v1119
                %v1121 = vld [vmem:[%s1035 + $0x150] sm:$0xff]
                %1122 = vst [vmem:[%s1036 + $0x290] sm:$0xff] %v1121
                %v1123 = vld [vmem:[%s1035 + $0x158] sm:$0xff]
                %1124 = vst [vmem:[%s1036 + $0x298] sm:$0xff] %v1123
                %v1125 = vld [vmem:[%s1035 + $0x160] sm:$0xff]
                %1126 = vst [vmem:[%s1036 + $0x2a0] sm:$0xff] %v1125
                %v1127 = vld [vmem:[%s1035 + $0x168] sm:$0xff]
                %1128 = vst [vmem:[%s1036 + $0x2a8] sm:$0xff] %v1127
                %v1129 = vld [vmem:[%s1035 + $0x170] sm:$0xff]
                %1130 = vst [vmem:[%s1036 + $0x2b0] sm:$0xff] %v1129
                %v1131 = vld [vmem:[%s1035 + $0x178] sm:$0xff]
                %1132 = vst [vmem:[%s1036 + $0x2b8] sm:$0xff] %v1131
                %v1133 = vld [vmem:[%s1035 + $0x180] sm:$0xff]
                %1134 = vst [vmem:[%s1036 + $0x300] sm:$0xff] %v1133
                %v1135 = vld [vmem:[%s1035 + $0x188] sm:$0xff]
                %1136 = vst [vmem:[%s1036 + $0x308] sm:$0xff] %v1135
                %v1137 = vld [vmem:[%s1035 + $0x190] sm:$0xff]
                %1138 = vst [vmem:[%s1036 + $0x310] sm:$0xff] %v1137
                %v1139 = vld [vmem:[%s1035 + $0x198] sm:$0xff]
                %1140 = vst [vmem:[%s1036 + $0x318] sm:$0xff] %v1139
                %v1141 = vld [vmem:[%s1035 + $0x1a0] sm:$0xff]
                %1142 = vst [vmem:[%s1036 + $0x320] sm:$0xff] %v1141
                %v1143 = vld [vmem:[%s1035 + $0x1a8] sm:$0xff]
                %1144 = vst [vmem:[%s1036 + $0x328] sm:$0xff] %v1143
                %v1145 = vld [vmem:[%s1035 + $0x1b0] sm:$0xff]
                %1146 = vst [vmem:[%s1036 + $0x330] sm:$0xff] %v1145
                %v1147 = vld [vmem:[%s1035 + $0x1b8] sm:$0xff]
                %1148 = vst [vmem:[%s1036 + $0x338] sm:$0xff] %v1147
                %v1149 = vld [vmem:[%s1035 + $0x1c0] sm:$0xff]
                %1150 = vst [vmem:[%s1036 + $0x380] sm:$0xff] %v1149
                %v1151 = vld [vmem:[%s1035 + $0x1c8] sm:$0xff]
                %1152 = vst [vmem:[%s1036 + $0x388] sm:$0xff] %v1151
                %v1153 = vld [vmem:[%s1035 + $0x1d0] sm:$0xff]
                %1154 = vst [vmem:[%s1036 + $0x390] sm:$0xff] %v1153
                %v1155 = vld [vmem:[%s1035 + $0x1d8] sm:$0xff]
                %1156 = vst [vmem:[%s1036 + $0x398] sm:$0xff] %v1155
                %v1157 = vld [vmem:[%s1035 + $0x1e0] sm:$0xff]
                %1158 = vst [vmem:[%s1036 + $0x3a0] sm:$0xff] %v1157
                %v1159 = vld [vmem:[%s1035 + $0x1e8] sm:$0xff]
                %1160 = vst [vmem:[%s1036 + $0x3a8] sm:$0xff] %v1159
                %v1161 = vld [vmem:[%s1035 + $0x1f0] sm:$0xff]
                %1162 = vst [vmem:[%s1036 + $0x3b0] sm:$0xff] %v1161
                %v1163 = vld [vmem:[%s1035 + $0x1f8] sm:$0xff]
                %1164 = vst [vmem:[%s1036 + $0x3b8] sm:$0xff] %v1163
              $region72: #{rapn_forward.2} parent=66 // loop_footer
                %s1034 = sadd.s32 1, %s1030
              $region73: #{rapn_forward.2} parent=66 // loop_footer_branch
                %1029 = sbr.rel target = $region69
              $region74: #{rapn_forward.2} parent=66 // loop_exit
                _
            $region67: #{rapn_forward.2} parent=62 // pred_fallthru
              _
            // Predicated region
            $region75: #{rapn_forward.2} parent=62 // pred_check
              _
            $region76: #{rapn_forward.2} parent=62 // pred_check_branch
              %1166 = sbr.rel target = $region78
            $region77: #{rapn_forward.2} parent=62 // pred_region
              _
            $region78: #{rapn_forward.2} parent=62 // pred_fallthru
              _
          $region63: #{rapn_forward.2} parent=58 // pred_fallthru
            _
          %1167 = vnop
        $region59: #{rapn_forward.2} parent=50 // pred_fallthru
          _
      $region51: #{rapn_forward.2} parent=5 // pred_fallthru
        _
      %p1168 = scmp.le.s32.totalorder 2, %s9
      // Predicated region
      $region79: #{rapn_forward.2} parent=5 // pred_check
        %p1169 = pneg %p1168
      $region80: #{rapn_forward.2} parent=5 // pred_check_branch
        %1171 = sbr.rel (%p1169) target = $region82
      $region81: #{rapn_forward.2} parent=5 // pred_region
        %s1172 = ssub.s32 %s9, 2
        // Predicated region
        $region83: #{rapn_forward.2} parent=81 // pred_check
          %p1173 = pneg %p106
        $region84: #{rapn_forward.2} parent=81 // pred_check_branch
          %1175 = sbr.rel (%p1173) target = $region86
        $region85: #{rapn_forward.2} parent=81 // pred_region
          %s1176 = sand.u32 %s91, 1
          %s1177 = sand.u32 %s91, 1
          %s1178 = smul.addr %s1177, 512
          %s1179 = scalar_lea.vmem [#allocation3], %s1178
        $region86: #{rapn_forward.2} parent=81 // pred_fallthru
          _
      $region82: #{rapn_forward.2} parent=5 // pred_fallthru
        _
    $region6: #{rapn_forward.2} parent=1 // loop_footer
      %s13 = sadd.s32 1, %s9
    $region7: #{rapn_forward.2} parent=1 // loop_footer_branch
      %8 = sbr.rel target = $region3
    $region8: #{rapn_forward.2} parent=1 // loop_exit
      _

// kernel: rapn_forward.3
$region0: #{rapn_forward.3}
  #allocation0 [shape = 'u32[]', space=smem, size = 0x4, offset = 0x4, fixed_abs, tag = 'smem constant byte address 0x4 - core index']
  #allocation1 [shape = 'u32[144,128]{1,0:T(1,128)}', space=vmem, size = 0x12000, scoped, tag = 'internal scratch']
  %s0 = inlined_call_operand.vmem [shape: bf16[64,576], index: 0, kind: input, shape index: {}]
  %s1 = inlined_call_operand.vmem [shape: bf16[576,128], index: 1, kind: input, shape index: {}]
  %s2 = inlined_call_operand.vmem [shape: f32[64,1], index: 2, kind: input, shape index: {}]
  %s3 = inlined_call_operand.vmem [shape: f32[64,128], index: 3, kind: output, shape index: {}]
  %s4 = sld [smem:[#allocation0]]
  $region22: #{rapn_forward.3} parent=0
    _
  %s6 = ssub.s32 1, %s4
  %s7 = scalar_select 0, %s6, %s4
  // Predicated region
  $region2: #{rapn_forward.3} parent=0 // pred_check
    _
  $region3: #{rapn_forward.3} parent=0 // pred_check_branch
    %9 = sbr.rel (0) target = $region5
  $region4: #{rapn_forward.3} parent=0 // pred_region
    _
  $region5: #{rapn_forward.3} parent=0 // pred_fallthru
    _
  // Predicated region
  $region6: #{rapn_forward.3} parent=0 // pred_check
    _
  $region7: #{rapn_forward.3} parent=0 // pred_check_branch
    %11 = sbr.rel (0) target = $region9
  $region8: #{rapn_forward.3} parent=0 // pred_region
    _
  $region9: #{rapn_forward.3} parent=0 // pred_fallthru
    _
  // Predicated region
  $region10: #{rapn_forward.3} parent=0 // pred_check
    _
  $region11: #{rapn_forward.3} parent=0 // pred_check_branch
    %13 = sbr.rel (0) target = $region13
  $region12: #{rapn_forward.3} parent=0 // pred_region
    _
  $region13: #{rapn_forward.3} parent=0 // pred_fallthru
    _
  %v15 = vld [vmem:[%s0] sm:$0xff]
  %v16 = vld [vmem:[%s0 + $0x8] sm:$0xff]
  %v17 = vld [vmem:[%s0 + $0x10] sm:$0xf]
  %v18 = vld [vmem:[%s0 + $0x14] sm:$0xff]
  %v19 = vld [vmem:[%s0 + $0x1c] sm:$0xff]
  %v20 = vld [vmem:[%s0 + $0x24] sm:$0xf]
  %v21 = vld [vmem:[%s0 + $0x28] sm:$0xff]
  %v22 = vld [vmem:[%s0 + $0x30] sm:$0xff]
  %v23 = vld [vmem:[%s0 + $0x38] sm:$0xf]
  %v24 = vld [vmem:[%s0 + $0x3c] sm:$0xff]
  %v25 = vld [vmem:[%s0 + $0x44] sm:$0xff]
  %v26 = vld [vmem:[%s0 + $0x4c] sm:$0xf]
  %v27 = vld [vmem:[%s0 + $0x50] sm:$0xff]
  %v28 = vld [vmem:[%s0 + $0x58] sm:$0xff]
  %v29 = vld [vmem:[%s0 + $0x60] sm:$0xf]
  %v30 = vld [vmem:[%s0 + $0x64] sm:$0xff]
  %v31 = vld [vmem:[%s0 + $0x6c] sm:$0xff]
  %v32 = vld [vmem:[%s0 + $0x74] sm:$0xf]
  %v33 = vld [vmem:[%s0 + $0x78] sm:$0xff]
  %v34 = vld [vmem:[%s0 + $0x80] sm:$0xff]
  %v35 = vld [vmem:[%s0 + $0x88] sm:$0xf]
  %v36 = vld [vmem:[%s0 + $0x8c] sm:$0xff]
  %v37 = vld [vmem:[%s0 + $0x94] sm:$0xff]
  %v38 = vld [vmem:[%s0 + $0x9c] sm:$0xf]
  %v39 = vld [vmem:[%s1] sm:$0xf]
  %v40 = vld [vmem:[%s1 + $0x4] sm:$0xf]
  %v41 = vld [vmem:[%s1 + $0x8] sm:$0xf]
  %v42 = vld [vmem:[%s1 + $0xc] sm:$0xf]
  %v43 = vld [vmem:[%s1 + $0x10] sm:$0xf]
  %v44 = vld [vmem:[%s1 + $0x14] sm:$0xf]
  %v45 = vld [vmem:[%s1 + $0x18] sm:$0xf]
  %v46 = vld [vmem:[%s1 + $0x1c] sm:$0xf]
  %v47 = vld [vmem:[%s1 + $0x20] sm:$0xf]
  %v48 = vld [vmem:[%s1 + $0x24] sm:$0xf]
  %v49 = vld [vmem:[%s1 + $0x28] sm:$0xf]
  %v50 = vld [vmem:[%s1 + $0x2c] sm:$0xf]
  %v51 = vld [vmem:[%s1 + $0x30] sm:$0xf]
  %v52 = vld [vmem:[%s1 + $0x34] sm:$0xf]
  %v53 = vld [vmem:[%s1 + $0x38] sm:$0xf]
  %v54 = vld [vmem:[%s1 + $0x3c] sm:$0xf]
  %v55 = vld [vmem:[%s1 + $0x40] sm:$0xf]
  %v56 = vld [vmem:[%s1 + $0x44] sm:$0xf]
  %v57 = vld [vmem:[%s1 + $0x48] sm:$0xf]
  %v58 = vld [vmem:[%s1 + $0x4c] sm:$0xf]
  %v59 = vld [vmem:[%s1 + $0x50] sm:$0xf]
  %v60 = vld [vmem:[%s1 + $0x54] sm:$0xf]
  %v61 = vld [vmem:[%s1 + $0x58] sm:$0xf]
  %v62 = vld [vmem:[%s1 + $0x5c] sm:$0xf]
  %v63 = vld [vmem:[%s1 + $0x60] sm:$0xf]
  %v64 = vld [vmem:[%s1 + $0x64] sm:$0xf]
  %v65 = vld [vmem:[%s1 + $0x68] sm:$0xf]
  %v66 = vld [vmem:[%s1 + $0x6c] sm:$0xf]
  %v67 = vld [vmem:[%s1 + $0x70] sm:$0xf]
  %v68 = vld [vmem:[%s1 + $0x74] sm:$0xf]
  %v69 = vld [vmem:[%s1 + $0x78] sm:$0xf]
  %v70 = vld [vmem:[%s1 + $0x7c] sm:$0xf]
  %v71 = vld [vmem:[%s1 + $0x80] sm:$0xf]
  %v72 = vld [vmem:[%s1 + $0x84] sm:$0xf]
  %v73 = vld [vmem:[%s1 + $0x88] sm:$0xf]
  %v74 = vld [vmem:[%s1 + $0x8c] sm:$0xf]
  %v75 = vld [vmem:[%s1 + $0x90] sm:$0xf]
  %v76 = vld [vmem:[%s1 + $0x94] sm:$0xf]
  %v77 = vld [vmem:[%s1 + $0x98] sm:$0xf]
  %v78 = vld [vmem:[%s1 + $0x9c] sm:$0xf]
  %v79 = vld [vmem:[%s1 + $0xa0] sm:$0xf]
  %v80 = vld [vmem:[%s1 + $0xa4] sm:$0xf]
  %v81 = vld [vmem:[%s1 + $0xa8] sm:$0xf]
  %v82 = vld [vmem:[%s1 + $0xac] sm:$0xf]
  %v83 = vld [vmem:[%s1 + $0xb0] sm:$0xf]
  %v84 = vld [vmem:[%s1 + $0xb4] sm:$0xf]
  %v85 = vld [vmem:[%s1 + $0xb8] sm:$0xf]
  %v86 = vld [vmem:[%s1 + $0xbc] sm:$0xf]
  %v87 = vld [vmem:[%s1 + $0xc0] sm:$0xf]
  %v88 = vld [vmem:[%s1 + $0xc4] sm:$0xf]
  %v89 = vld [vmem:[%s1 + $0xc8] sm:$0xf]
  %v90 = vld [vmem:[%s1 + $0xcc] sm:$0xf]
  %v91 = vld [vmem:[%s1 + $0xd0] sm:$0xf]
  %v92 = vld [vmem:[%s1 + $0xd4] sm:$0xf]
  %v93 = vld [vmem:[%s1 + $0xd8] sm:$0xf]
  %v94 = vld [vmem:[%s1 + $0xdc] sm:$0xf]
  %v95 = vld [vmem:[%s1 + $0xe0] sm:$0xf]
  %v96 = vld [vmem:[%s1 + $0xe4] sm:$0xf]
  %v97 = vld [vmem:[%s1 + $0xe8] sm:$0xf]
  %v98 = vld [vmem:[%s1 + $0xec] sm:$0xf]
  %v99 = vld [vmem:[%s1 + $0xf0] sm:$0xf]
  %v100 = vld [vmem:[%s1 + $0xf4] sm:$0xf]
  %v101 = vld [vmem:[%s1 + $0xf8] sm:$0xf]
  %v102 = vld [vmem:[%s1 + $0xfc] sm:$0xf]
  %v103 = vld [vmem:[%s1 + $0x100] sm:$0xf]
  %v104 = vld [vmem:[%s1 + $0x104] sm:$0xf]
  %v105 = vld [vmem:[%s1 + $0x108] sm:$0xf]
  %v106 = vld [vmem:[%s1 + $0x10c] sm:$0xf]
  %v107 = vld [vmem:[%s1 + $0x110] sm:$0xf]
  %v108 = vld [vmem:[%s1 + $0x114] sm:$0xf]
  %v109 = vld [vmem:[%s1 + $0x118] sm:$0xf]
  %v110 = vld [vmem:[%s1 + $0x11c] sm:$0xf]
  %v111 = vld [vmem:[%s2] sm:$0xff]
  %v112 = vld [vmem:[%s2 + $0x8] sm:$0xff]
  %v113 = vld [vmem:[%s2 + $0x10] sm:$0xff]
  %v114 = vld [vmem:[%s2 + $0x18] sm:$0xff]
  %v115 = vld [vmem:[%s2 + $0x20] sm:$0xff]
  %v116 = vld [vmem:[%s2 + $0x28] sm:$0xff]
  %v117 = vld [vmem:[%s2 + $0x30] sm:$0xff]
  %v118 = vld [vmem:[%s2 + $0x38] sm:$0xff]
  %120 = vset.pattern.permute.xlu0 0
  %121 = vperm.xlu0 %120, %v111
  %v122 = vpop.permute.xlu0 %121
  %125 = vset.pattern.permute.xlu0 0
  %126 = vperm.xlu0 %125, %v112
  %v127 = vpop.permute.xlu0 %126
  %130 = vset.pattern.permute.xlu0 0
  %131 = vperm.xlu0 %130, %v113
  %v132 = vpop.permute.xlu0 %131
  %135 = vset.pattern.permute.xlu0 0
  %136 = vperm.xlu0 %135, %v114
  %v137 = vpop.permute.xlu0 %136
  %140 = vset.pattern.permute.xlu0 0
  %141 = vperm.xlu0 %140, %v115
  %v142 = vpop.permute.xlu0 %141
  %145 = vset.pattern.permute.xlu0 0
  %146 = vperm.xlu0 %145, %v116
  %v147 = vpop.permute.xlu0 %146
  %150 = vset.pattern.permute.xlu0 0
  %151 = vperm.xlu0 %150, %v117
  %v152 = vpop.permute.xlu0 %151
  %155 = vset.pattern.permute.xlu0 0
  %156 = vperm.xlu0 %155, %v118
  %v157 = vpop.permute.xlu0 %156
  %v183 = vunpack.c.l.b16 %v15
  %v184 = vunpack.c.h.b16 %v15
  %v185 = vunpack.c.l.b16 %v16
  %v186 = vunpack.c.h.b16 %v16
  %v187 = vunpack.c.l.b16 %v17
  %v188 = vunpack.c.l.b16 %v18
  %v189 = vunpack.c.h.b16 %v18
  %v190 = vunpack.c.l.b16 %v19
  %v191 = vunpack.c.h.b16 %v19
  %v192 = vunpack.c.l.b16 %v20
  %v193 = vunpack.c.l.b16 %v21
  %v194 = vunpack.c.h.b16 %v21
  %v195 = vunpack.c.l.b16 %v22
  %v196 = vunpack.c.h.b16 %v22
  %v197 = vunpack.c.l.b16 %v23
  %v198 = vunpack.c.l.b16 %v24
  %v199 = vunpack.c.h.b16 %v24
  %v200 = vunpack.c.l.b16 %v25
  %v201 = vunpack.c.h.b16 %v25
  %v202 = vunpack.c.l.b16 %v26
  %v203 = vunpack.c.l.b16 %v27
  %v204 = vunpack.c.h.b16 %v27
  %v205 = vunpack.c.l.b16 %v28
  %v206 = vunpack.c.h.b16 %v28
  %v207 = vunpack.c.l.b16 %v29
  %v208 = vunpack.c.l.b16 %v30
  %v209 = vunpack.c.h.b16 %v30
  %v210 = vunpack.c.l.b16 %v31
  %v211 = vunpack.c.h.b16 %v31
  %v212 = vunpack.c.l.b16 %v32
  %v213 = vunpack.c.l.b16 %v33
  %v214 = vunpack.c.h.b16 %v33
  %v215 = vunpack.c.l.b16 %v34
  %v216 = vunpack.c.h.b16 %v34
  %v217 = vunpack.c.l.b16 %v35
  %v218 = vunpack.c.l.b16 %v36
  %v219 = vunpack.c.h.b16 %v36
  %v220 = vunpack.c.l.b16 %v37
  %v221 = vunpack.c.h.b16 %v37
  %v222 = vunpack.c.l.b16 %v38
  %v223 = vpack.c.b16 %v188, %v183
  %v224 = vpack.c.b16 %v189, %v184
  %v225 = vpack.c.b16 %v190, %v185
  %v226 = vpack.c.b16 %v191, %v186
  %v227 = vpack.c.b16 %v192, %v187
  %v228 = vpack.c.b16 %v198, %v193
  %v229 = vpack.c.b16 %v199, %v194
  %v230 = vpack.c.b16 %v200, %v195
  %v231 = vpack.c.b16 %v201, %v196
  %v232 = vpack.c.b16 %v202, %v197
  %v233 = vpack.c.b16 %v208, %v203
  %v234 = vpack.c.b16 %v209, %v204
  %v235 = vpack.c.b16 %v210, %v205
  %v236 = vpack.c.b16 %v211, %v206
  %v237 = vpack.c.b16 %v212, %v207
  %v238 = vpack.c.b16 %v218, %v213
  %v239 = vpack.c.b16 %v219, %v214
  %v240 = vpack.c.b16 %v220, %v215
  %v241 = vpack.c.b16 %v221, %v216
  %v242 = vpack.c.b16 %v222, %v217
  %v331 = vunpack.c.l.b16 %v39
  %v332 = vunpack.c.l.b16 %v40
  %v333 = vunpack.c.l.b16 %v41
  %v334 = vunpack.c.l.b16 %v42
  %v335 = vunpack.c.l.b16 %v43
  %v336 = vunpack.c.l.b16 %v44
  %v337 = vunpack.c.l.b16 %v45
  %v338 = vunpack.c.l.b16 %v46
  %v339 = vunpack.c.l.b16 %v47
  %v340 = vunpack.c.l.b16 %v48
  %v341 = vunpack.c.l.b16 %v49
  %v342 = vunpack.c.l.b16 %v50
  %v343 = vunpack.c.l.b16 %v51
  %v344 = vunpack.c.l.b16 %v52
  %v345 = vunpack.c.l.b16 %v53
  %v346 = vunpack.c.l.b16 %v54
  %v347 = vunpack.c.l.b16 %v55
  %v348 = vunpack.c.l.b16 %v56
  %v349 = vunpack.c.l.b16 %v57
  %v350 = vunpack.c.l.b16 %v58
  %v351 = vunpack.c.l.b16 %v59
  %v352 = vunpack.c.l.b16 %v60
  %v353 = vunpack.c.l.b16 %v61
  %v354 = vunpack.c.l.b16 %v62
  %v355 = vunpack.c.l.b16 %v63
  %v356 = vunpack.c.l.b16 %v64
  %v357 = vunpack.c.l.b16 %v65
  %v358 = vunpack.c.l.b16 %v66
  %v359 = vunpack.c.l.b16 %v67
  %v360 = vunpack.c.l.b16 %v68
  %v361 = vunpack.c.l.b16 %v69
  %v362 = vunpack.c.l.b16 %v70
  %v363 = vunpack.c.l.b16 %v71
  %v364 = vunpack.c.l.b16 %v72
  %v365 = vunpack.c.l.b16 %v73
  %v366 = vunpack.c.l.b16 %v74
  %v367 = vunpack.c.l.b16 %v75
  %v368 = vunpack.c.l.b16 %v76
  %v369 = vunpack.c.l.b16 %v77
  %v370 = vunpack.c.l.b16 %v78
  %v371 = vunpack.c.l.b16 %v79
  %v372 = vunpack.c.l.b16 %v80
  %v373 = vunpack.c.l.b16 %v81
  %v374 = vunpack.c.l.b16 %v82
  %v375 = vunpack.c.l.b16 %v83
  %v376 = vunpack.c.l.b16 %v84
  %v377 = vunpack.c.l.b16 %v85
  %v378 = vunpack.c.l.b16 %v86
  %v379 = vunpack.c.l.b16 %v87
  %v380 = vunpack.c.l.b16 %v88
  %v381 = vunpack.c.l.b16 %v89
  %v382 = vunpack.c.l.b16 %v90
  %v383 = vunpack.c.l.b16 %v91
  %v384 = vunpack.c.l.b16 %v92
  %v385 = vunpack.c.l.b16 %v93
  %v386 = vunpack.c.l.b16 %v94
  %v387 = vunpack.c.l.b16 %v95
  %v388 = vunpack.c.l.b16 %v96
  %v389 = vunpack.c.l.b16 %v97
  %v390 = vunpack.c.l.b16 %v98
  %v391 = vunpack.c.l.b16 %v99
  %v392 = vunpack.c.l.b16 %v100
  %v393 = vunpack.c.l.b16 %v101
  %v394 = vunpack.c.l.b16 %v102
  %v395 = vunpack.c.l.b16 %v103
  %v396 = vunpack.c.l.b16 %v104
  %v397 = vunpack.c.l.b16 %v105
  %v398 = vunpack.c.l.b16 %v106
  %v399 = vunpack.c.l.b16 %v107
  %v400 = vunpack.c.l.b16 %v108
  %v401 = vunpack.c.l.b16 %v109
  %v402 = vunpack.c.l.b16 %v110
  %v403 = vpack.c.b16 %v332, %v331
  %v404 = vpack.c.b16 %v334, %v333
  %v405 = vpack.c.b16 %v336, %v335
  %v406 = vpack.c.b16 %v338, %v337
  %v407 = vpack.c.b16 %v340, %v339
  %v408 = vpack.c.b16 %v342, %v341
  %v409 = vpack.c.b16 %v344, %v343
  %v410 = vpack.c.b16 %v346, %v345
  %v411 = vpack.c.b16 %v348, %v347
  %v412 = vpack.c.b16 %v350, %v349
  %v413 = vpack.c.b16 %v352, %v351
  %v414 = vpack.c.b16 %v354, %v353
  %v415 = vpack.c.b16 %v356, %v355
  %v416 = vpack.c.b16 %v358, %v357
  %v417 = vpack.c.b16 %v360, %v359
  %v418 = vpack.c.b16 %v362, %v361
  %v419 = vpack.c.b16 %v364, %v363
  %v420 = vpack.c.b16 %v366, %v365
  %v421 = vpack.c.b16 %v368, %v367
  %v422 = vpack.c.b16 %v370, %v369
  %v423 = vpack.c.b16 %v372, %v371
  %v424 = vpack.c.b16 %v374, %v373
  %v425 = vpack.c.b16 %v376, %v375
  %v426 = vpack.c.b16 %v378, %v377
  %v427 = vpack.c.b16 %v380, %v379
  %v428 = vpack.c.b16 %v382, %v381
  %v429 = vpack.c.b16 %v384, %v383
  %v430 = vpack.c.b16 %v386, %v385
  %v431 = vpack.c.b16 %v388, %v387
  %v432 = vpack.c.b16 %v390, %v389
  %v433 = vpack.c.b16 %v392, %v391
  %v434 = vpack.c.b16 %v394, %v393
  %v435 = vpack.c.b16 %v396, %v395
  %v436 = vpack.c.b16 %v398, %v397
  %v437 = vpack.c.b16 %v400, %v399
  %v438 = vpack.c.b16 %v402, %v401
  %vm475 = vcmask 523264
  %v477 = vsel %vm475, %v227, 0
  %v480 = vsel %vm475, %v232, 0
  %v483 = vsel %vm475, %v237, 0
  %v486 = vsel %vm475, %v242, 0
  %488 = vmatprep.subr.bf16.mxu0 0
  %489 = vmatpush1.bf16.msra.mxu0 %v410
  %490 = vmatprep.subr.bf16.mxu0 0
  %491 = vmatpush1.bf16.msra.mxu0 %v409
  %492 = vmatprep.subr.bf16.mxu0 0
  %493 = vmatpush1.bf16.msra.mxu0 %v408
  %494 = vmatprep.subr.bf16.mxu0 0
  %495 = vmatpush1.bf16.msra.mxu0 %v407
  %496 = vmatprep.subr.bf16.mxu0 0
  %497 = vmatpush1.bf16.msra.mxu0 %v406
  %498 = vmatprep.subr.bf16.mxu0 0
  %499 = vmatpush1.bf16.msra.mxu0 %v405
  %500 = vmatprep.subr.bf16.mxu0 0
  %501 = vmatpush1.bf16.msra.mxu0 %v404
  %502 = vmatprep.subr.bf16.mxu0 0
  %503 = vmatpush1.bf16.msra.mxu0 %v403
  %504 = vmatprep.subr.bf16.mxu0 0
  %505 = vmatpush2.bf16.msra.mxu0 %v418
  %506 = vmatprep.subr.bf16.mxu0 0
  %507 = vmatpush2.bf16.msra.mxu0 %v417
  %508 = vmatprep.subr.bf16.mxu0 0
  %509 = vmatpush2.bf16.msra.mxu0 %v416
  %510 = vmatprep.subr.bf16.mxu0 0
  %511 = vmatpush2.bf16.msra.mxu0 %v415
  %512 = vmatprep.subr.bf16.mxu0 0
  %513 = vmatpush2.bf16.msra.mxu0 %v414
  %514 = vmatprep.subr.bf16.mxu0 0
  %515 = vmatpush2.bf16.msra.mxu0 %v413
  %516 = vmatprep.subr.bf16.mxu0 0
  %517 = vmatpush2.bf16.msra.mxu0 %v412
  %518 = vmatprep.subr.bf16.mxu0 0
  %519 = vmatpush2.bf16.msra.mxu0 %v411
  %520 = vmatprep.mubr.bf16.mxu0 %v224
  %521 = vmatmul.mubr.bf16.gmra.mxu0 %v223
  %v522 = vpop.f32.mrf.mxu0
  %v523 = vadd.f32 %v122, %v522
  %v524 = vpop.f32.mrf.mxu0
  %v525 = vpop.f32.mrf.mxu0
  %v526 = vadd.f32 %v127, %v525
  %v527 = vpop.f32.mrf.mxu0
  %528 = vmatprep.mubr.bf16.mxu0 %v229
  %529 = vmatmul.mubr.bf16.gmra.mxu0 %v228
  %v530 = vpop.f32.mrf.mxu0
  %v531 = vadd.f32 %v132, %v530
  %v532 = vpop.f32.mrf.mxu0
  %v533 = vpop.f32.mrf.mxu0
  %v534 = vadd.f32 %v137, %v533
  %v535 = vpop.f32.mrf.mxu0
  %536 = vmatprep.mubr.bf16.mxu0 %v234
  %537 = vmatmul.mubr.bf16.gmra.mxu0 %v233
  %v538 = vpop.f32.mrf.mxu0
  %v539 = vadd.f32 %v142, %v538
  %v540 = vpop.f32.mrf.mxu0
  %v541 = vpop.f32.mrf.mxu0
  %v542 = vadd.f32 %v147, %v541
  %v543 = vpop.f32.mrf.mxu0
  %544 = vmatprep.mubr.bf16.mxu0 %v239
  %545 = vmatmul.mubr.bf16.gmra.mxu0 %v238
  %v546 = vpop.f32.mrf.mxu0
  %v547 = vadd.f32 %v152, %v546
  %v548 = vpop.f32.mrf.mxu0
  %v549 = vpop.f32.mrf.mxu0
  %v550 = vadd.f32 %v157, %v549
  %v551 = vpop.f32.mrf.mxu0
  %552 = vdwg.mxu0
  %553 = vmatprep.subr.bf16.mxu0 0
  %554 = vmatpush1.bf16.msra.mxu0 %v426
  %555 = vmatprep.subr.bf16.mxu0 0
  %556 = vmatpush1.bf16.msra.mxu0 %v425
  %557 = vmatprep.subr.bf16.mxu0 0
  %558 = vmatpush1.bf16.msra.mxu0 %v424
  %559 = vmatprep.subr.bf16.mxu0 0
  %560 = vmatpush1.bf16.msra.mxu0 %v423
  %561 = vmatprep.subr.bf16.mxu0 0
  %562 = vmatpush1.bf16.msra.mxu0 %v422
  %563 = vmatprep.subr.bf16.mxu0 0
  %564 = vmatpush1.bf16.msra.mxu0 %v421
  %565 = vmatprep.subr.bf16.mxu0 0
  %566 = vmatpush1.bf16.msra.mxu0 %v420
  %567 = vmatprep.subr.bf16.mxu0 0
  %568 = vmatpush1.bf16.msra.mxu0 %v419
  %569 = vmatprep.subr.bf16.mxu0 0
  %570 = vmatpush2.bf16.msra.mxu0 %v434
  %571 = vmatprep.subr.bf16.mxu0 0
  %572 = vmatpush2.bf16.msra.mxu0 %v433
  %573 = vmatprep.subr.bf16.mxu0 0
  %574 = vmatpush2.bf16.msra.mxu0 %v432
  %575 = vmatprep.subr.bf16.mxu0 0
  %576 = vmatpush2.bf16.msra.mxu0 %v431
  %577 = vmatprep.subr.bf16.mxu0 0
  %578 = vmatpush2.bf16.msra.mxu0 %v430
  %579 = vmatprep.subr.bf16.mxu0 0
  %580 = vmatpush2.bf16.msra.mxu0 %v429
  %581 = vmatprep.subr.bf16.mxu0 0
  %582 = vmatpush2.bf16.msra.mxu0 %v428
  %583 = vmatprep.subr.bf16.mxu0 0
  %584 = vmatpush2.bf16.msra.mxu0 %v427
  %585 = vmatprep.mubr.bf16.mxu0 %v226
  %586 = vmatmul.mubr.bf16.gmra.mxu0 %v225
  %v587 = vpop.f32.mrf.mxu0
  %v588 = vadd.f32 %v523, %v587
  %v589 = vpop.f32.mrf.mxu0
  %v590 = vpop.f32.mrf.mxu0
  %v591 = vadd.f32 %v526, %v590
  %v592 = vpop.f32.mrf.mxu0
  %593 = vmatprep.mubr.bf16.mxu0 %v231
  %594 = vmatmul.mubr.bf16.gmra.mxu0 %v230
  %v595 = vpop.f32.mrf.mxu0
  %v596 = vadd.f32 %v531, %v595
  %v597 = vpop.f32.mrf.mxu0
  %v598 = vpop.f32.mrf.mxu0
  %v599 = vadd.f32 %v534, %v598
  %v600 = vpop.f32.mrf.mxu0
  %601 = vmatprep.mubr.bf16.mxu0 %v236
  %602 = vmatmul.mubr.bf16.gmra.mxu0 %v235
  %v603 = vpop.f32.mrf.mxu0
  %v604 = vadd.f32 %v539, %v603
  %v605 = vpop.f32.mrf.mxu0
  %v606 = vpop.f32.mrf.mxu0
  %v607 = vadd.f32 %v542, %v606
  %v608 = vpop.f32.mrf.mxu0
  %609 = vmatprep.mubr.bf16.mxu0 %v241
  %610 = vmatmul.mubr.bf16.gmra.mxu0 %v240
  %v611 = vpop.f32.mrf.mxu0
  %v612 = vadd.f32 %v547, %v611
  %v613 = vpop.f32.mrf.mxu0
  %v614 = vpop.f32.mrf.mxu0
  %v615 = vadd.f32 %v550, %v614
  %v616 = vpop.f32.mrf.mxu0
  %617 = vdwg.mxu0
  %618 = vmatprep.subr.bf16.mxu0 0
  %619 = vmatpush1.bf16.msra.mxu0 0
  %620 = vmatprep.subr.bf16.mxu0 0
  %621 = vmatpush1.bf16.msra.mxu0 0
  %622 = vmatprep.subr.bf16.mxu0 0
  %623 = vmatpush1.bf16.msra.mxu0 0
  %624 = vmatprep.subr.bf16.mxu0 0
  %625 = vmatpush1.bf16.msra.mxu0 0
  %626 = vmatprep.subr.bf16.mxu0 0
  %627 = vmatpush1.bf16.msra.mxu0 %v438
  %628 = vmatprep.subr.bf16.mxu0 0
  %629 = vmatpush1.bf16.msra.mxu0 %v437
  %630 = vmatprep.subr.bf16.mxu0 0
  %631 = vmatpush1.bf16.msra.mxu0 %v436
  %632 = vmatprep.subr.bf16.mxu0 0
  %633 = vmatpush1.bf16.msra.mxu0 %v435
  %634 = vmatprep.subr.bf16.mxu0 0
  %635 = vmatpush2.bf16.msra.mxu0 0
  %636 = vmatprep.subr.bf16.mxu0 0
  %637 = vmatpush2.bf16.msra.mxu0 0
  %638 = vmatprep.subr.bf16.mxu0 0
  %639 = vmatpush2.bf16.msra.mxu0 0
  %640 = vmatprep.subr.bf16.mxu0 0
  %641 = vmatpush2.bf16.msra.mxu0 0
  %642 = vmatprep.subr.bf16.mxu0 0
  %643 = vmatpush2.bf16.msra.mxu0 0
  %644 = vmatprep.subr.bf16.mxu0 0
  %645 = vmatpush2.bf16.msra.mxu0 0
  %646 = vmatprep.subr.bf16.mxu0 0
  %647 = vmatpush2.bf16.msra.mxu0 0
  %648 = vmatprep.subr.bf16.mxu0 0
  %649 = vmatpush2.bf16.msra.mxu0 0
  %650 = vmatprep.mubr.bf16.mxu0 0
  %651 = vmatmul.mubr.bf16.gmra.mxu0 %v477
  %v652 = vpop.f32.mrf.mxu0
  %v653 = vadd.f32 %v588, %v652
  %v654 = vpop.f32.mrf.mxu0
  %v655 = vpop.f32.mrf.mxu0
  %v656 = vadd.f32 %v591, %v655
  %v657 = vpop.f32.mrf.mxu0
  %658 = vmatprep.mubr.bf16.mxu0 0
  %659 = vmatmul.mubr.bf16.gmra.mxu0 %v480
  %v660 = vpop.f32.mrf.mxu0
  %v661 = vadd.f32 %v596, %v660
  %v662 = vpop.f32.mrf.mxu0
  %v663 = vpop.f32.mrf.mxu0
  %v664 = vadd.f32 %v599, %v663
  %v665 = vpop.f32.mrf.mxu0
  %666 = vmatprep.mubr.bf16.mxu0 0
  %667 = vmatmul.mubr.bf16.gmra.mxu0 %v483
  %v668 = vpop.f32.mrf.mxu0
  %v669 = vadd.f32 %v604, %v668
  %v670 = vpop.f32.mrf.mxu0
  %v671 = vpop.f32.mrf.mxu0
  %v672 = vadd.f32 %v607, %v671
  %v673 = vpop.f32.mrf.mxu0
  %674 = vmatprep.mubr.bf16.mxu0 0
  %675 = vmatmul.mubr.bf16.gmra.mxu0 %v486
  %v676 = vpop.f32.mrf.mxu0
  %v677 = vadd.f32 %v612, %v676
  %v678 = vpop.f32.mrf.mxu0
  %v679 = vpop.f32.mrf.mxu0
  %v680 = vadd.f32 %v615, %v679
  %v681 = vpop.f32.mrf.mxu0
  %682 = vdwg.mxu0
  %683 = vst [vmem:[%s3] sm:$0xff] %v653
  %684 = vst [vmem:[%s3 + $0x8] sm:$0xff] %v656
  %685 = vst [vmem:[%s3 + $0x10] sm:$0xff] %v661
  %686 = vst [vmem:[%s3 + $0x18] sm:$0xff] %v664
  %687 = vst [vmem:[%s3 + $0x20] sm:$0xff] %v669
  %688 = vst [vmem:[%s3 + $0x28] sm:$0xff] %v672
  %689 = vst [vmem:[%s3 + $0x30] sm:$0xff] %v677
  %690 = vst [vmem:[%s3 + $0x38] sm:$0xff] %v680
  // Predicated region
  $region14: #{rapn_forward.3} parent=0 // pred_check
    _
  $region15: #{rapn_forward.3} parent=0 // pred_check_branch
    %692 = sbr.rel (0) target = $region17
  $region16: #{rapn_forward.3} parent=0 // pred_region
    _
  $region17: #{rapn_forward.3} parent=0 // pred_fallthru
    _
  // Predicated region
  $region18: #{rapn_forward.3} parent=0 // pred_check
    _
  $region19: #{rapn_forward.3} parent=0 // pred_check_branch
    %694 = sbr.rel (0) target = $region21
  $region20: #{rapn_forward.3} parent=0 // pred_region
    _
  $region21: #{rapn_forward.3} parent=0 // pred_fallthru
    _

</llo_original>
